<compile_context>
chip_gen: v6e
topology: v6e:2x2x1
jax: 0.10.0
libtpu: 0.0.40
codegen_flags: <defaults>
</compile_context>

<pallas_src>
import jax
import jax.numpy as jnp
from jax import lax
from jax.experimental import pallas as pl
from jax.experimental.pallas import tpu as pltpu

# ---------------- config (mirrors ConditionalGuidedModelLSTM.__init__) -------
B = 2              # batch
BP = 8             # batch padded to sublane width (keeps every matmul at M=8)
MAX_LEN = 8        # args.max_len (sequence length == BatchNorm1d channels)
X_DIM = 4          # args.x_dim
HIDDEN = 32        # config.diffusion.nonlinear_guidance.hidden_size
FEATURE = 64       # config.model.feature_dim
N_LAYERS = 2       # config.diffusion.nonlinear_guidance.n_layers
TIMESTEPS = 10
N_STEPS = TIMESTEPS + 1
EMB_PAD = 16       # N_STEPS padded up for the in-kernel one-hot gather
CAT_X = True
CAT_Y_PRED = True
DATA_DIM = 1 + (HIDDEN if CAT_X else 0) + (1 if CAT_Y_PRED else 0)
BN_EPS = 1e-5

_VMEM = pl.BlockSpec(memory_space=pltpu.MemorySpace.VMEM)
_SMEM = pl.BlockSpec(memory_space=pltpu.MemorySpace.SMEM)


# ---------------------------------------------------------------------------
# Fused kernel: emb gather -> LSTM layer 1 (+ layer-2 input projection/BN fold)
# -> LSTM layer 2 -> BN of last step -> conditional-linear head.
# ---------------------------------------------------------------------------
def _fused_kernel(x_ref, yt_ref, y0_ref, t_ref,              # data (VMEM)
                  bns_ref, bnb_ref,                          # BN scalars (SMEM)
                  win1_ref, bin1_ref, wrec1_ref, bin2_ref, whh2_ref,
                  emb_ref, w1x_ref, w1yt_ref, w1y0_ref, b1_ref,
                  w2_ref, b2_ref, w3_ref, b3_ref, w4_ref, b4_ref,
                  out_ref):
    f32, bf16 = jnp.float32, jnp.bfloat16
    Bk = x_ref.shape[0]
    H = HIDDEN
    G = 4 * H
    T = MAX_LEN

    # ---------------- off-critical-path prep (scheduler-hoistable) ----------
    # Timestep-embedding gather for the three ConditionalLinear layers as ONE
    # one-hot matmul (replaces three wrapper-side jnp.take + HBM round-trips).
    steps = emb_ref.shape[0]
    eq = lax.broadcasted_iota(jnp.int32, (Bk, steps), 1) == t_ref[...]
    onehot = jnp.where(eq, 1.0, 0.0).astype(bf16)
    gam = jnp.dot(onehot, emb_ref[...], preferred_element_type=f32)    # (B, 3F)
    g1 = gam[:, 0:FEATURE]
    g2 = gam[:, FEATURE:2 * FEATURE]
    g3 = gam[:, 2 * FEATURE:3 * FEATURE]
    # y_t / y_0_hat columns of the head's first matmul (no in-kernel concat).
    head0 = (yt_ref[...] * w1yt_ref[...] + y0_ref[...] * w1y0_ref[...]
             + b1_ref[...])                                            # (B, F)

    # Layer-1 input projection hoisted out of the recurrence: one
    # (B, T*Din) @ (T*Din, T*4H) block-diagonal matmul; per-step use is a
    # vreg-aligned 128-lane static slice.
    pre1 = jnp.dot(x_ref[...].astype(bf16), win1_ref[...],
                   preferred_element_type=f32) + bin1_ref[...]         # (B, T*4H)

    wrec1 = wrec1_ref[...]     # (H, 8H) = [W_hh1 | W_ih2], g-cols pre-scaled, bf16
    whh2 = whh2_ref[...]       # (H, 4H), bf16

    def cell(gates, c):
        # One full-vreg sigmoid per step; g-gate columns were pre-scaled by 2
        # at param-prep time, so tanh(g) = 2*sigmoid(2g) - 1 (exact rewrite).
        sg = jax.nn.sigmoid(gates)
        i_g = sg[:, 0:H]
        f_g = sg[:, H:2 * H]
        g_g = 2.0 * sg[:, 2 * H:3 * H] - 1.0
        o_g = sg[:, 3 * H:4 * H]
        c = f_g * c + i_g * g_g
        return o_g * jnp.tanh(c), c

    # ---------------- LSTM layer 1 (serial, fully unrolled) -----------------
    # The two layers cannot be wavefronted (lstm2 is seeded with lstm1's final
    # state), so instead each layer-1 step issues ONE (B,H)@(H,8H) matmul whose
    # first half is next step's h@W_hh1 and whose second half is layer 2's
    # input projection for this timestep (with BatchNorm folded in).
    h1 = jnp.zeros((Bk, H), f32)
    c1 = jnp.zeros((Bk, H), f32)
    rec1 = None
    inp2 = []                                   # layer-2 pre-activations, in vregs
    for t in range(T):
        gates = pre1[:, t * G:(t + 1) * G]
        if t > 0:
            gates = gates + rec1
        h1, c1 = cell(gates, c1)
        mm = jnp.dot(h1.astype(bf16), wrec1, preferred_element_type=f32)   # (B, 8H)
        rec1 = mm[:, 0:G]                                  # h1_t @ W_hh1
        # bn(h1_t) @ W_ih2 + b_lstm2
        #   == scale_t*(h1_t @ W_ih2) + (b_lstm2 + shift_t*colsum(W_ih2))
        inp2.append(bns_ref[t] * mm[:, G:2 * G] + bin2_ref[:, t * G:(t + 1) * G])

    # ---------------- LSTM layer 2 (seeded with layer 1's final state) ------
    h2, c2 = h1, c1
    for t in range(T):
        rec2 = jnp.dot(h2.astype(bf16), whh2, preferred_element_type=f32)
        h2, c2 = cell(rec2 + inp2[t], c2)

    # BatchNorm of layer-2 output at the last timestep only (sole consumer).
    x_last = bns_ref[T - 1] * h2 + bnb_ref[T - 1]                      # (B, H)

    # ---------------- conditional-linear diffusion head ---------------------
    z = jnp.dot(x_last.astype(bf16), w1x_ref[...],
                preferred_element_type=f32) + head0
    z = jax.nn.softplus(g1 * z)
    z = jnp.dot(z.astype(bf16), w2_ref[...], preferred_element_type=f32) + b2_ref[...]
    z = jax.nn.softplus(g2 * z)
    z = jnp.dot(z.astype(bf16), w3_ref[...], preferred_element_type=f32) + b3_ref[...]
    z = jax.nn.softplus(g3 * z)
    # Final (F -> 1) projection as VPU multiply + lane reduction (no 1-lane MXU op).
    out_ref[...] = jnp.sum(z * w4_ref[...], axis=-1, keepdims=True) + b4_ref[...]


def _fused(kp, x_flat, yt, y0, ti):
    Bp = x_flat.shape[0]
    return pl.pallas_call(
        _fused_kernel,
        out_shape=jax.ShapeDtypeStruct((Bp, 1), jnp.float32),
        in_specs=[_VMEM, _VMEM, _VMEM, _VMEM, _SMEM, _SMEM] + [_VMEM] * 16,
        out_specs=_VMEM,
    )(x_flat, yt, y0, ti,
      kp["bn_scale"], kp["bn_shift"],
      kp["w_in1"], kp["b_in1"], kp["w_rec1"], kp["b_in2"], kp["w_hh2"],
      kp["emb_cat"],
      kp["w1x"], kp["w1yt"], kp["w1y0"], kp["b1h"],
      kp["w2"], kp["b2h"], kp["w3"], kp["b3h"], kp["w4row"], kp["b4"])


# ---------------------------------------------------------------------------
# Parameter init (PyTorch shapes; weights stored transposed: (in, out)).
# ---------------------------------------------------------------------------
def init_params(key):
    ks = jax.random.split(key, 23)

    def u(k, shape, a):
        return jax.random.uniform(k, shape, jnp.float32, -a, a)

    s_lstm = 1.0 / jnp.sqrt(jnp.float32(HIDDEN))
    p = {}
    # lstm1: X_DIM -> HIDDEN   (stored (in, 4H); bias = b_ih + b_hh)
    p["w_ih1"] = u(ks[0], (X_DIM, 4 * HIDDEN), s_lstm)
    p["w_hh1"] = u(ks[1], (HIDDEN, 4 * HIDDEN), s_lstm)
    p["b_lstm1"] = (u(ks[2], (4 * HIDDEN,), s_lstm)
                    + u(ks[3], (4 * HIDDEN,), s_lstm)).reshape(1, -1)
    # lstm2: HIDDEN -> HIDDEN
    p["w_ih2"] = u(ks[4], (HIDDEN, 4 * HIDDEN), s_lstm)
    p["w_hh2"] = u(ks[5], (HIDDEN, 4 * HIDDEN), s_lstm)
    p["b_lstm2"] = (u(ks[6], (4 * HIDDEN,), s_lstm)
                    + u(ks[7], (4 * HIDDEN,), s_lstm)).reshape(1, -1)
    # BatchNorm1d(max_len), eval mode -> per-timestep scale/shift
    gamma = jax.random.uniform(ks[8], (MAX_LEN,), jnp.float32, 0.5, 1.5)
    beta = jax.random.uniform(ks[9], (MAX_LEN,), jnp.float32, -0.5, 0.5)
    r_mean = jax.random.uniform(ks[10], (MAX_LEN,), jnp.float32, -0.1, 0.1)
    r_var = jax.random.uniform(ks[11], (MAX_LEN,), jnp.float32, 0.5, 1.5)
    scale = gamma / jnp.sqrt(r_var + BN_EPS)
    p["bn_scale"] = scale.reshape(MAX_LEN, 1)
    p["bn_shift"] = (beta - r_mean * scale).reshape(MAX_LEN, 1)
    # ConditionalLinear 1..3 + final lin4
    s1 = 1.0 / jnp.sqrt(jnp.float32(DATA_DIM))
    sf = 1.0 / jnp.sqrt(jnp.float32(FEATURE))
    p["w1"] = u(ks[12], (DATA_DIM, FEATURE), s1)
    p["b1"] = u(ks[13], (FEATURE,), s1).reshape(1, -1)
    p["w2"] = u(ks[14], (FEATURE, FEATURE), sf)
    p["b2"] = u(ks[15], (FEATURE,), sf).reshape(1, -1)
    p["w3"] = u(ks[16], (FEATURE, FEATURE), sf)
    p["b3"] = u(ks[17], (FEATURE,), sf).reshape(1, -1)
    p["w4"] = u(ks[18], (FEATURE, 1), sf)
    p["b4"] = u(ks[19], (1,), sf).reshape(1, 1)
    # embeddings: uniform_() -> U[0, 1)
    p["emb1"] = jax.random.uniform(ks[20], (N_STEPS, FEATURE), jnp.float32, 0.0, 1.0)
    p["emb2"] = jax.random.uniform(ks[21], (N_STEPS, FEATURE), jnp.float32, 0.0, 1.0)
    p["emb3"] = jax.random.uniform(ks[22], (N_STEPS, FEATURE), jnp.float32, 0.0, 1.0)
    return p


def prepare_params(p):
    """One-time kernel-ready prep (host side): g-column pre-scale, block-diagonal
    layer-1 input projection, fused [W_hh1|W_ih2] recurrence weight, BN-shift
    folded into a per-timestep layer-2 bias, W1 split, bf16 MXU weights,
    concatenated+padded embedding table."""
    f32, bf16 = jnp.float32, jnp.bfloat16
    G = 4 * HIDDEN

    def prescale(w):  # scale g-gate columns by 2 (gate layout [i, f, g, o])
        return w.at[..., 2 * HIDDEN:3 * HIDDEN].multiply(2.0)

    w_ih1 = prescale(p["w_ih1"])
    w_hh1 = prescale(p["w_hh1"])
    b_l1 = prescale(p["b_lstm1"])
    w_ih2 = prescale(p["w_ih2"])
    w_hh2 = prescale(p["w_hh2"])
    b_l2 = prescale(p["b_lstm2"])

    # Block-diagonal layer-1 input projection: (T*Din, T*4H)
    w_in1 = jnp.zeros((MAX_LEN * X_DIM, MAX_LEN * G), f32)
    for t in range(MAX_LEN):
        w_in1 = w_in1.at[t * X_DIM:(t + 1) * X_DIM, t * G:(t + 1) * G].set(w_ih1)
    b_in1 = jnp.tile(b_l1, (1, MAX_LEN))                     # (1, T*4H)

    bn_s = p["bn_scale"][:, 0]                               # (T,)
    bn_b = p["bn_shift"][:, 0]
    cs2 = jnp.sum(w_ih2, axis=0, keepdims=True)              # colsum(W_ih2), (1, 4H)
    b_in2 = jnp.concatenate([b_l2 + bn_b[t] * cs2 for t in range(MAX_LEN)], axis=1)

    emb_cat = jnp.concatenate([p["emb1"], p["emb2"], p["emb3"]], axis=1)
    emb_cat = jnp.pad(emb_cat, ((0, EMB_PAD - N_STEPS), (0, 0)))

    return dict(
        w_in1=w_in1.astype(bf16), b_in1=b_in1,
        w_rec1=jnp.concatenate([w_hh1, w_ih2], axis=1).astype(bf16),   # (H, 8H)
        b_in2=b_in2, w_hh2=w_hh2.astype(bf16),
        bn_scale=bn_s, bn_shift=bn_b,
        emb_cat=emb_cat.astype(bf16),
        w1yt=p["w1"][0:1, :], w1y0=p["w1"][1:2, :],
        w1x=p["w1"][2:, :].astype(bf16), b1h=p["b1"],
        w2=p["w2"].astype(bf16), b2h=p["b2"],
        w3=p["w3"].astype(bf16), b3h=p["b3"],
        w4row=jnp.transpose(p["w4"]), b4=p["b4"],
    )


# ---------------------------------------------------------------------------
# Forward wrapper: only bitcast-style reshapes + 4 tiny zero-pads remain here
# (no gathers, no transposes, no computed intermediates through HBM).
# ---------------------------------------------------------------------------
def forward(kparams, x, y_t, y_0_hat, t):
    # TODO(synk): nn.Dropout is treated as eval-mode identity (no RNG masking).
    Bb = x.shape[0]
    pad = BP - Bb
    x_flat = jnp.pad(x.astype(jnp.float32).reshape(Bb, MAX_LEN * X_DIM),
                     ((0, pad), (0, 0)))
    yt = jnp.pad(y_t.astype(jnp.float32)[:, None], ((0, pad), (0, 0)))
    y0 = jnp.pad(y_0_hat.astype(jnp.float32)[:, None], ((0, pad), (0, 0)))
    ti = jnp.pad(t.astype(jnp.int32)[:, None], ((0, pad), (0, 0)))
    out = _fused(kparams, x_flat, yt, y0, ti)                # (BP, 1)
    return out[:Bb]


# ---------------------------------------------------------------------------
# Pure-JAX f32 reference (sanity check only).
# ---------------------------------------------------------------------------
def ref_forward(params, x, y_t, y_0_hat, t):
    def lstm_ref(x_bt, w_ih, w_hh, b, h0, c0):
        def step(carry, xt):
            h, c = carry
            g = xt @ w_ih + h @ w_hh + b
            i = jax.nn.sigmoid(g[:, :HIDDEN])
            f = jax.nn.sigmoid(g[:, HIDDEN:2 * HIDDEN])
            gg = jnp.tanh(g[:, 2 * HIDDEN:3 * HIDDEN])
            o = jax.nn.sigmoid(g[:, 3 * HIDDEN:])
            c2 = f * c + i * gg
            h2 = o * jnp.tanh(c2)
            return (h2, c2), h2
        (h, c), ys = lax.scan(step, (h0, c0), jnp.transpose(x_bt, (1, 0, 2)))
        return jnp.transpose(ys, (1, 0, 2)), h, c

    def bn(x_btH):
        sc = params["bn_scale"][:, 0][None, :, None]
        sh = params["bn_shift"][:, 0][None, :, None]
        return x_btH * sc + sh

    h0 = jnp.zeros((x.shape[0], HIDDEN), jnp.float32)
    c0 = jnp.zeros((x.shape[0], HIDDEN), jnp.float32)
    y, h, c = lstm_ref(x, params["w_ih1"], params["w_hh1"], params["b_lstm1"], h0, c0)
    y = bn(y)
    for _ in range(N_LAYERS - 1):
        y, h, c = lstm_ref(y, params["w_ih2"], params["w_hh2"], params["b_lstm2"], h, c)
        y = bn(y)
    x_last = y[:, -1, :]
    eps = jnp.concatenate([y_t[:, None], y_0_hat[:, None], x_last], axis=1)
    eps = jax.nn.softplus(params["emb1"][t] * (eps @ params["w1"] + params["b1"]))
    eps = jax.nn.softplus(params["emb2"][t] * (eps @ params["w2"] + params["b2"]))
    eps = jax.nn.softplus(params["emb3"][t] * (eps @ params["w3"] + params["b3"]))
    return eps @ params["w4"] + params["b4"]


if __name__ == "__main__":
    key = jax.random.PRNGKey(0)
    k_p, k_x, k_yt, k_y0, k_t = jax.random.split(key, 5)
    params = init_params(k_p)
    kparams = prepare_params(params)

    x = jax.random.normal(k_x, (B, MAX_LEN, X_DIM), jnp.float32)
    y_t = jax.random.normal(k_yt, (B,), jnp.float32)
    y_0_hat = jax.random.normal(k_y0, (B,), jnp.float32)
    t = jax.random.randint(k_t, (B,), 0, N_STEPS)

    out = jax.block_until_ready(jax.jit(forward)(kparams, x, y_t, y_0_hat, t))
    ref = jax.block_until_ready(ref_forward(params, x, y_t, y_0_hat, t))
    assert out.shape == (B, 1)
    # bf16 MXU operands in the kernel (per perf guidance) vs f32 reference.
    assert bool(jnp.allclose(out, ref, atol=3e-2, rtol=3e-2))
    print("KERNEL_OK")
</pallas_src>

<mosaic_0001>
module attributes {stable_mosaic.version = 11 : i64} {
  func.func @_fused_kernel(%arg0: memref<8x32xf32, #tpu.memory_space<vmem>>, %arg1: memref<8x1xf32, #tpu.memory_space<vmem>>, %arg2: memref<8x1xf32, #tpu.memory_space<vmem>>, %arg3: memref<8x1xi32, #tpu.memory_space<vmem>>, %arg4: memref<8xf32, #tpu.memory_space<smem>>, %arg5: memref<8xf32, #tpu.memory_space<smem>>, %arg6: memref<32x1024xbf16, #tpu.memory_space<vmem>>, %arg7: memref<1x1024xf32, #tpu.memory_space<vmem>>, %arg8: memref<32x256xbf16, #tpu.memory_space<vmem>>, %arg9: memref<1x1024xf32, #tpu.memory_space<vmem>>, %arg10: memref<32x128xbf16, #tpu.memory_space<vmem>>, %arg11: memref<16x192xbf16, #tpu.memory_space<vmem>>, %arg12: memref<32x64xbf16, #tpu.memory_space<vmem>>, %arg13: memref<1x64xf32, #tpu.memory_space<vmem>>, %arg14: memref<1x64xf32, #tpu.memory_space<vmem>>, %arg15: memref<1x64xf32, #tpu.memory_space<vmem>>, %arg16: memref<64x64xbf16, #tpu.memory_space<vmem>>, %arg17: memref<1x64xf32, #tpu.memory_space<vmem>>, %arg18: memref<64x64xbf16, #tpu.memory_space<vmem>>, %arg19: memref<1x64xf32, #tpu.memory_space<vmem>>, %arg20: memref<1x64xf32, #tpu.memory_space<vmem>>, %arg21: memref<1x1xf32, #tpu.memory_space<vmem>>, %arg22: memref<8x1xf32, #tpu.memory_space<vmem>>) attributes {dimension_semantics = [], scalar_prefetch = 0 : i64, scratch_operands = 0 : i64, tpu.core_type = #tpu.core_type<tc>} {
    %0 = tpu.iota {dimensions = array<i32: 1>} : vector<8x16xi32>
    %c0 = arith.constant 0 : index
    %c0_0 = arith.constant 0 : index
    %1 = vector.load %arg3[%c0, %c0_0] : memref<8x1xi32, #tpu.memory_space<vmem>>, vector<8x1xi32>
    %2 = vector.broadcast %1 : vector<8x1xi32> to vector<8x16xi32>
    %3 = arith.cmpi eq, %0, %2 : vector<8x16xi32>
    %cst = arith.constant 1.000000e+00 : f32
    %cst_1 = arith.constant 0.000000e+00 : f32
    %4 = vector.broadcast %cst : f32 to vector<8x16xf32>
    %5 = vector.broadcast %cst_1 : f32 to vector<8x16xf32>
    %6 = arith.select %3, %4, %5 : vector<8x16xi1>, vector<8x16xf32>
    %7 = arith.truncf %6 : vector<8x16xf32> to vector<8x16xbf16>
    %c0_2 = arith.constant 0 : index
    %c0_3 = arith.constant 0 : index
    %8 = vector.load %arg11[%c0_2, %c0_3] : memref<16x192xbf16, #tpu.memory_space<vmem>>, vector<16x192xbf16>
    %cst_4 = arith.constant dense<0.000000e+00> : vector<8x192xf32>
    %9 = tpu.matmul %7, %8, %cst_4 {dimension_numbers = #tpu.dot_dimension_numbers<[1], [0], [0], [1], [0, 0, 1, 1], [], []>} : vector<8x16xbf16>, vector<16x192xbf16>, vector<8x192xf32> -> vector<8x192xf32>
    %10 = vector.extract_strided_slice %9 {offsets = [0, 0], sizes = [8, 64], strides = [1, 1]} : vector<8x192xf32> to vector<8x64xf32>
    %11 = vector.extract_strided_slice %9 {offsets = [0, 64], sizes = [8, 64], strides = [1, 1]} : vector<8x192xf32> to vector<8x64xf32>
    %12 = vector.extract_strided_slice %9 {offsets = [0, 128], sizes = [8, 64], strides = [1, 1]} : vector<8x192xf32> to vector<8x64xf32>
    %c0_5 = arith.constant 0 : index
    %c0_6 = arith.constant 0 : index
    %13 = vector.load %arg1[%c0_5, %c0_6] : memref<8x1xf32, #tpu.memory_space<vmem>>, vector<8x1xf32>
    %c0_7 = arith.constant 0 : index
    %c0_8 = arith.constant 0 : index
    %14 = vector.load %arg13[%c0_7, %c0_8] : memref<1x64xf32, #tpu.memory_space<vmem>>, vector<1x64xf32>
    %15 = vector.broadcast %13 : vector<8x1xf32> to vector<8x64xf32>
    %16 = vector.broadcast %14 : vector<1x64xf32> to vector<8x64xf32>
    %17 = arith.mulf %15, %16 : vector<8x64xf32>
    %c0_9 = arith.constant 0 : index
    %c0_10 = arith.constant 0 : index
    %18 = vector.load %arg2[%c0_9, %c0_10] : memref<8x1xf32, #tpu.memory_space<vmem>>, vector<8x1xf32>
    %c0_11 = arith.constant 0 : index
    %c0_12 = arith.constant 0 : index
    %19 = vector.load %arg14[%c0_11, %c0_12] : memref<1x64xf32, #tpu.memory_space<vmem>>, vector<1x64xf32>
    %20 = vector.broadcast %18 : vector<8x1xf32> to vector<8x64xf32>
    %21 = vector.broadcast %19 : vector<1x64xf32> to vector<8x64xf32>
    %22 = arith.mulf %20, %21 : vector<8x64xf32>
    %23 = arith.addf %17, %22 : vector<8x64xf32>
    %c0_13 = arith.constant 0 : index
    %c0_14 = arith.constant 0 : index
    %24 = vector.load %arg15[%c0_13, %c0_14] : memref<1x64xf32, #tpu.memory_space<vmem>>, vector<1x64xf32>
    %25 = vector.broadcast %24 : vector<1x64xf32> to vector<8x64xf32>
    %26 = arith.addf %23, %25 : vector<8x64xf32>
    %c0_15 = arith.constant 0 : index
    %c0_16 = arith.constant 0 : index
    %27 = vector.load %arg0[%c0_15, %c0_16] : memref<8x32xf32, #tpu.memory_space<vmem>>, vector<8x32xf32>
    %28 = arith.truncf %27 : vector<8x32xf32> to vector<8x32xbf16>
    %c0_17 = arith.constant 0 : index
    %c0_18 = arith.constant 0 : index
    %29 = vector.load %arg6[%c0_17, %c0_18] : memref<32x1024xbf16, #tpu.memory_space<vmem>>, vector<32x1024xbf16>
    %cst_19 = arith.constant dense<0.000000e+00> : vector<8x1024xf32>
    %30 = tpu.matmul %28, %29, %cst_19 {dimension_numbers = #tpu.dot_dimension_numbers<[1], [0], [0], [1], [0, 0, 1, 1], [], []>} : vector<8x32xbf16>, vector<32x1024xbf16>, vector<8x1024xf32> -> vector<8x1024xf32>
    %c0_20 = arith.constant 0 : index
    %c0_21 = arith.constant 0 : index
    %31 = vector.load %arg7[%c0_20, %c0_21] : memref<1x1024xf32, #tpu.memory_space<vmem>>, vector<1x1024xf32>
    %32 = vector.broadcast %31 : vector<1x1024xf32> to vector<8x1024xf32>
    %33 = arith.addf %30, %32 : vector<8x1024xf32>
    %c0_22 = arith.constant 0 : index
    %c0_23 = arith.constant 0 : index
    %34 = vector.load %arg8[%c0_22, %c0_23] : memref<32x256xbf16, #tpu.memory_space<vmem>>, vector<32x256xbf16>
    %c0_24 = arith.constant 0 : index
    %c0_25 = arith.constant 0 : index
    %35 = vector.load %arg10[%c0_24, %c0_25] : memref<32x128xbf16, #tpu.memory_space<vmem>>, vector<32x128xbf16>
    %cst_26 = arith.constant 0.000000e+00 : f32
    %36 = vector.broadcast %cst_26 : f32 to vector<8x32xf32>
    %37 = vector.extract_strided_slice %33 {offsets = [0, 0], sizes = [8, 128], strides = [1, 1]} : vector<8x1024xf32> to vector<8x128xf32>
    %38 = arith.negf %37 : vector<8x128xf32>
    %39 = math.exp %38 : vector<8x128xf32>
    %cst_27 = arith.constant 1.000000e+00 : f32
    %40 = vector.broadcast %cst_27 : f32 to vector<8x128xf32>
    %41 = arith.addf %40, %39 : vector<8x128xf32>
    %42 = arith.divf %40, %41 : vector<8x128xf32>
    %43 = vector.extract_strided_slice %42 {offsets = [0, 0], sizes = [8, 32], strides = [1, 1]} : vector<8x128xf32> to vector<8x32xf32>
    %44 = vector.extract_strided_slice %42 {offsets = [0, 32], sizes = [8, 32], strides = [1, 1]} : vector<8x128xf32> to vector<8x32xf32>
    %45 = vector.extract_strided_slice %42 {offsets = [0, 64], sizes = [8, 32], strides = [1, 1]} : vector<8x128xf32> to vector<8x32xf32>
    %cst_28 = arith.constant 2.000000e+00 : f32
    %46 = vector.broadcast %cst_28 : f32 to vector<8x32xf32>
    %47 = arith.mulf %46, %45 : vector<8x32xf32>
    %cst_29 = arith.constant 1.000000e+00 : f32
    %48 = vector.broadcast %cst_29 : f32 to vector<8x32xf32>
    %49 = arith.subf %47, %48 : vector<8x32xf32>
    %50 = vector.extract_strided_slice %42 {offsets = [0, 96], sizes = [8, 32], strides = [1, 1]} : vector<8x128xf32> to vector<8x32xf32>
    %51 = arith.mulf %44, %36 : vector<8x32xf32>
    %52 = arith.mulf %43, %49 : vector<8x32xf32>
    %53 = arith.addf %51, %52 : vector<8x32xf32>
    %54 = math.tanh %53 : vector<8x32xf32>
    %55 = arith.mulf %50, %54 : vector<8x32xf32>
    %56 = arith.truncf %55 : vector<8x32xf32> to vector<8x32xbf16>
    %cst_30 = arith.constant dense<0.000000e+00> : vector<8x256xf32>
    %57 = tpu.matmul %56, %34, %cst_30 {dimension_numbers = #tpu.dot_dimension_numbers<[1], [0], [0], [1], [0, 0, 1, 1], [], []>} : vector<8x32xbf16>, vector<32x256xbf16>, vector<8x256xf32> -> vector<8x256xf32>
    %58 = vector.extract_strided_slice %57 {offsets = [0, 0], sizes = [8, 128], strides = [1, 1]} : vector<8x256xf32> to vector<8x128xf32>
    %c0_31 = arith.constant 0 : index
    %59 = memref.load %arg4[%c0_31] : memref<8xf32, #tpu.memory_space<smem>>
    %60 = vector.extract_strided_slice %57 {offsets = [0, 128], sizes = [8, 128], strides = [1, 1]} : vector<8x256xf32> to vector<8x128xf32>
    %61 = vector.broadcast %59 : f32 to vector<8x128xf32>
    %62 = arith.mulf %61, %60 : vector<8x128xf32>
    %c0_32 = arith.constant 0 : index
    %c0_33 = arith.constant 0 : index
    %63 = vector.load %arg9[%c0_32, %c0_33] : memref<1x1024xf32, #tpu.memory_space<vmem>>, vector<1x128xf32>
    %64 = vector.broadcast %63 : vector<1x128xf32> to vector<8x128xf32>
    %65 = arith.addf %62, %64 : vector<8x128xf32>
    %66 = vector.extract_strided_slice %33 {offsets = [0, 128], sizes = [8, 128], strides = [1, 1]} : vector<8x1024xf32> to vector<8x128xf32>
    %67 = arith.addf %66, %58 : vector<8x128xf32>
    %68 = arith.negf %67 : vector<8x128xf32>
    %69 = math.exp %68 : vector<8x128xf32>
    %cst_34 = arith.constant 1.000000e+00 : f32
    %70 = vector.broadcast %cst_34 : f32 to vector<8x128xf32>
    %71 = arith.addf %70, %69 : vector<8x128xf32>
    %72 = arith.divf %70, %71 : vector<8x128xf32>
    %73 = vector.extract_strided_slice %72 {offsets = [0, 0], sizes = [8, 32], strides = [1, 1]} : vector<8x128xf32> to vector<8x32xf32>
    %74 = vector.extract_strided_slice %72 {offsets = [0, 32], sizes = [8, 32], strides = [1, 1]} : vector<8x128xf32> to vector<8x32xf32>
    %75 = vector.extract_strided_slice %72 {offsets = [0, 64], sizes = [8, 32], strides = [1, 1]} : vector<8x128xf32> to vector<8x32xf32>
    %cst_35 = arith.constant 2.000000e+00 : f32
    %76 = vector.broadcast %cst_35 : f32 to vector<8x32xf32>
    %77 = arith.mulf %76, %75 : vector<8x32xf32>
    %cst_36 = arith.constant 1.000000e+00 : f32
    %78 = vector.broadcast %cst_36 : f32 to vector<8x32xf32>
    %79 = arith.subf %77, %78 : vector<8x32xf32>
    %80 = vector.extract_strided_slice %72 {offsets = [0, 96], sizes = [8, 32], strides = [1, 1]} : vector<8x128xf32> to vector<8x32xf32>
    %81 = arith.mulf %74, %53 : vector<8x32xf32>
    %82 = arith.mulf %73, %79 : vector<8x32xf32>
    %83 = arith.addf %81, %82 : vector<8x32xf32>
    %84 = math.tanh %83 : vector<8x32xf32>
    %85 = arith.mulf %80, %84 : vector<8x32xf32>
    %86 = arith.truncf %85 : vector<8x32xf32> to vector<8x32xbf16>
    %cst_37 = arith.constant dense<0.000000e+00> : vector<8x256xf32>
    %87 = tpu.matmul %86, %34, %cst_37 {dimension_numbers = #tpu.dot_dimension_numbers<[1], [0], [0], [1], [0, 0, 1, 1], [], []>} : vector<8x32xbf16>, vector<32x256xbf16>, vector<8x256xf32> -> vector<8x256xf32>
    %88 = vector.extract_strided_slice %87 {offsets = [0, 0], sizes = [8, 128], strides = [1, 1]} : vector<8x256xf32> to vector<8x128xf32>
    %c1 = arith.constant 1 : index
    %89 = memref.load %arg4[%c1] : memref<8xf32, #tpu.memory_space<smem>>
    %90 = vector.extract_strided_slice %87 {offsets = [0, 128], sizes = [8, 128], strides = [1, 1]} : vector<8x256xf32> to vector<8x128xf32>
    %91 = vector.broadcast %89 : f32 to vector<8x128xf32>
    %92 = arith.mulf %91, %90 : vector<8x128xf32>
    %c0_38 = arith.constant 0 : index
    %c128 = arith.constant 128 : index
    %93 = vector.load %arg9[%c0_38, %c128] : memref<1x1024xf32, #tpu.memory_space<vmem>>, vector<1x128xf32>
    %94 = vector.broadcast %93 : vector<1x128xf32> to vector<8x128xf32>
    %95 = arith.addf %92, %94 : vector<8x128xf32>
    %96 = vector.extract_strided_slice %33 {offsets = [0, 256], sizes = [8, 128], strides = [1, 1]} : vector<8x1024xf32> to vector<8x128xf32>
    %97 = arith.addf %96, %88 : vector<8x128xf32>
    %98 = arith.negf %97 : vector<8x128xf32>
    %99 = math.exp %98 : vector<8x128xf32>
    %cst_39 = arith.constant 1.000000e+00 : f32
    %100 = vector.broadcast %cst_39 : f32 to vector<8x128xf32>
    %101 = arith.addf %100, %99 : vector<8x128xf32>
    %102 = arith.divf %100, %101 : vector<8x128xf32>
    %103 = vector.extract_strided_slice %102 {offsets = [0, 0], sizes = [8, 32], strides = [1, 1]} : vector<8x128xf32> to vector<8x32xf32>
    %104 = vector.extract_strided_slice %102 {offsets = [0, 32], sizes = [8, 32], strides = [1, 1]} : vector<8x128xf32> to vector<8x32xf32>
    %105 = vector.extract_strided_slice %102 {offsets = [0, 64], sizes = [8, 32], strides = [1, 1]} : vector<8x128xf32> to vector<8x32xf32>
    %cst_40 = arith.constant 2.000000e+00 : f32
    %106 = vector.broadcast %cst_40 : f32 to vector<8x32xf32>
    %107 = arith.mulf %106, %105 : vector<8x32xf32>
    %cst_41 = arith.constant 1.000000e+00 : f32
    %108 = vector.broadcast %cst_41 : f32 to vector<8x32xf32>
    %109 = arith.subf %107, %108 : vector<8x32xf32>
    %110 = vector.extract_strided_slice %102 {offsets = [0, 96], sizes = [8, 32], strides = [1, 1]} : vector<8x128xf32> to vector<8x32xf32>
    %111 = arith.mulf %104, %83 : vector<8x32xf32>
    %112 = arith.mulf %103, %109 : vector<8x32xf32>
    %113 = arith.addf %111, %112 : vector<8x32xf32>
    %114 = math.tanh %113 : vector<8x32xf32>
    %115 = arith.mulf %110, %114 : vector<8x32xf32>
    %116 = arith.truncf %115 : vector<8x32xf32> to vector<8x32xbf16>
    %cst_42 = arith.constant dense<0.000000e+00> : vector<8x256xf32>
    %117 = tpu.matmul %116, %34, %cst_42 {dimension_numbers = #tpu.dot_dimension_numbers<[1], [0], [0], [1], [0, 0, 1, 1], [], []>} : vector<8x32xbf16>, vector<32x256xbf16>, vector<8x256xf32> -> vector<8x256xf32>
    %118 = vector.extract_strided_slice %117 {offsets = [0, 0], sizes = [8, 128], strides = [1, 1]} : vector<8x256xf32> to vector<8x128xf32>
    %c2 = arith.constant 2 : index
    %119 = memref.load %arg4[%c2] : memref<8xf32, #tpu.memory_space<smem>>
    %120 = vector.extract_strided_slice %117 {offsets = [0, 128], sizes = [8, 128], strides = [1, 1]} : vector<8x256xf32> to vector<8x128xf32>
    %121 = vector.broadcast %119 : f32 to vector<8x128xf32>
    %122 = arith.mulf %121, %120 : vector<8x128xf32>
    %c0_43 = arith.constant 0 : index
    %c256 = arith.constant 256 : index
    %123 = vector.load %arg9[%c0_43, %c256] : memref<1x1024xf32, #tpu.memory_space<vmem>>, vector<1x128xf32>
    %124 = vector.broadcast %123 : vector<1x128xf32> to vector<8x128xf32>
    %125 = arith.addf %122, %124 : vector<8x128xf32>
    %126 = vector.extract_strided_slice %33 {offsets = [0, 384], sizes = [8, 128], strides = [1, 1]} : vector<8x1024xf32> to vector<8x128xf32>
    %127 = arith.addf %126, %118 : vector<8x128xf32>
    %128 = arith.negf %127 : vector<8x128xf32>
    %129 = math.exp %128 : vector<8x128xf32>
    %cst_44 = arith.constant 1.000000e+00 : f32
    %130 = vector.broadcast %cst_44 : f32 to vector<8x128xf32>
    %131 = arith.addf %130, %129 : vector<8x128xf32>
    %132 = arith.divf %130, %131 : vector<8x128xf32>
    %133 = vector.extract_strided_slice %132 {offsets = [0, 0], sizes = [8, 32], strides = [1, 1]} : vector<8x128xf32> to vector<8x32xf32>
    %134 = vector.extract_strided_slice %132 {offsets = [0, 32], sizes = [8, 32], strides = [1, 1]} : vector<8x128xf32> to vector<8x32xf32>
    %135 = vector.extract_strided_slice %132 {offsets = [0, 64], sizes = [8, 32], strides = [1, 1]} : vector<8x128xf32> to vector<8x32xf32>
    %cst_45 = arith.constant 2.000000e+00 : f32
    %136 = vector.broadcast %cst_45 : f32 to vector<8x32xf32>
    %137 = arith.mulf %136, %135 : vector<8x32xf32>
    %cst_46 = arith.constant 1.000000e+00 : f32
    %138 = vector.broadcast %cst_46 : f32 to vector<8x32xf32>
    %139 = arith.subf %137, %138 : vector<8x32xf32>
    %140 = vector.extract_strided_slice %132 {offsets = [0, 96], sizes = [8, 32], strides = [1, 1]} : vector<8x128xf32> to vector<8x32xf32>
    %141 = arith.mulf %134, %113 : vector<8x32xf32>
    %142 = arith.mulf %133, %139 : vector<8x32xf32>
    %143 = arith.addf %141, %142 : vector<8x32xf32>
    %144 = math.tanh %143 : vector<8x32xf32>
    %145 = arith.mulf %140, %144 : vector<8x32xf32>
    %146 = arith.truncf %145 : vector<8x32xf32> to vector<8x32xbf16>
    %cst_47 = arith.constant dense<0.000000e+00> : vector<8x256xf32>
    %147 = tpu.matmul %146, %34, %cst_47 {dimension_numbers = #tpu.dot_dimension_numbers<[1], [0], [0], [1], [0, 0, 1, 1], [], []>} : vector<8x32xbf16>, vector<32x256xbf16>, vector<8x256xf32> -> vector<8x256xf32>
    %148 = vector.extract_strided_slice %147 {offsets = [0, 0], sizes = [8, 128], strides = [1, 1]} : vector<8x256xf32> to vector<8x128xf32>
    %c3 = arith.constant 3 : index
    %149 = memref.load %arg4[%c3] : memref<8xf32, #tpu.memory_space<smem>>
    %150 = vector.extract_strided_slice %147 {offsets = [0, 128], sizes = [8, 128], strides = [1, 1]} : vector<8x256xf32> to vector<8x128xf32>
    %151 = vector.broadcast %149 : f32 to vector<8x128xf32>
    %152 = arith.mulf %151, %150 : vector<8x128xf32>
    %c0_48 = arith.constant 0 : index
    %c384 = arith.constant 384 : index
    %153 = vector.load %arg9[%c0_48, %c384] : memref<1x1024xf32, #tpu.memory_space<vmem>>, vector<1x128xf32>
    %154 = vector.broadcast %153 : vector<1x128xf32> to vector<8x128xf32>
    %155 = arith.addf %152, %154 : vector<8x128xf32>
    %156 = vector.extract_strided_slice %33 {offsets = [0, 512], sizes = [8, 128], strides = [1, 1]} : vector<8x1024xf32> to vector<8x128xf32>
    %157 = arith.addf %156, %148 : vector<8x128xf32>
    %158 = arith.negf %157 : vector<8x128xf32>
    %159 = math.exp %158 : vector<8x128xf32>
    %cst_49 = arith.constant 1.000000e+00 : f32
    %160 = vector.broadcast %cst_49 : f32 to vector<8x128xf32>
    %161 = arith.addf %160, %159 : vector<8x128xf32>
    %162 = arith.divf %160, %161 : vector<8x128xf32>
    %163 = vector.extract_strided_slice %162 {offsets = [0, 0], sizes = [8, 32], strides = [1, 1]} : vector<8x128xf32> to vector<8x32xf32>
    %164 = vector.extract_strided_slice %162 {offsets = [0, 32], sizes = [8, 32], strides = [1, 1]} : vector<8x128xf32> to vector<8x32xf32>
    %165 = vector.extract_strided_slice %162 {offsets = [0, 64], sizes = [8, 32], strides = [1, 1]} : vector<8x128xf32> to vector<8x32xf32>
    %cst_50 = arith.constant 2.000000e+00 : f32
    %166 = vector.broadcast %cst_50 : f32 to vector<8x32xf32>
    %167 = arith.mulf %166, %165 : vector<8x32xf32>
    %cst_51 = arith.constant 1.000000e+00 : f32
    %168 = vector.broadcast %cst_51 : f32 to vector<8x32xf32>
    %169 = arith.subf %167, %168 : vector<8x32xf32>
    %170 = vector.extract_strided_slice %162 {offsets = [0, 96], sizes = [8, 32], strides = [1, 1]} : vector<8x128xf32> to vector<8x32xf32>
    %171 = arith.mulf %164, %143 : vector<8x32xf32>
    %172 = arith.mulf %163, %169 : vector<8x32xf32>
    %173 = arith.addf %171, %172 : vector<8x32xf32>
    %174 = math.tanh %173 : vector<8x32xf32>
    %175 = arith.mulf %170, %174 : vector<8x32xf32>
    %176 = arith.truncf %175 : vector<8x32xf32> to vector<8x32xbf16>
    %cst_52 = arith.constant dense<0.000000e+00> : vector<8x256xf32>
    %177 = tpu.matmul %176, %34, %cst_52 {dimension_numbers = #tpu.dot_dimension_numbers<[1], [0], [0], [1], [0, 0, 1, 1], [], []>} : vector<8x32xbf16>, vector<32x256xbf16>, vector<8x256xf32> -> vector<8x256xf32>
    %178 = vector.extract_strided_slice %177 {offsets = [0, 0], sizes = [8, 128], strides = [1, 1]} : vector<8x256xf32> to vector<8x128xf32>
    %c4 = arith.constant 4 : index
    %179 = memref.load %arg4[%c4] : memref<8xf32, #tpu.memory_space<smem>>
    %180 = vector.extract_strided_slice %177 {offsets = [0, 128], sizes = [8, 128], strides = [1, 1]} : vector<8x256xf32> to vector<8x128xf32>
    %181 = vector.broadcast %179 : f32 to vector<8x128xf32>
    %182 = arith.mulf %181, %180 : vector<8x128xf32>
    %c0_53 = arith.constant 0 : index
    %c512 = arith.constant 512 : index
    %183 = vector.load %arg9[%c0_53, %c512] : memref<1x1024xf32, #tpu.memory_space<vmem>>, vector<1x128xf32>
    %184 = vector.broadcast %183 : vector<1x128xf32> to vector<8x128xf32>
    %185 = arith.addf %182, %184 : vector<8x128xf32>
    %186 = vector.extract_strided_slice %33 {offsets = [0, 640], sizes = [8, 128], strides = [1, 1]} : vector<8x1024xf32> to vector<8x128xf32>
    %187 = arith.addf %186, %178 : vector<8x128xf32>
    %188 = arith.negf %187 : vector<8x128xf32>
    %189 = math.exp %188 : vector<8x128xf32>
    %cst_54 = arith.constant 1.000000e+00 : f32
    %190 = vector.broadcast %cst_54 : f32 to vector<8x128xf32>
    %191 = arith.addf %190, %189 : vector<8x128xf32>
    %192 = arith.divf %190, %191 : vector<8x128xf32>
    %193 = vector.extract_strided_slice %192 {offsets = [0, 0], sizes = [8, 32], strides = [1, 1]} : vector<8x128xf32> to vector<8x32xf32>
    %194 = vector.extract_strided_slice %192 {offsets = [0, 32], sizes = [8, 32], strides = [1, 1]} : vector<8x128xf32> to vector<8x32xf32>
    %195 = vector.extract_strided_slice %192 {offsets = [0, 64], sizes = [8, 32], strides = [1, 1]} : vector<8x128xf32> to vector<8x32xf32>
    %cst_55 = arith.constant 2.000000e+00 : f32
    %196 = vector.broadcast %cst_55 : f32 to vector<8x32xf32>
    %197 = arith.mulf %196, %195 : vector<8x32xf32>
    %cst_56 = arith.constant 1.000000e+00 : f32
    %198 = vector.broadcast %cst_56 : f32 to vector<8x32xf32>
    %199 = arith.subf %197, %198 : vector<8x32xf32>
    %200 = vector.extract_strided_slice %192 {offsets = [0, 96], sizes = [8, 32], strides = [1, 1]} : vector<8x128xf32> to vector<8x32xf32>
    %201 = arith.mulf %194, %173 : vector<8x32xf32>
    %202 = arith.mulf %193, %199 : vector<8x32xf32>
    %203 = arith.addf %201, %202 : vector<8x32xf32>
    %204 = math.tanh %203 : vector<8x32xf32>
    %205 = arith.mulf %200, %204 : vector<8x32xf32>
    %206 = arith.truncf %205 : vector<8x32xf32> to vector<8x32xbf16>
    %cst_57 = arith.constant dense<0.000000e+00> : vector<8x256xf32>
    %207 = tpu.matmul %206, %34, %cst_57 {dimension_numbers = #tpu.dot_dimension_numbers<[1], [0], [0], [1], [0, 0, 1, 1], [], []>} : vector<8x32xbf16>, vector<32x256xbf16>, vector<8x256xf32> -> vector<8x256xf32>
    %208 = vector.extract_strided_slice %207 {offsets = [0, 0], sizes = [8, 128], strides = [1, 1]} : vector<8x256xf32> to vector<8x128xf32>
    %c5 = arith.constant 5 : index
    %209 = memref.load %arg4[%c5] : memref<8xf32, #tpu.memory_space<smem>>
    %210 = vector.extract_strided_slice %207 {offsets = [0, 128], sizes = [8, 128], strides = [1, 1]} : vector<8x256xf32> to vector<8x128xf32>
    %211 = vector.broadcast %209 : f32 to vector<8x128xf32>
    %212 = arith.mulf %211, %210 : vector<8x128xf32>
    %c0_58 = arith.constant 0 : index
    %c640 = arith.constant 640 : index
    %213 = vector.load %arg9[%c0_58, %c640] : memref<1x1024xf32, #tpu.memory_space<vmem>>, vector<1x128xf32>
    %214 = vector.broadcast %213 : vector<1x128xf32> to vector<8x128xf32>
    %215 = arith.addf %212, %214 : vector<8x128xf32>
    %216 = vector.extract_strided_slice %33 {offsets = [0, 768], sizes = [8, 128], strides = [1, 1]} : vector<8x1024xf32> to vector<8x128xf32>
    %217 = arith.addf %216, %208 : vector<8x128xf32>
    %218 = arith.negf %217 : vector<8x128xf32>
    %219 = math.exp %218 : vector<8x128xf32>
    %cst_59 = arith.constant 1.000000e+00 : f32
    %220 = vector.broadcast %cst_59 : f32 to vector<8x128xf32>
    %221 = arith.addf %220, %219 : vector<8x128xf32>
    %222 = arith.divf %220, %221 : vector<8x128xf32>
    %223 = vector.extract_strided_slice %222 {offsets = [0, 0], sizes = [8, 32], strides = [1, 1]} : vector<8x128xf32> to vector<8x32xf32>
    %224 = vector.extract_strided_slice %222 {offsets = [0, 32], sizes = [8, 32], strides = [1, 1]} : vector<8x128xf32> to vector<8x32xf32>
    %225 = vector.extract_strided_slice %222 {offsets = [0, 64], sizes = [8, 32], strides = [1, 1]} : vector<8x128xf32> to vector<8x32xf32>
    %cst_60 = arith.constant 2.000000e+00 : f32
    %226 = vector.broadcast %cst_60 : f32 to vector<8x32xf32>
    %227 = arith.mulf %226, %225 : vector<8x32xf32>
    %cst_61 = arith.constant 1.000000e+00 : f32
    %228 = vector.broadcast %cst_61 : f32 to vector<8x32xf32>
    %229 = arith.subf %227, %228 : vector<8x32xf32>
    %230 = vector.extract_strided_slice %222 {offsets = [0, 96], sizes = [8, 32], strides = [1, 1]} : vector<8x128xf32> to vector<8x32xf32>
    %231 = arith.mulf %224, %203 : vector<8x32xf32>
    %232 = arith.mulf %223, %229 : vector<8x32xf32>
    %233 = arith.addf %231, %232 : vector<8x32xf32>
    %234 = math.tanh %233 : vector<8x32xf32>
    %235 = arith.mulf %230, %234 : vector<8x32xf32>
    %236 = arith.truncf %235 : vector<8x32xf32> to vector<8x32xbf16>
    %cst_62 = arith.constant dense<0.000000e+00> : vector<8x256xf32>
    %237 = tpu.matmul %236, %34, %cst_62 {dimension_numbers = #tpu.dot_dimension_numbers<[1], [0], [0], [1], [0, 0, 1, 1], [], []>} : vector<8x32xbf16>, vector<32x256xbf16>, vector<8x256xf32> -> vector<8x256xf32>
    %238 = vector.extract_strided_slice %237 {offsets = [0, 0], sizes = [8, 128], strides = [1, 1]} : vector<8x256xf32> to vector<8x128xf32>
    %c6 = arith.constant 6 : index
    %239 = memref.load %arg4[%c6] : memref<8xf32, #tpu.memory_space<smem>>
    %240 = vector.extract_strided_slice %237 {offsets = [0, 128], sizes = [8, 128], strides = [1, 1]} : vector<8x256xf32> to vector<8x128xf32>
    %241 = vector.broadcast %239 : f32 to vector<8x128xf32>
    %242 = arith.mulf %241, %240 : vector<8x128xf32>
    %c0_63 = arith.constant 0 : index
    %c768 = arith.constant 768 : index
    %243 = vector.load %arg9[%c0_63, %c768] : memref<1x1024xf32, #tpu.memory_space<vmem>>, vector<1x128xf32>
    %244 = vector.broadcast %243 : vector<1x128xf32> to vector<8x128xf32>
    %245 = arith.addf %242, %244 : vector<8x128xf32>
    %246 = vector.extract_strided_slice %33 {offsets = [0, 896], sizes = [8, 128], strides = [1, 1]} : vector<8x1024xf32> to vector<8x128xf32>
    %247 = arith.addf %246, %238 : vector<8x128xf32>
    %248 = arith.negf %247 : vector<8x128xf32>
    %249 = math.exp %248 : vector<8x128xf32>
    %cst_64 = arith.constant 1.000000e+00 : f32
    %250 = vector.broadcast %cst_64 : f32 to vector<8x128xf32>
    %251 = arith.addf %250, %249 : vector<8x128xf32>
    %252 = arith.divf %250, %251 : vector<8x128xf32>
    %253 = vector.extract_strided_slice %252 {offsets = [0, 0], sizes = [8, 32], strides = [1, 1]} : vector<8x128xf32> to vector<8x32xf32>
    %254 = vector.extract_strided_slice %252 {offsets = [0, 32], sizes = [8, 32], strides = [1, 1]} : vector<8x128xf32> to vector<8x32xf32>
    %255 = vector.extract_strided_slice %252 {offsets = [0, 64], sizes = [8, 32], strides = [1, 1]} : vector<8x128xf32> to vector<8x32xf32>
    %cst_65 = arith.constant 2.000000e+00 : f32
    %256 = vector.broadcast %cst_65 : f32 to vector<8x32xf32>
    %257 = arith.mulf %256, %255 : vector<8x32xf32>
    %cst_66 = arith.constant 1.000000e+00 : f32
    %258 = vector.broadcast %cst_66 : f32 to vector<8x32xf32>
    %259 = arith.subf %257, %258 : vector<8x32xf32>
    %260 = vector.extract_strided_slice %252 {offsets = [0, 96], sizes = [8, 32], strides = [1, 1]} : vector<8x128xf32> to vector<8x32xf32>
    %261 = arith.mulf %254, %233 : vector<8x32xf32>
    %262 = arith.mulf %253, %259 : vector<8x32xf32>
    %263 = arith.addf %261, %262 : vector<8x32xf32>
    %264 = math.tanh %263 : vector<8x32xf32>
    %265 = arith.mulf %260, %264 : vector<8x32xf32>
    %266 = arith.truncf %265 : vector<8x32xf32> to vector<8x32xbf16>
    %cst_67 = arith.constant dense<0.000000e+00> : vector<8x256xf32>
    %267 = tpu.matmul %266, %34, %cst_67 {dimension_numbers = #tpu.dot_dimension_numbers<[1], [0], [0], [1], [0, 0, 1, 1], [], []>} : vector<8x32xbf16>, vector<32x256xbf16>, vector<8x256xf32> -> vector<8x256xf32>
    %c7 = arith.constant 7 : index
    %268 = memref.load %arg4[%c7] : memref<8xf32, #tpu.memory_space<smem>>
    %269 = vector.extract_strided_slice %267 {offsets = [0, 128], sizes = [8, 128], strides = [1, 1]} : vector<8x256xf32> to vector<8x128xf32>
    %270 = vector.broadcast %268 : f32 to vector<8x128xf32>
    %271 = arith.mulf %270, %269 : vector<8x128xf32>
    %c0_68 = arith.constant 0 : index
    %c896 = arith.constant 896 : index
    %272 = vector.load %arg9[%c0_68, %c896] : memref<1x1024xf32, #tpu.memory_space<vmem>>, vector<1x128xf32>
    %273 = vector.broadcast %272 : vector<1x128xf32> to vector<8x128xf32>
    %274 = arith.addf %271, %273 : vector<8x128xf32>
    %275 = arith.truncf %265 : vector<8x32xf32> to vector<8x32xbf16>
    %cst_69 = arith.constant dense<0.000000e+00> : vector<8x128xf32>
    %276 = tpu.matmul %275, %35, %cst_69 {dimension_numbers = #tpu.dot_dimension_numbers<[1], [0], [0], [1], [0, 0, 1, 1], [], []>} : vector<8x32xbf16>, vector<32x128xbf16>, vector<8x128xf32> -> vector<8x128xf32>
    %277 = arith.addf %276, %65 : vector<8x128xf32>
    %278 = arith.negf %277 : vector<8x128xf32>
    %279 = math.exp %278 : vector<8x128xf32>
    %cst_70 = arith.constant 1.000000e+00 : f32
    %280 = vector.broadcast %cst_70 : f32 to vector<8x128xf32>
    %281 = arith.addf %280, %279 : vector<8x128xf32>
    %282 = arith.divf %280, %281 : vector<8x128xf32>
    %283 = vector.extract_strided_slice %282 {offsets = [0, 0], sizes = [8, 32], strides = [1, 1]} : vector<8x128xf32> to vector<8x32xf32>
    %284 = vector.extract_strided_slice %282 {offsets = [0, 32], sizes = [8, 32], strides = [1, 1]} : vector<8x128xf32> to vector<8x32xf32>
    %285 = vector.extract_strided_slice %282 {offsets = [0, 64], sizes = [8, 32], strides = [1, 1]} : vector<8x128xf32> to vector<8x32xf32>
    %cst_71 = arith.constant 2.000000e+00 : f32
    %286 = vector.broadcast %cst_71 : f32 to vector<8x32xf32>
    %287 = arith.mulf %286, %285 : vector<8x32xf32>
    %cst_72 = arith.constant 1.000000e+00 : f32
    %288 = vector.broadcast %cst_72 : f32 to vector<8x32xf32>
    %289 = arith.subf %287, %288 : vector<8x32xf32>
    %290 = vector.extract_strided_slice %282 {offsets = [0, 96], sizes = [8, 32], strides = [1, 1]} : vector<8x128xf32> to vector<8x32xf32>
    %291 = arith.mulf %284, %263 : vector<8x32xf32>
    %292 = arith.mulf %283, %289 : vector<8x32xf32>
    %293 = arith.addf %291, %292 : vector<8x32xf32>
    %294 = math.tanh %293 : vector<8x32xf32>
    %295 = arith.mulf %290, %294 : vector<8x32xf32>
    %296 = arith.truncf %295 : vector<8x32xf32> to vector<8x32xbf16>
    %cst_73 = arith.constant dense<0.000000e+00> : vector<8x128xf32>
    %297 = tpu.matmul %296, %35, %cst_73 {dimension_numbers = #tpu.dot_dimension_numbers<[1], [0], [0], [1], [0, 0, 1, 1], [], []>} : vector<8x32xbf16>, vector<32x128xbf16>, vector<8x128xf32> -> vector<8x128xf32>
    %298 = arith.addf %297, %95 : vector<8x128xf32>
    %299 = arith.negf %298 : vector<8x128xf32>
    %300 = math.exp %299 : vector<8x128xf32>
    %cst_74 = arith.constant 1.000000e+00 : f32
    %301 = vector.broadcast %cst_74 : f32 to vector<8x128xf32>
    %302 = arith.addf %301, %300 : vector<8x128xf32>
    %303 = arith.divf %301, %302 : vector<8x128xf32>
    %304 = vector.extract_strided_slice %303 {offsets = [0, 0], sizes = [8, 32], strides = [1, 1]} : vector<8x128xf32> to vector<8x32xf32>
    %305 = vector.extract_strided_slice %303 {offsets = [0, 32], sizes = [8, 32], strides = [1, 1]} : vector<8x128xf32> to vector<8x32xf32>
    %306 = vector.extract_strided_slice %303 {offsets = [0, 64], sizes = [8, 32], strides = [1, 1]} : vector<8x128xf32> to vector<8x32xf32>
    %cst_75 = arith.constant 2.000000e+00 : f32
    %307 = vector.broadcast %cst_75 : f32 to vector<8x32xf32>
    %308 = arith.mulf %307, %306 : vector<8x32xf32>
    %cst_76 = arith.constant 1.000000e+00 : f32
    %309 = vector.broadcast %cst_76 : f32 to vector<8x32xf32>
    %310 = arith.subf %308, %309 : vector<8x32xf32>
    %311 = vector.extract_strided_slice %303 {offsets = [0, 96], sizes = [8, 32], strides = [1, 1]} : vector<8x128xf32> to vector<8x32xf32>
    %312 = arith.mulf %305, %293 : vector<8x32xf32>
    %313 = arith.mulf %304, %310 : vector<8x32xf32>
    %314 = arith.addf %312, %313 : vector<8x32xf32>
    %315 = math.tanh %314 : vector<8x32xf32>
    %316 = arith.mulf %311, %315 : vector<8x32xf32>
    %317 = arith.truncf %316 : vector<8x32xf32> to vector<8x32xbf16>
    %cst_77 = arith.constant dense<0.000000e+00> : vector<8x128xf32>
    %318 = tpu.matmul %317, %35, %cst_77 {dimension_numbers = #tpu.dot_dimension_numbers<[1], [0], [0], [1], [0, 0, 1, 1], [], []>} : vector<8x32xbf16>, vector<32x128xbf16>, vector<8x128xf32> -> vector<8x128xf32>
    %319 = arith.addf %318, %125 : vector<8x128xf32>
    %320 = arith.negf %319 : vector<8x128xf32>
    %321 = math.exp %320 : vector<8x128xf32>
    %cst_78 = arith.constant 1.000000e+00 : f32
    %322 = vector.broadcast %cst_78 : f32 to vector<8x128xf32>
    %323 = arith.addf %322, %321 : vector<8x128xf32>
    %324 = arith.divf %322, %323 : vector<8x128xf32>
    %325 = vector.extract_strided_slice %324 {offsets = [0, 0], sizes = [8, 32], strides = [1, 1]} : vector<8x128xf32> to vector<8x32xf32>
    %326 = vector.extract_strided_slice %324 {offsets = [0, 32], sizes = [8, 32], strides = [1, 1]} : vector<8x128xf32> to vector<8x32xf32>
    %327 = vector.extract_strided_slice %324 {offsets = [0, 64], sizes = [8, 32], strides = [1, 1]} : vector<8x128xf32> to vector<8x32xf32>
    %cst_79 = arith.constant 2.000000e+00 : f32
    %328 = vector.broadcast %cst_79 : f32 to vector<8x32xf32>
    %329 = arith.mulf %328, %327 : vector<8x32xf32>
    %cst_80 = arith.constant 1.000000e+00 : f32
    %330 = vector.broadcast %cst_80 : f32 to vector<8x32xf32>
    %331 = arith.subf %329, %330 : vector<8x32xf32>
    %332 = vector.extract_strided_slice %324 {offsets = [0, 96], sizes = [8, 32], strides = [1, 1]} : vector<8x128xf32> to vector<8x32xf32>
    %333 = arith.mulf %326, %314 : vector<8x32xf32>
    %334 = arith.mulf %325, %331 : vector<8x32xf32>
    %335 = arith.addf %333, %334 : vector<8x32xf32>
    %336 = math.tanh %335 : vector<8x32xf32>
    %337 = arith.mulf %332, %336 : vector<8x32xf32>
    %338 = arith.truncf %337 : vector<8x32xf32> to vector<8x32xbf16>
    %cst_81 = arith.constant dense<0.000000e+00> : vector<8x128xf32>
    %339 = tpu.matmul %338, %35, %cst_81 {dimension_numbers = #tpu.dot_dimension_numbers<[1], [0], [0], [1], [0, 0, 1, 1], [], []>} : vector<8x32xbf16>, vector<32x128xbf16>, vector<8x128xf32> -> vector<8x128xf32>
    %340 = arith.addf %339, %155 : vector<8x128xf32>
    %341 = arith.negf %340 : vector<8x128xf32>
    %342 = math.exp %341 : vector<8x128xf32>
    %cst_82 = arith.constant 1.000000e+00 : f32
    %343 = vector.broadcast %cst_82 : f32 to vector<8x128xf32>
    %344 = arith.addf %343, %342 : vector<8x128xf32>
    %345 = arith.divf %343, %344 : vector<8x128xf32>
    %346 = vector.extract_strided_slice %345 {offsets = [0, 0], sizes = [8, 32], strides = [1, 1]} : vector<8x128xf32> to vector<8x32xf32>
    %347 = vector.extract_strided_slice %345 {offsets = [0, 32], sizes = [8, 32], strides = [1, 1]} : vector<8x128xf32> to vector<8x32xf32>
    %348 = vector.extract_strided_slice %345 {offsets = [0, 64], sizes = [8, 32], strides = [1, 1]} : vector<8x128xf32> to vector<8x32xf32>
    %cst_83 = arith.constant 2.000000e+00 : f32
    %349 = vector.broadcast %cst_83 : f32 to vector<8x32xf32>
    %350 = arith.mulf %349, %348 : vector<8x32xf32>
    %cst_84 = arith.constant 1.000000e+00 : f32
    %351 = vector.broadcast %cst_84 : f32 to vector<8x32xf32>
    %352 = arith.subf %350, %351 : vector<8x32xf32>
    %353 = vector.extract_strided_slice %345 {offsets = [0, 96], sizes = [8, 32], strides = [1, 1]} : vector<8x128xf32> to vector<8x32xf32>
    %354 = arith.mulf %347, %335 : vector<8x32xf32>
    %355 = arith.mulf %346, %352 : vector<8x32xf32>
    %356 = arith.addf %354, %355 : vector<8x32xf32>
    %357 = math.tanh %356 : vector<8x32xf32>
    %358 = arith.mulf %353, %357 : vector<8x32xf32>
    %359 = arith.truncf %358 : vector<8x32xf32> to vector<8x32xbf16>
    %cst_85 = arith.constant dense<0.000000e+00> : vector<8x128xf32>
    %360 = tpu.matmul %359, %35, %cst_85 {dimension_numbers = #tpu.dot_dimension_numbers<[1], [0], [0], [1], [0, 0, 1, 1], [], []>} : vector<8x32xbf16>, vector<32x128xbf16>, vector<8x128xf32> -> vector<8x128xf32>
    %361 = arith.addf %360, %185 : vector<8x128xf32>
    %362 = arith.negf %361 : vector<8x128xf32>
    %363 = math.exp %362 : vector<8x128xf32>
    %cst_86 = arith.constant 1.000000e+00 : f32
    %364 = vector.broadcast %cst_86 : f32 to vector<8x128xf32>
    %365 = arith.addf %364, %363 : vector<8x128xf32>
    %366 = arith.divf %364, %365 : vector<8x128xf32>
    %367 = vector.extract_strided_slice %366 {offsets = [0, 0], sizes = [8, 32], strides = [1, 1]} : vector<8x128xf32> to vector<8x32xf32>
    %368 = vector.extract_strided_slice %366 {offsets = [0, 32], sizes = [8, 32], strides = [1, 1]} : vector<8x128xf32> to vector<8x32xf32>
    %369 = vector.extract_strided_slice %366 {offsets = [0, 64], sizes = [8, 32], strides = [1, 1]} : vector<8x128xf32> to vector<8x32xf32>
    %cst_87 = arith.constant 2.000000e+00 : f32
    %370 = vector.broadcast %cst_87 : f32 to vector<8x32xf32>
    %371 = arith.mulf %370, %369 : vector<8x32xf32>
    %cst_88 = arith.constant 1.000000e+00 : f32
    %372 = vector.broadcast %cst_88 : f32 to vector<8x32xf32>
    %373 = arith.subf %371, %372 : vector<8x32xf32>
    %374 = vector.extract_strided_slice %366 {offsets = [0, 96], sizes = [8, 32], strides = [1, 1]} : vector<8x128xf32> to vector<8x32xf32>
    %375 = arith.mulf %368, %356 : vector<8x32xf32>
    %376 = arith.mulf %367, %373 : vector<8x32xf32>
    %377 = arith.addf %375, %376 : vector<8x32xf32>
    %378 = math.tanh %377 : vector<8x32xf32>
    %379 = arith.mulf %374, %378 : vector<8x32xf32>
    %380 = arith.truncf %379 : vector<8x32xf32> to vector<8x32xbf16>
    %cst_89 = arith.constant dense<0.000000e+00> : vector<8x128xf32>
    %381 = tpu.matmul %380, %35, %cst_89 {dimension_numbers = #tpu.dot_dimension_numbers<[1], [0], [0], [1], [0, 0, 1, 1], [], []>} : vector<8x32xbf16>, vector<32x128xbf16>, vector<8x128xf32> -> vector<8x128xf32>
    %382 = arith.addf %381, %215 : vector<8x128xf32>
    %383 = arith.negf %382 : vector<8x128xf32>
    %384 = math.exp %383 : vector<8x128xf32>
    %cst_90 = arith.constant 1.000000e+00 : f32
    %385 = vector.broadcast %cst_90 : f32 to vector<8x128xf32>
    %386 = arith.addf %385, %384 : vector<8x128xf32>
    %387 = arith.divf %385, %386 : vector<8x128xf32>
    %388 = vector.extract_strided_slice %387 {offsets = [0, 0], sizes = [8, 32], strides = [1, 1]} : vector<8x128xf32> to vector<8x32xf32>
    %389 = vector.extract_strided_slice %387 {offsets = [0, 32], sizes = [8, 32], strides = [1, 1]} : vector<8x128xf32> to vector<8x32xf32>
    %390 = vector.extract_strided_slice %387 {offsets = [0, 64], sizes = [8, 32], strides = [1, 1]} : vector<8x128xf32> to vector<8x32xf32>
    %cst_91 = arith.constant 2.000000e+00 : f32
    %391 = vector.broadcast %cst_91 : f32 to vector<8x32xf32>
    %392 = arith.mulf %391, %390 : vector<8x32xf32>
    %cst_92 = arith.constant 1.000000e+00 : f32
    %393 = vector.broadcast %cst_92 : f32 to vector<8x32xf32>
    %394 = arith.subf %392, %393 : vector<8x32xf32>
    %395 = vector.extract_strided_slice %387 {offsets = [0, 96], sizes = [8, 32], strides = [1, 1]} : vector<8x128xf32> to vector<8x32xf32>
    %396 = arith.mulf %389, %377 : vector<8x32xf32>
    %397 = arith.mulf %388, %394 : vector<8x32xf32>
    %398 = arith.addf %396, %397 : vector<8x32xf32>
    %399 = math.tanh %398 : vector<8x32xf32>
    %400 = arith.mulf %395, %399 : vector<8x32xf32>
    %401 = arith.truncf %400 : vector<8x32xf32> to vector<8x32xbf16>
    %cst_93 = arith.constant dense<0.000000e+00> : vector<8x128xf32>
    %402 = tpu.matmul %401, %35, %cst_93 {dimension_numbers = #tpu.dot_dimension_numbers<[1], [0], [0], [1], [0, 0, 1, 1], [], []>} : vector<8x32xbf16>, vector<32x128xbf16>, vector<8x128xf32> -> vector<8x128xf32>
    %403 = arith.addf %402, %245 : vector<8x128xf32>
    %404 = arith.negf %403 : vector<8x128xf32>
    %405 = math.exp %404 : vector<8x128xf32>
    %cst_94 = arith.constant 1.000000e+00 : f32
    %406 = vector.broadcast %cst_94 : f32 to vector<8x128xf32>
    %407 = arith.addf %406, %405 : vector<8x128xf32>
    %408 = arith.divf %406, %407 : vector<8x128xf32>
    %409 = vector.extract_strided_slice %408 {offsets = [0, 0], sizes = [8, 32], strides = [1, 1]} : vector<8x128xf32> to vector<8x32xf32>
    %410 = vector.extract_strided_slice %408 {offsets = [0, 32], sizes = [8, 32], strides = [1, 1]} : vector<8x128xf32> to vector<8x32xf32>
    %411 = vector.extract_strided_slice %408 {offsets = [0, 64], sizes = [8, 32], strides = [1, 1]} : vector<8x128xf32> to vector<8x32xf32>
    %cst_95 = arith.constant 2.000000e+00 : f32
    %412 = vector.broadcast %cst_95 : f32 to vector<8x32xf32>
    %413 = arith.mulf %412, %411 : vector<8x32xf32>
    %cst_96 = arith.constant 1.000000e+00 : f32
    %414 = vector.broadcast %cst_96 : f32 to vector<8x32xf32>
    %415 = arith.subf %413, %414 : vector<8x32xf32>
    %416 = vector.extract_strided_slice %408 {offsets = [0, 96], sizes = [8, 32], strides = [1, 1]} : vector<8x128xf32> to vector<8x32xf32>
    %417 = arith.mulf %410, %398 : vector<8x32xf32>
    %418 = arith.mulf %409, %415 : vector<8x32xf32>
    %419 = arith.addf %417, %418 : vector<8x32xf32>
    %420 = math.tanh %419 : vector<8x32xf32>
    %421 = arith.mulf %416, %420 : vector<8x32xf32>
    %422 = arith.truncf %421 : vector<8x32xf32> to vector<8x32xbf16>
    %cst_97 = arith.constant dense<0.000000e+00> : vector<8x128xf32>
    %423 = tpu.matmul %422, %35, %cst_97 {dimension_numbers = #tpu.dot_dimension_numbers<[1], [0], [0], [1], [0, 0, 1, 1], [], []>} : vector<8x32xbf16>, vector<32x128xbf16>, vector<8x128xf32> -> vector<8x128xf32>
    %424 = arith.addf %423, %274 : vector<8x128xf32>
    %425 = arith.negf %424 : vector<8x128xf32>
    %426 = math.exp %425 : vector<8x128xf32>
    %cst_98 = arith.constant 1.000000e+00 : f32
    %427 = vector.broadcast %cst_98 : f32 to vector<8x128xf32>
    %428 = arith.addf %427, %426 : vector<8x128xf32>
    %429 = arith.divf %427, %428 : vector<8x128xf32>
    %430 = vector.extract_strided_slice %429 {offsets = [0, 0], sizes = [8, 32], strides = [1, 1]} : vector<8x128xf32> to vector<8x32xf32>
    %431 = vector.extract_strided_slice %429 {offsets = [0, 32], sizes = [8, 32], strides = [1, 1]} : vector<8x128xf32> to vector<8x32xf32>
    %432 = vector.extract_strided_slice %429 {offsets = [0, 64], sizes = [8, 32], strides = [1, 1]} : vector<8x128xf32> to vector<8x32xf32>
    %cst_99 = arith.constant 2.000000e+00 : f32
    %433 = vector.broadcast %cst_99 : f32 to vector<8x32xf32>
    %434 = arith.mulf %433, %432 : vector<8x32xf32>
    %cst_100 = arith.constant 1.000000e+00 : f32
    %435 = vector.broadcast %cst_100 : f32 to vector<8x32xf32>
    %436 = arith.subf %434, %435 : vector<8x32xf32>
    %437 = vector.extract_strided_slice %429 {offsets = [0, 96], sizes = [8, 32], strides = [1, 1]} : vector<8x128xf32> to vector<8x32xf32>
    %438 = arith.mulf %431, %419 : vector<8x32xf32>
    %439 = arith.mulf %430, %436 : vector<8x32xf32>
    %440 = arith.addf %438, %439 : vector<8x32xf32>
    %441 = math.tanh %440 : vector<8x32xf32>
    %442 = arith.mulf %437, %441 : vector<8x32xf32>
    %c7_101 = arith.constant 7 : index
    %443 = memref.load %arg4[%c7_101] : memref<8xf32, #tpu.memory_space<smem>>
    %444 = vector.broadcast %443 : f32 to vector<8x32xf32>
    %445 = arith.mulf %444, %442 : vector<8x32xf32>
    %c7_102 = arith.constant 7 : index
    %446 = memref.load %arg5[%c7_102] : memref<8xf32, #tpu.memory_space<smem>>
    %447 = vector.broadcast %446 : f32 to vector<8x32xf32>
    %448 = arith.addf %445, %447 : vector<8x32xf32>
    %449 = arith.truncf %448 : vector<8x32xf32> to vector<8x32xbf16>
    %c0_103 = arith.constant 0 : index
    %c0_104 = arith.constant 0 : index
    %450 = vector.load %arg12[%c0_103, %c0_104] : memref<32x64xbf16, #tpu.memory_space<vmem>>, vector<32x64xbf16>
    %cst_105 = arith.constant dense<0.000000e+00> : vector<8x64xf32>
    %451 = tpu.matmul %449, %450, %cst_105 {dimension_numbers = #tpu.dot_dimension_numbers<[1], [0], [0], [1], [0, 0, 1, 1], [], []>} : vector<8x32xbf16>, vector<32x64xbf16>, vector<8x64xf32> -> vector<8x64xf32>
    %452 = arith.addf %451, %26 : vector<8x64xf32>
    %453 = arith.mulf %10, %452 : vector<8x64xf32>
    %cst_106 = arith.constant 0.000000e+00 : f32
    %454 = vector.broadcast %cst_106 : f32 to vector<8x64xf32>
    %455 = arith.maximumf %453, %454 : vector<8x64xf32>
    %456 = vector.broadcast %cst_106 : f32 to vector<8x64xf32>
    %457 = arith.subf %453, %456 : vector<8x64xf32>
    %458 = arith.cmpf one, %457, %457 : vector<8x64xf32>
    %459 = vector.broadcast %cst_106 : f32 to vector<8x64xf32>
    %460 = arith.addf %453, %459 : vector<8x64xf32>
    %461 = math.absf %457 : vector<8x64xf32>
    %cst_107 = arith.constant 0.000000e+00 : f32
    %462 = vector.broadcast %cst_107 : f32 to vector<8x64xf32>
    %463 = arith.subf %462, %461 : vector<8x64xf32>
    %464 = math.exp %463 : vector<8x64xf32>
    %465 = math.log1p %464 : vector<8x64xf32>
    %466 = arith.addf %455, %465 : vector<8x64xf32>
    %467 = arith.select %458, %460, %466 : vector<8x64xi1>, vector<8x64xf32>
    %468 = arith.truncf %467 : vector<8x64xf32> to vector<8x64xbf16>
    %c0_108 = arith.constant 0 : index
    %c0_109 = arith.constant 0 : index
    %469 = vector.load %arg16[%c0_108, %c0_109] : memref<64x64xbf16, #tpu.memory_space<vmem>>, vector<64x64xbf16>
    %cst_110 = arith.constant dense<0.000000e+00> : vector<8x64xf32>
    %470 = tpu.matmul %468, %469, %cst_110 {dimension_numbers = #tpu.dot_dimension_numbers<[1], [0], [0], [1], [0, 0, 1, 1], [], []>} : vector<8x64xbf16>, vector<64x64xbf16>, vector<8x64xf32> -> vector<8x64xf32>
    %c0_111 = arith.constant 0 : index
    %c0_112 = arith.constant 0 : index
    %471 = vector.load %arg17[%c0_111, %c0_112] : memref<1x64xf32, #tpu.memory_space<vmem>>, vector<1x64xf32>
    %472 = vector.broadcast %471 : vector<1x64xf32> to vector<8x64xf32>
    %473 = arith.addf %470, %472 : vector<8x64xf32>
    %474 = arith.mulf %11, %473 : vector<8x64xf32>
    %cst_113 = arith.constant 0.000000e+00 : f32
    %475 = vector.broadcast %cst_113 : f32 to vector<8x64xf32>
    %476 = arith.maximumf %474, %475 : vector<8x64xf32>
    %477 = vector.broadcast %cst_113 : f32 to vector<8x64xf32>
    %478 = arith.subf %474, %477 : vector<8x64xf32>
    %479 = arith.cmpf one, %478, %478 : vector<8x64xf32>
    %480 = vector.broadcast %cst_113 : f32 to vector<8x64xf32>
    %481 = arith.addf %474, %480 : vector<8x64xf32>
    %482 = math.absf %478 : vector<8x64xf32>
    %cst_114 = arith.constant 0.000000e+00 : f32
    %483 = vector.broadcast %cst_114 : f32 to vector<8x64xf32>
    %484 = arith.subf %483, %482 : vector<8x64xf32>
    %485 = math.exp %484 : vector<8x64xf32>
    %486 = math.log1p %485 : vector<8x64xf32>
    %487 = arith.addf %476, %486 : vector<8x64xf32>
    %488 = arith.select %479, %481, %487 : vector<8x64xi1>, vector<8x64xf32>
    %489 = arith.truncf %488 : vector<8x64xf32> to vector<8x64xbf16>
    %c0_115 = arith.constant 0 : index
    %c0_116 = arith.constant 0 : index
    %490 = vector.load %arg18[%c0_115, %c0_116] : memref<64x64xbf16, #tpu.memory_space<vmem>>, vector<64x64xbf16>
    %cst_117 = arith.constant dense<0.000000e+00> : vector<8x64xf32>
    %491 = tpu.matmul %489, %490, %cst_117 {dimension_numbers = #tpu.dot_dimension_numbers<[1], [0], [0], [1], [0, 0, 1, 1], [], []>} : vector<8x64xbf16>, vector<64x64xbf16>, vector<8x64xf32> -> vector<8x64xf32>
    %c0_118 = arith.constant 0 : index
    %c0_119 = arith.constant 0 : index
    %492 = vector.load %arg19[%c0_118, %c0_119] : memref<1x64xf32, #tpu.memory_space<vmem>>, vector<1x64xf32>
    %493 = vector.broadcast %492 : vector<1x64xf32> to vector<8x64xf32>
    %494 = arith.addf %491, %493 : vector<8x64xf32>
    %495 = arith.mulf %12, %494 : vector<8x64xf32>
    %cst_120 = arith.constant 0.000000e+00 : f32
    %496 = vector.broadcast %cst_120 : f32 to vector<8x64xf32>
    %497 = arith.maximumf %495, %496 : vector<8x64xf32>
    %498 = vector.broadcast %cst_120 : f32 to vector<8x64xf32>
    %499 = arith.subf %495, %498 : vector<8x64xf32>
    %500 = arith.cmpf one, %499, %499 : vector<8x64xf32>
    %501 = vector.broadcast %cst_120 : f32 to vector<8x64xf32>
    %502 = arith.addf %495, %501 : vector<8x64xf32>
    %503 = math.absf %499 : vector<8x64xf32>
    %cst_121 = arith.constant 0.000000e+00 : f32
    %504 = vector.broadcast %cst_121 : f32 to vector<8x64xf32>
    %505 = arith.subf %504, %503 : vector<8x64xf32>
    %506 = math.exp %505 : vector<8x64xf32>
    %507 = math.log1p %506 : vector<8x64xf32>
    %508 = arith.addf %497, %507 : vector<8x64xf32>
    %509 = arith.select %500, %502, %508 : vector<8x64xi1>, vector<8x64xf32>
    %c0_122 = arith.constant 0 : index
    %c0_123 = arith.constant 0 : index
    %510 = vector.load %arg20[%c0_122, %c0_123] : memref<1x64xf32, #tpu.memory_space<vmem>>, vector<1x64xf32>
    %511 = vector.broadcast %510 : vector<1x64xf32> to vector<8x64xf32>
    %512 = arith.mulf %509, %511 : vector<8x64xf32>
    %cst_124 = arith.constant dense<0.000000e+00> : vector<8xf32>
    %513 = vector.multi_reduction <add>, %512, %cst_124 [1] : vector<8x64xf32> to vector<8xf32>
    %514 = vector.shape_cast %513 : vector<8xf32> to vector<8x1xf32>
    %c0_125 = arith.constant 0 : index
    %c0_126 = arith.constant 0 : index
    %515 = vector.load %arg21[%c0_125, %c0_126] : memref<1x1xf32, #tpu.memory_space<vmem>>, vector<1x1xf32>
    %516 = vector.broadcast %515 : vector<1x1xf32> to vector<8x1xf32>
    %517 = arith.addf %514, %516 : vector<8x1xf32>
    %c0_127 = arith.constant 0 : index
    %c0_128 = arith.constant 0 : index
    %518 = vector.load %arg22[%c0_127, %c0_128] : memref<8x1xf32, #tpu.memory_space<vmem>>, vector<8x1xf32>
    tpu.vector_store %arg22[%c0_127, %c0_128], %517 {strides = array<i32>} : memref<8x1xf32, #tpu.memory_space<vmem>>, vector<8x1xf32>,
    return
  }
}

</mosaic_0001>

<llo_original>
// kernel: forward.1
$region0: #{forward.1}
  #allocation0 [shape = 'u32[]', space=smem, size = 0x4, offset = 0x4, fixed_abs, tag = 'smem constant byte address 0x4 - core index']
  #allocation1 [shape = 'u32[144,128]{1,0:T(1,128)}', space=vmem, size = 0x12000, scoped, tag = 'internal scratch']
  #allocation2 [shape = 'f32[1,1]{1,0:T(1,128)S(1)}', space=vmem, size = 0x200, scoped, tag = 'scoped memory for forward.1']
  %s0 = inlined_call_operand.vmem [shape: f32[8,32], index: 0, kind: input, shape index: {}]
  %s1 = inlined_call_operand.vmem [shape: f32[8,1], index: 1, kind: input, shape index: {}]
  %s2 = inlined_call_operand.vmem [shape: f32[8,1], index: 2, kind: input, shape index: {}]
  %s3 = inlined_call_operand.vmem [shape: s32[8,1], index: 3, kind: input, shape index: {}]
  %s4 = inlined_call_operand.hbm [shape: f32[8], index: 4, kind: input, shape index: {}]
  %s5 = inlined_call_operand.hbm [shape: f32[8], index: 5, kind: input, shape index: {}]
  %s6 = inlined_call_operand.hbm [shape: bf16[32,1024], index: 6, kind: input, shape index: {}]
  %s7 = inlined_call_operand.hbm [shape: f32[1,1024], index: 7, kind: input, shape index: {}]
  %s8 = inlined_call_operand.vmem [shape: bf16[32,256], index: 8, kind: input, shape index: {}]
  %s9 = inlined_call_operand.hbm [shape: f32[1,1024], index: 9, kind: input, shape index: {}]
  %s10 = inlined_call_operand.hbm [shape: bf16[32,128], index: 10, kind: input, shape index: {}]
  %s11 = inlined_call_operand.vmem [shape: bf16[16,192], index: 11, kind: input, shape index: {}]
  %s12 = inlined_call_operand.hbm [shape: bf16[32,64], index: 12, kind: input, shape index: {}]
  %s13 = inlined_call_operand.hbm [shape: f32[1,64], index: 13, kind: input, shape index: {}]
  %s14 = inlined_call_operand.hbm [shape: f32[1,64], index: 14, kind: input, shape index: {}]
  %s15 = inlined_call_operand.vmem [shape: f32[1,64], index: 15, kind: input, shape index: {}]
  %s16 = inlined_call_operand.vmem [shape: bf16[64,64], index: 16, kind: input, shape index: {}]
  %s17 = inlined_call_operand.vmem [shape: f32[1,64], index: 17, kind: input, shape index: {}]
  %s18 = inlined_call_operand.vmem [shape: bf16[64,64], index: 18, kind: input, shape index: {}]
  %s19 = inlined_call_operand.vmem [shape: f32[1,64], index: 19, kind: input, shape index: {}]
  %s20 = inlined_call_operand.hbm [shape: f32[1,64], index: 20, kind: input, shape index: {}]
  %s21 = inlined_call_operand.<no memory space> [shape: f32[1,1], index: 21, kind: input, shape index: {}]
  %s22 = inlined_call_operand.vmem [shape: f32[8,1], index: 22, kind: output, shape index: {}]
  %s23 = sld [smem:[#allocation0]]
  $region138: #{forward.1} parent=0
    _
  %s25 = ssub.s32 1, %s23
  %s26 = scalar_select 0, %s25, %s23
  %v27 = vstv %s21
  %28 = vst [vmem:[#allocation2] sm:$0x1] %v27
  $region1: #{forward.1} parent=0
    #allocation3 [shape = 'u8[512]{0}', space=smem, size = 0x200, scoped, tag = 'input window, operand 4, single buffered']
    #allocation4 [shape = 's32[1]{0}', space=sflag, size = 0x4, scoped, tag = 'scoped memory for forward.1']
    #allocation5 [shape = 's32[1]{0}', space=sflag, size = 0x4, scoped, tag = 'scoped memory for forward.1']
    #allocation6 [shape = 'u8[512]{0}', space=smem, size = 0x200, scoped, tag = 'input window, operand 5, single buffered']
    #allocation7 [shape = 's32[1]{0}', space=sflag, size = 0x4, scoped, tag = 'scoped memory for forward.1']
    #allocation8 [shape = 'u8[65536]{0}', space=vmem, size = 0x10000, scoped, tag = 'input window, operand 6, single buffered']
    #allocation9 [shape = 'u8[4096]{0}', space=vmem, size = 0x1000, scoped, tag = 'input window, operand 7, single buffered']
    #allocation10 [shape = 's32[1]{0}', space=sflag, size = 0x4, scoped, tag = 'scoped memory for forward.1']
    #allocation11 [shape = 'u8[4096]{0}', space=vmem, size = 0x1000, scoped, tag = 'input window, operand 9, single buffered']
    #allocation12 [shape = 'u8[8192]{0}', space=vmem, size = 0x2000, scoped, tag = 'input window, operand 10, single buffered']
    #allocation13 [shape = 's32[1]{0}', space=sflag, size = 0x4, scoped, tag = 'scoped memory for forward.1']
    #allocation14 [shape = 'u8[8192]{0}', space=vmem, size = 0x2000, scoped, tag = 'input window, operand 12, single buffered']
    #allocation15 [shape = 'u8[512]{0}', space=vmem, size = 0x400, scoped, tag = 'input window, operand 13, single buffered']
    #allocation16 [shape = 's32[1]{0}', space=sflag, size = 0x4, scoped, tag = 'scoped memory for forward.1']
    #allocation17 [shape = 'u8[512]{0}', space=vmem, size = 0x400, scoped, tag = 'input window, operand 14, single buffered']
    #allocation18 [shape = 'u8[512]{0}', space=vmem, size = 0x400, scoped, tag = 'input window, operand 20, single buffered']
    #allocation19 [shape = 's32[1]{0}', space=sflag, size = 0x4, scoped, tag = 'scoped memory for forward.1']
    %29 = vsyncpa [#allocation5], 0
    %30 = vsyncpa [#allocation7], 0
    %31 = vsyncpa [#allocation4], 0
    %32 = vsyncpa [#allocation10], 0
    %33 = vsyncpa [#allocation13], 0
    %34 = vsyncpa [#allocation16], 0
    %35 = vsyncpa [#allocation19], 0
    // Predicated region
    $region2: #{forward.1} parent=1 // pred_check
      _
    $region3: #{forward.1} parent=1 // pred_check_branch
      %37 = sbr.rel (0) target = $region5
    $region4: #{forward.1} parent=1 // pred_region
      _
    $region5: #{forward.1} parent=1 // pred_fallthru
      _
    // Predicated region
    $region6: #{forward.1} parent=1 // pred_check
      _
    $region7: #{forward.1} parent=1 // pred_check_branch
      %39 = sbr.rel (0) target = $region9
    $region8: #{forward.1} parent=1 // pred_region
      _
    $region9: #{forward.1} parent=1 // pred_fallthru
      _
    // Predicated region
    $region10: #{forward.1} parent=1 // pred_check
      _
    $region11: #{forward.1} parent=1 // pred_check_branch
      %41 = sbr.rel (0) target = $region13
    $region12: #{forward.1} parent=1 // pred_region
      _
    $region13: #{forward.1} parent=1 // pred_fallthru
      _
    // Predicated region
    $region14: #{forward.1} parent=1 // pred_check
      _
    $region15: #{forward.1} parent=1 // pred_check_branch
      %43 = sbr.rel (0) target = $region17
    $region16: #{forward.1} parent=1 // pred_region
      _
    $region17: #{forward.1} parent=1 // pred_fallthru
      _
    // Predicated region
    $region18: #{forward.1} parent=1 // pred_check
      _
    $region19: #{forward.1} parent=1 // pred_check_branch
      %45 = sbr.rel (0) target = $region21
    $region20: #{forward.1} parent=1 // pred_region
      %s47 = ssub.s32 16, 16
      %48 = vsyncadd [#allocation5], %s47
      %51 = dma.hbm_to_smem %s4, 16, [#allocation3], [#allocation5]
    $region21: #{forward.1} parent=1 // pred_fallthru
      _
    // Predicated region
    $region22: #{forward.1} parent=1 // pred_check
      _
    $region23: #{forward.1} parent=1 // pred_check_branch
      %53 = sbr.rel (0) target = $region25
    $region24: #{forward.1} parent=1 // pred_region
      %s55 = ssub.s32 16, 16
      %56 = vsyncadd [#allocation7], %s55
      %59 = dma.hbm_to_smem %s5, 16, [#allocation6], [#allocation7]
    $region25: #{forward.1} parent=1 // pred_fallthru
      _
    // Predicated region
    $region26: #{forward.1} parent=1 // pred_check
      _
    $region27: #{forward.1} parent=1 // pred_check_branch
      %61 = sbr.rel (0) target = $region29
    $region28: #{forward.1} parent=1 // pred_region
      %s63 = ssub.s32 2048, 2048
      %64 = vsyncadd [#allocation4], %s63
      %s65 = sshll.u32 [#allocation8], 4
      %s66 = int_to_ptr.vmem [resolvable:$true] %s65
      %71 = dma.hbm_to_vmem [thread:$0]  %s6, 2048, %s66, [#allocation4], 512, 512, 32
    $region29: #{forward.1} parent=1 // pred_fallthru
      _
    // Predicated region
    $region30: #{forward.1} parent=1 // pred_check
      _
    $region31: #{forward.1} parent=1 // pred_check_branch
      %73 = sbr.rel (0) target = $region33
    $region32: #{forward.1} parent=1 // pred_region
      %s75 = ssub.s32 128, 128
      %76 = vsyncadd [#allocation10], %s75
      %s78 = sshll.u32 [#allocation9], 4
      %s79 = int_to_ptr.vmem [resolvable:$true] %s78
      %81 = dma.hbm_to_vmem [thread:$0]  %s7, 128, %s79, [#allocation10]
    $region33: #{forward.1} parent=1 // pred_fallthru
      _
    // Predicated region
    $region34: #{forward.1} parent=1 // pred_check
      _
    $region35: #{forward.1} parent=1 // pred_check_branch
      %83 = sbr.rel (0) target = $region37
    $region36: #{forward.1} parent=1 // pred_region
      _
    $region37: #{forward.1} parent=1 // pred_fallthru
      _
    // Predicated region
    $region38: #{forward.1} parent=1 // pred_check
      _
    $region39: #{forward.1} parent=1 // pred_check_branch
      %85 = sbr.rel (0) target = $region41
    $region40: #{forward.1} parent=1 // pred_region
      %s87 = ssub.s32 128, 128
      %88 = vsyncadd [#allocation10], %s87
      %s90 = sshll.u32 [#allocation11], 4
      %s91 = int_to_ptr.vmem [resolvable:$true] %s90
      %93 = dma.hbm_to_vmem [thread:$0]  %s9, 128, %s91, [#allocation10]
    $region41: #{forward.1} parent=1 // pred_fallthru
      _
    // Predicated region
    $region42: #{forward.1} parent=1 // pred_check
      _
    $region43: #{forward.1} parent=1 // pred_check_branch
      %95 = sbr.rel (0) target = $region45
    $region44: #{forward.1} parent=1 // pred_region
      %s97 = ssub.s32 256, 256
      %98 = vsyncadd [#allocation13], %s97
      %s99 = sshll.u32 [#allocation12], 4
      %s100 = int_to_ptr.vmem [resolvable:$true] %s99
      %105 = dma.hbm_to_vmem [thread:$0]  %s10, 256, %s100, [#allocation13], 64, 64, 4
    $region45: #{forward.1} parent=1 // pred_fallthru
      _
    // Predicated region
    $region46: #{forward.1} parent=1 // pred_check
      _
    $region47: #{forward.1} parent=1 // pred_check_branch
      %107 = sbr.rel (0) target = $region49
    $region48: #{forward.1} parent=1 // pred_region
      _
    $region49: #{forward.1} parent=1 // pred_fallthru
      _
    // Predicated region
    $region50: #{forward.1} parent=1 // pred_check
      _
    $region51: #{forward.1} parent=1 // pred_check_branch
      %109 = sbr.rel (0) target = $region53
    $region52: #{forward.1} parent=1 // pred_region
      %s111 = ssub.s32 256, 256
      %112 = vsyncadd [#allocation13], %s111
      %s113 = sshll.u32 [#allocation14], 4
      %s114 = int_to_ptr.vmem [resolvable:$true] %s113
      %119 = dma.hbm_to_vmem [thread:$0]  %s12, 256, %s114, [#allocation13], 64, 64, 4
    $region53: #{forward.1} parent=1 // pred_fallthru
      _
    // Predicated region
    $region54: #{forward.1} parent=1 // pred_check
      _
    $region55: #{forward.1} parent=1 // pred_check_branch
      %121 = sbr.rel (0) target = $region57
    $region56: #{forward.1} parent=1 // pred_region
      %s123 = ssub.s32 16, 16
      %124 = vsyncadd [#allocation16], %s123
      %s126 = sshll.u32 [#allocation15], 4
      %s127 = int_to_ptr.vmem [resolvable:$true] %s126
      %129 = dma.hbm_to_vmem [thread:$0]  %s13, 16, %s127, [#allocation16]
    $region57: #{forward.1} parent=1 // pred_fallthru
      _
    // Predicated region
    $region58: #{forward.1} parent=1 // pred_check
      _
    $region59: #{forward.1} parent=1 // pred_check_branch
      %131 = sbr.rel (0) target = $region61
    $region60: #{forward.1} parent=1 // pred_region
      %s133 = ssub.s32 16, 16
      %134 = vsyncadd [#allocation16], %s133
      %s136 = sshll.u32 [#allocation17], 4
      %s137 = int_to_ptr.vmem [resolvable:$true] %s136
      %139 = dma.hbm_to_vmem [thread:$0]  %s14, 16, %s137, [#allocation16]
    $region61: #{forward.1} parent=1 // pred_fallthru
      _
    // Predicated region
    $region62: #{forward.1} parent=1 // pred_check
      _
    $region63: #{forward.1} parent=1 // pred_check_branch
      %141 = sbr.rel (0) target = $region65
    $region64: #{forward.1} parent=1 // pred_region
      _
    $region65: #{forward.1} parent=1 // pred_fallthru
      _
    // Predicated region
    $region66: #{forward.1} parent=1 // pred_check
      _
    $region67: #{forward.1} parent=1 // pred_check_branch
      %143 = sbr.rel (0) target = $region69
    $region68: #{forward.1} parent=1 // pred_region
      _
    $region69: #{forward.1} parent=1 // pred_fallthru
      _
    // Predicated region
    $region70: #{forward.1} parent=1 // pred_check
      _
    $region71: #{forward.1} parent=1 // pred_check_branch
      %145 = sbr.rel (0) target = $region73
    $region72: #{forward.1} parent=1 // pred_region
      _
    $region73: #{forward.1} parent=1 // pred_fallthru
      _
    // Predicated region
    $region74: #{forward.1} parent=1 // pred_check
      _
    $region75: #{forward.1} parent=1 // pred_check_branch
      %147 = sbr.rel (0) target = $region77
    $region76: #{forward.1} parent=1 // pred_region
      _
    $region77: #{forward.1} parent=1 // pred_fallthru
      _
    // Predicated region
    $region78: #{forward.1} parent=1 // pred_check
      _
    $region79: #{forward.1} parent=1 // pred_check_branch
      %149 = sbr.rel (0) target = $region81
    $region80: #{forward.1} parent=1 // pred_region
      _
    $region81: #{forward.1} parent=1 // pred_fallthru
      _
    // Predicated region
    $region82: #{forward.1} parent=1 // pred_check
      _
    $region83: #{forward.1} parent=1 // pred_check_branch
      %151 = sbr.rel (0) target = $region85
    $region84: #{forward.1} parent=1 // pred_region
      %s153 = ssub.s32 16, 16
      %154 = vsyncadd [#allocation19], %s153
      %s156 = sshll.u32 [#allocation18], 4
      %s157 = int_to_ptr.vmem [resolvable:$true] %s156
      %159 = dma.hbm_to_vmem [thread:$0]  %s20, 16, %s157, [#allocation19]
    $region85: #{forward.1} parent=1 // pred_fallthru
      _
    // Predicated region
    $region86: #{forward.1} parent=1 // pred_check
      _
    $region87: #{forward.1} parent=1 // pred_check_branch
      %161 = sbr.rel (0) target = $region89
    $region88: #{forward.1} parent=1 // pred_region
      _
    $region89: #{forward.1} parent=1 // pred_fallthru
      _
    // Predicated region
    $region90: #{forward.1} parent=1 // pred_check
      _
    $region91: #{forward.1} parent=1 // pred_check_branch
      %163 = sbr.rel (0) target = $region93
    $region92: #{forward.1} parent=1 // pred_region
      %164 = dma.done [#allocation5], 16
    $region93: #{forward.1} parent=1 // pred_fallthru
      _
    // Predicated region
    $region94: #{forward.1} parent=1 // pred_check
      _
    $region95: #{forward.1} parent=1 // pred_check_branch
      %166 = sbr.rel (0) target = $region97
    $region96: #{forward.1} parent=1 // pred_region
      %167 = dma.done [#allocation7], 16
    $region97: #{forward.1} parent=1 // pred_fallthru
      _
    // Predicated region
    $region98: #{forward.1} parent=1 // pred_check
      _
    $region99: #{forward.1} parent=1 // pred_check_branch
      %169 = sbr.rel (0) target = $region101
    $region100: #{forward.1} parent=1 // pred_region
      %170 = dma.done [#allocation4], 2048
    $region101: #{forward.1} parent=1 // pred_fallthru
      _
    // Predicated region
    $region102: #{forward.1} parent=1 // pred_check
      _
    $region103: #{forward.1} parent=1 // pred_check_branch
      %172 = sbr.rel (0) target = $region105
    $region104: #{forward.1} parent=1 // pred_region
      %173 = dma.done [#allocation10], 128
    $region105: #{forward.1} parent=1 // pred_fallthru
      _
    // Predicated region
    $region106: #{forward.1} parent=1 // pred_check
      _
    $region107: #{forward.1} parent=1 // pred_check_branch
      %175 = sbr.rel (0) target = $region109
    $region108: #{forward.1} parent=1 // pred_region
      %176 = dma.done [#allocation10], 128
    $region109: #{forward.1} parent=1 // pred_fallthru
      _
    // Predicated region
    $region110: #{forward.1} parent=1 // pred_check
      _
    $region111: #{forward.1} parent=1 // pred_check_branch
      %178 = sbr.rel (0) target = $region113
    $region112: #{forward.1} parent=1 // pred_region
      %179 = dma.done [#allocation13], 256
    $region113: #{forward.1} parent=1 // pred_fallthru
      _
    // Predicated region
    $region114: #{forward.1} parent=1 // pred_check
      _
    $region115: #{forward.1} parent=1 // pred_check_branch
      %181 = sbr.rel (0) target = $region117
    $region116: #{forward.1} parent=1 // pred_region
      %182 = dma.done [#allocation13], 256
    $region117: #{forward.1} parent=1 // pred_fallthru
      _
    // Predicated region
    $region118: #{forward.1} parent=1 // pred_check
      _
    $region119: #{forward.1} parent=1 // pred_check_branch
      %184 = sbr.rel (0) target = $region121
    $region120: #{forward.1} parent=1 // pred_region
      %185 = dma.done [#allocation16], 16
    $region121: #{forward.1} parent=1 // pred_fallthru
      _
    // Predicated region
    $region122: #{forward.1} parent=1 // pred_check
      _
    $region123: #{forward.1} parent=1 // pred_check_branch
      %187 = sbr.rel (0) target = $region125
    $region124: #{forward.1} parent=1 // pred_region
      %188 = dma.done [#allocation16], 16
    $region125: #{forward.1} parent=1 // pred_fallthru
      _
    // Predicated region
    $region126: #{forward.1} parent=1 // pred_check
      _
    $region127: #{forward.1} parent=1 // pred_check_branch
      %190 = sbr.rel (0) target = $region129
    $region128: #{forward.1} parent=1 // pred_region
      %191 = dma.done [#allocation19], 16
    $region129: #{forward.1} parent=1 // pred_fallthru
      _
    %192 = sfence
    %v194 = vlaneseq
    %v195 = vand.u32 %v194, 127
    %v196 = vld [vmem:[%s3] sm:$0xff]
    %197 = vset.pattern.permute.xlu0 0
    %198 = vperm.xlu0 %197, %v196
    %v199 = vpop.permute.xlu0 %198
    %vm200 = vcmp.eq.s32.totalorder %v195, %v199
    %v201 = vsel %vm200, 1.0, 0.0
    %v202 = vpack.c.bf16 %v201, %v201
    %v203 = vld [vmem:[%s11] sm:$0xff]
    %v204 = vld [vmem:[%s11 + $0x8] sm:$0xff]
    %v207 = vunpack.c.l.b16 %v203
    %v208 = vunpack.c.h.b16 %v203
    %v209 = vunpack.c.l.b16 %v204
    %v210 = vunpack.c.h.b16 %v204
    %v211 = vpack.c.b16 %v209, %v207
    %v212 = vpack.c.b16 %v210, %v208
    %vm215 = vcmask 130048
    %v217 = vsel %vm215, %v202, 0
    %219 = vmatprep.subr.bf16.mxu0 0
    %220 = vmatpush1.bf16.msra.mxu0 0
    %221 = vmatprep.subr.bf16.mxu0 0
    %222 = vmatpush1.bf16.msra.mxu0 0
    %223 = vmatprep.subr.bf16.mxu0 0
    %224 = vmatpush1.bf16.msra.mxu0 0
    %225 = vmatprep.subr.bf16.mxu0 0
    %226 = vmatpush1.bf16.msra.mxu0 0
    %227 = vmatprep.subr.bf16.mxu0 0
    %228 = vmatpush1.bf16.msra.mxu0 0
    %229 = vmatprep.subr.bf16.mxu0 0
    %230 = vmatpush1.bf16.msra.mxu0 0
    %231 = vmatprep.subr.bf16.mxu0 0
    %232 = vmatpush1.bf16.msra.mxu0 0
    %233 = vmatprep.subr.bf16.mxu0 %v212
    %234 = vmatpush1.bf16.msra.mxu0 %v211
    %235 = vmatprep.subr.bf16.mxu0 0
    %236 = vmatpush2.bf16.msra.mxu0 0
    %237 = vmatprep.subr.bf16.mxu0 0
    %238 = vmatpush2.bf16.msra.mxu0 0
    %239 = vmatprep.subr.bf16.mxu0 0
    %240 = vmatpush2.bf16.msra.mxu0 0
    %241 = vmatprep.subr.bf16.mxu0 0
    %242 = vmatpush2.bf16.msra.mxu0 0
    %243 = vmatprep.subr.bf16.mxu0 0
    %244 = vmatpush2.bf16.msra.mxu0 0
    %245 = vmatprep.subr.bf16.mxu0 0
    %246 = vmatpush2.bf16.msra.mxu0 0
    %247 = vmatprep.subr.bf16.mxu0 0
    %248 = vmatpush2.bf16.msra.mxu0 0
    %249 = vmatprep.subr.bf16.mxu0 0
    %250 = vmatpush2.bf16.msra.mxu0 0
    %251 = vmatprep.mubr.bf16.mxu0 0
    %252 = vmatmul.mubr.bf16.gmra.mxu0 %v217
    %v253 = vpop.f32.mrf.mxu0
    %v254 = vadd.f32 0.0, %v253
    %v255 = vpop.f32.mrf.mxu0
    %v256 = vadd.f32 0.0, %v255
    %v257 = vpop.f32.mrf.mxu0
    %v258 = vpop.f32.mrf.mxu0
    %259 = vdwg.mxu0
    %v260 = vld [vmem:[%s1] sm:$0xff]
    %v261 = vld [vmem:[#allocation15] sm:$0x1]
    %263 = vset.pattern.permute.xlu0 0
    %264 = vperm.xlu0 %263, %v260
    %v265 = vpop.permute.xlu0 %264
    %v268 = vlaneseq
    %v269 = vshrl.u32 %v268, 7
    %v270 = vsub.s32 0, %v269
    %v271 = vrot.slane %v261, %v270
    %v273 = vmul.f32 %v265, %v271
    %v274 = vld [vmem:[%s2] sm:$0xff]
    %v275 = vld [vmem:[#allocation17] sm:$0x1]
    %277 = vset.pattern.permute.xlu0 0
    %278 = vperm.xlu0 %277, %v274
    %v279 = vpop.permute.xlu0 %278
    %v282 = vlaneseq
    %v283 = vshrl.u32 %v282, 7
    %v284 = vsub.s32 0, %v283
    %v285 = vrot.slane %v275, %v284
    %v287 = vmul.f32 %v279, %v285
    %v288 = vadd.f32 %v273, %v287
    %v289 = vld [vmem:[%s15] sm:$0x1]
    %v291 = vlaneseq
    %v292 = vshrl.u32 %v291, 7
    %v293 = vsub.s32 0, %v292
    %v294 = vrot.slane %v289, %v293
    %v296 = vadd.f32 %v288, %v294
    %v297 = vld [vmem:[%s0] sm:$0xff]
    %v298 = vpack.c.bf16 %v297, %v297
    %v299 = vld [vmem:[#allocation8] sm:$0xff]
    %v300 = vld [vmem:[#allocation8 + $0x8] sm:$0xff]
    %v301 = vld [vmem:[#allocation8 + $0x10] sm:$0xff]
    %v302 = vld [vmem:[#allocation8 + $0x18] sm:$0xff]
    %v303 = vld [vmem:[#allocation8 + $0x20] sm:$0xff]
    %v304 = vld [vmem:[#allocation8 + $0x28] sm:$0xff]
    %v305 = vld [vmem:[#allocation8 + $0x30] sm:$0xff]
    %v306 = vld [vmem:[#allocation8 + $0x38] sm:$0xff]
    %v307 = vld [vmem:[#allocation8 + $0x40] sm:$0xff]
    %v308 = vld [vmem:[#allocation8 + $0x48] sm:$0xff]
    %v309 = vld [vmem:[#allocation8 + $0x50] sm:$0xff]
    %v310 = vld [vmem:[#allocation8 + $0x58] sm:$0xff]
    %v311 = vld [vmem:[#allocation8 + $0x60] sm:$0xff]
    %v312 = vld [vmem:[#allocation8 + $0x68] sm:$0xff]
    %v313 = vld [vmem:[#allocation8 + $0x70] sm:$0xff]
    %v314 = vld [vmem:[#allocation8 + $0x78] sm:$0xff]
    %v315 = vld [vmem:[#allocation9] sm:$0xff]
    %v317 = vlaneseq
    %v318 = vshrl.u32 %v317, 7
    %v319 = vsub.s32 0, %v318
    %v320 = vrot.slane %v315, %v319
    %v321 = vlaneseq
    %v322 = vshrl.u32 %v321, 7
    %v323 = vsub.s32 1, %v322
    %v324 = vrot.slane %v315, %v323
    %v325 = vlaneseq
    %v326 = vshrl.u32 %v325, 7
    %v327 = vsub.s32 2, %v326
    %v328 = vrot.slane %v315, %v327
    %v329 = vlaneseq
    %v330 = vshrl.u32 %v329, 7
    %v331 = vsub.s32 3, %v330
    %v332 = vrot.slane %v315, %v331
    %v333 = vlaneseq
    %v334 = vshrl.u32 %v333, 7
    %v335 = vsub.s32 4, %v334
    %v336 = vrot.slane %v315, %v335
    %v337 = vlaneseq
    %v338 = vshrl.u32 %v337, 7
    %v339 = vsub.s32 5, %v338
    %v340 = vrot.slane %v315, %v339
    %v341 = vlaneseq
    %v342 = vshrl.u32 %v341, 7
    %v343 = vsub.s32 6, %v342
    %v344 = vrot.slane %v315, %v343
    %v345 = vlaneseq
    %v346 = vshrl.u32 %v345, 7
    %v347 = vsub.s32 7, %v346
    %v348 = vrot.slane %v315, %v347
    %v373 = vunpack.c.l.b16 %v299
    %v374 = vunpack.c.h.b16 %v299
    %v375 = vunpack.c.l.b16 %v300
    %v376 = vunpack.c.h.b16 %v300
    %v377 = vunpack.c.l.b16 %v301
    %v378 = vunpack.c.h.b16 %v301
    %v379 = vunpack.c.l.b16 %v302
    %v380 = vunpack.c.h.b16 %v302
    %v381 = vunpack.c.l.b16 %v303
    %v382 = vunpack.c.h.b16 %v303
    %v383 = vunpack.c.l.b16 %v304
    %v384 = vunpack.c.h.b16 %v304
    %v385 = vunpack.c.l.b16 %v305
    %v386 = vunpack.c.h.b16 %v305
    %v387 = vunpack.c.l.b16 %v306
    %v388 = vunpack.c.h.b16 %v306
    %v389 = vunpack.c.l.b16 %v307
    %v390 = vunpack.c.h.b16 %v307
    %v391 = vunpack.c.l.b16 %v308
    %v392 = vunpack.c.h.b16 %v308
    %v393 = vunpack.c.l.b16 %v309
    %v394 = vunpack.c.h.b16 %v309
    %v395 = vunpack.c.l.b16 %v310
    %v396 = vunpack.c.h.b16 %v310
    %v397 = vunpack.c.l.b16 %v311
    %v398 = vunpack.c.h.b16 %v311
    %v399 = vunpack.c.l.b16 %v312
    %v400 = vunpack.c.h.b16 %v312
    %v401 = vunpack.c.l.b16 %v313
    %v402 = vunpack.c.h.b16 %v313
    %v403 = vunpack.c.l.b16 %v314
    %v404 = vunpack.c.h.b16 %v314
    %v405 = vpack.c.b16 %v381, %v373
    %v406 = vpack.c.b16 %v382, %v374
    %v407 = vpack.c.b16 %v383, %v375
    %v408 = vpack.c.b16 %v384, %v376
    %v409 = vpack.c.b16 %v385, %v377
    %v410 = vpack.c.b16 %v386, %v378
    %v411 = vpack.c.b16 %v387, %v379
    %v412 = vpack.c.b16 %v388, %v380
    %v413 = vpack.c.b16 %v397, %v389
    %v414 = vpack.c.b16 %v398, %v390
    %v415 = vpack.c.b16 %v399, %v391
    %v416 = vpack.c.b16 %v400, %v392
    %v417 = vpack.c.b16 %v401, %v393
    %v418 = vpack.c.b16 %v402, %v394
    %v419 = vpack.c.b16 %v403, %v395
    %v420 = vpack.c.b16 %v404, %v396
    %vm437 = vcmask 261120
    %v439 = vsel %vm437, %v298, 0
    %441 = vmatprep.subr.bf16.mxu0 0
    %442 = vmatpush1.bf16.msra.mxu0 0
    %443 = vmatprep.subr.bf16.mxu0 0
    %444 = vmatpush1.bf16.msra.mxu0 0
    %445 = vmatprep.subr.bf16.mxu0 0
    %446 = vmatpush1.bf16.msra.mxu0 0
    %447 = vmatprep.subr.bf16.mxu0 0
    %448 = vmatpush1.bf16.msra.mxu0 0
    %449 = vmatprep.subr.bf16.mxu0 0
    %450 = vmatpush1.bf16.msra.mxu0 0
    %451 = vmatprep.subr.bf16.mxu0 0
    %452 = vmatpush1.bf16.msra.mxu0 0
    %453 = vmatprep.subr.bf16.mxu0 %v414
    %454 = vmatpush1.bf16.msra.mxu0 %v413
    %455 = vmatprep.subr.bf16.mxu0 %v406
    %456 = vmatpush1.bf16.msra.mxu0 %v405
    %457 = vmatprep.subr.bf16.mxu0 0
    %458 = vmatpush2.bf16.msra.mxu0 0
    %459 = vmatprep.subr.bf16.mxu0 0
    %460 = vmatpush2.bf16.msra.mxu0 0
    %461 = vmatprep.subr.bf16.mxu0 0
    %462 = vmatpush2.bf16.msra.mxu0 0
    %463 = vmatprep.subr.bf16.mxu0 0
    %464 = vmatpush2.bf16.msra.mxu0 0
    %465 = vmatprep.subr.bf16.mxu0 0
    %466 = vmatpush2.bf16.msra.mxu0 0
    %467 = vmatprep.subr.bf16.mxu0 0
    %468 = vmatpush2.bf16.msra.mxu0 0
    %469 = vmatprep.subr.bf16.mxu0 0
    %470 = vmatpush2.bf16.msra.mxu0 0
    %471 = vmatprep.subr.bf16.mxu0 0
    %472 = vmatpush2.bf16.msra.mxu0 0
    %473 = vmatprep.mubr.bf16.mxu0 0
    %474 = vmatmul.mubr.bf16.gmra.mxu0 %v439
    %v475 = vpop.f32.mrf.mxu0
    %v476 = vadd.f32 %v320, %v475
    %v477 = vpop.f32.mrf.mxu0
    %v478 = vadd.f32 %v324, %v477
    %v479 = vpop.f32.mrf.mxu0
    %v480 = vpop.f32.mrf.mxu0
    %481 = vdwg.mxu0
    %482 = vmatprep.subr.bf16.mxu0 0
    %483 = vmatpush1.bf16.msra.mxu0 0
    %484 = vmatprep.subr.bf16.mxu0 0
    %485 = vmatpush1.bf16.msra.mxu0 0
    %486 = vmatprep.subr.bf16.mxu0 0
    %487 = vmatpush1.bf16.msra.mxu0 0
    %488 = vmatprep.subr.bf16.mxu0 0
    %489 = vmatpush1.bf16.msra.mxu0 0
    %490 = vmatprep.subr.bf16.mxu0 0
    %491 = vmatpush1.bf16.msra.mxu0 0
    %492 = vmatprep.subr.bf16.mxu0 0
    %493 = vmatpush1.bf16.msra.mxu0 0
    %494 = vmatprep.subr.bf16.mxu0 %v416
    %495 = vmatpush1.bf16.msra.mxu0 %v415
    %496 = vmatprep.subr.bf16.mxu0 %v408
    %497 = vmatpush1.bf16.msra.mxu0 %v407
    %498 = vmatprep.subr.bf16.mxu0 0
    %499 = vmatpush2.bf16.msra.mxu0 0
    %500 = vmatprep.subr.bf16.mxu0 0
    %501 = vmatpush2.bf16.msra.mxu0 0
    %502 = vmatprep.subr.bf16.mxu0 0
    %503 = vmatpush2.bf16.msra.mxu0 0
    %504 = vmatprep.subr.bf16.mxu0 0
    %505 = vmatpush2.bf16.msra.mxu0 0
    %506 = vmatprep.subr.bf16.mxu0 0
    %507 = vmatpush2.bf16.msra.mxu0 0
    %508 = vmatprep.subr.bf16.mxu0 0
    %509 = vmatpush2.bf16.msra.mxu0 0
    %510 = vmatprep.subr.bf16.mxu0 0
    %511 = vmatpush2.bf16.msra.mxu0 0
    %512 = vmatprep.subr.bf16.mxu0 0
    %513 = vmatpush2.bf16.msra.mxu0 0
    %514 = vmatprep.mubr.bf16.mxu0 0
    %515 = vmatmul.mubr.bf16.gmra.mxu0 %v439
    %v516 = vpop.f32.mrf.mxu0
    %v517 = vadd.f32 %v328, %v516
    %v518 = vpop.f32.mrf.mxu0
    %v519 = vadd.f32 %v332, %v518
    %v520 = vpop.f32.mrf.mxu0
    %v521 = vpop.f32.mrf.mxu0
    %522 = vdwg.mxu0
    %523 = vmatprep.subr.bf16.mxu0 0
    %524 = vmatpush1.bf16.msra.mxu0 0
    %525 = vmatprep.subr.bf16.mxu0 0
    %526 = vmatpush1.bf16.msra.mxu0 0
    %527 = vmatprep.subr.bf16.mxu0 0
    %528 = vmatpush1.bf16.msra.mxu0 0
    %529 = vmatprep.subr.bf16.mxu0 0
    %530 = vmatpush1.bf16.msra.mxu0 0
    %531 = vmatprep.subr.bf16.mxu0 0
    %532 = vmatpush1.bf16.msra.mxu0 0
    %533 = vmatprep.subr.bf16.mxu0 0
    %534 = vmatpush1.bf16.msra.mxu0 0
    %535 = vmatprep.subr.bf16.mxu0 %v418
    %536 = vmatpush1.bf16.msra.mxu0 %v417
    %537 = vmatprep.subr.bf16.mxu0 %v410
    %538 = vmatpush1.bf16.msra.mxu0 %v409
    %539 = vmatprep.subr.bf16.mxu0 0
    %540 = vmatpush2.bf16.msra.mxu0 0
    %541 = vmatprep.subr.bf16.mxu0 0
    %542 = vmatpush2.bf16.msra.mxu0 0
    %543 = vmatprep.subr.bf16.mxu0 0
    %544 = vmatpush2.bf16.msra.mxu0 0
    %545 = vmatprep.subr.bf16.mxu0 0
    %546 = vmatpush2.bf16.msra.mxu0 0
    %547 = vmatprep.subr.bf16.mxu0 0
    %548 = vmatpush2.bf16.msra.mxu0 0
    %549 = vmatprep.subr.bf16.mxu0 0
    %550 = vmatpush2.bf16.msra.mxu0 0
    %551 = vmatprep.subr.bf16.mxu0 0
    %552 = vmatpush2.bf16.msra.mxu0 0
    %553 = vmatprep.subr.bf16.mxu0 0
    %554 = vmatpush2.bf16.msra.mxu0 0
    %555 = vmatprep.mubr.bf16.mxu0 0
    %556 = vmatmul.mubr.bf16.gmra.mxu0 %v439
    %v557 = vpop.f32.mrf.mxu0
    %v558 = vadd.f32 %v336, %v557
    %v559 = vpop.f32.mrf.mxu0
    %v560 = vadd.f32 %v340, %v559
    %v561 = vpop.f32.mrf.mxu0
    %v562 = vpop.f32.mrf.mxu0
    %563 = vdwg.mxu0
    %564 = vmatprep.subr.bf16.mxu0 0
    %565 = vmatpush1.bf16.msra.mxu0 0
    %566 = vmatprep.subr.bf16.mxu0 0
    %567 = vmatpush1.bf16.msra.mxu0 0
    %568 = vmatprep.subr.bf16.mxu0 0
    %569 = vmatpush1.bf16.msra.mxu0 0
    %570 = vmatprep.subr.bf16.mxu0 0
    %571 = vmatpush1.bf16.msra.mxu0 0
    %572 = vmatprep.subr.bf16.mxu0 0
    %573 = vmatpush1.bf16.msra.mxu0 0
    %574 = vmatprep.subr.bf16.mxu0 0
    %575 = vmatpush1.bf16.msra.mxu0 0
    %576 = vmatprep.subr.bf16.mxu0 %v420
    %577 = vmatpush1.bf16.msra.mxu0 %v419
    %578 = vmatprep.subr.bf16.mxu0 %v412
    %579 = vmatpush1.bf16.msra.mxu0 %v411
    %580 = vmatprep.subr.bf16.mxu0 0
    %581 = vmatpush2.bf16.msra.mxu0 0
    %582 = vmatprep.subr.bf16.mxu0 0
    %583 = vmatpush2.bf16.msra.mxu0 0
    %584 = vmatprep.subr.bf16.mxu0 0
    %585 = vmatpush2.bf16.msra.mxu0 0
    %586 = vmatprep.subr.bf16.mxu0 0
    %587 = vmatpush2.bf16.msra.mxu0 0
    %588 = vmatprep.subr.bf16.mxu0 0
    %589 = vmatpush2.bf16.msra.mxu0 0
    %590 = vmatprep.subr.bf16.mxu0 0
    %591 = vmatpush2.bf16.msra.mxu0 0
    %592 = vmatprep.subr.bf16.mxu0 0
    %593 = vmatpush2.bf16.msra.mxu0 0
    %594 = vmatprep.subr.bf16.mxu0 0
    %595 = vmatpush2.bf16.msra.mxu0 0
    %596 = vmatprep.mubr.bf16.mxu0 0
    %597 = vmatmul.mubr.bf16.gmra.mxu0 %v439
    %v598 = vpop.f32.mrf.mxu0
    %v599 = vadd.f32 %v344, %v598
    %v600 = vpop.f32.mrf.mxu0
    %v601 = vadd.f32 %v348, %v600
    %v602 = vpop.f32.mrf.mxu0
    %v603 = vpop.f32.mrf.mxu0
    %604 = vdwg.mxu0
    %v605 = vld [vmem:[%s8] sm:$0xff]
    %v606 = vld [vmem:[%s8 + $0x8] sm:$0xff]
    %v607 = vld [vmem:[%s8 + $0x10] sm:$0xff]
    %v608 = vld [vmem:[%s8 + $0x18] sm:$0xff]
    %v609 = vld [vmem:[#allocation12] sm:$0xf]
    %v610 = vld [vmem:[#allocation12 + $0x4] sm:$0xf]
    %v611 = vld [vmem:[#allocation12 + $0x8] sm:$0xf]
    %v612 = vld [vmem:[#allocation12 + $0xc] sm:$0xf]
    %v613 = vxor.u32 %v476, 2147483648
    %v614 = vmul.f32 %v613, 1.442695
    %v615 = vpow.pop %v614
    %v616 = vadd.f32 %v615, 1.0
    %v617 = vrcp.pop %v616
    %v618 = vmul.f32 1.0, %v617
    %v619 = vmul.f32 %v618, 2.0
    %v620 = vsub.f32 %v619, 1.0
    %v621 = vmul.f32 %v618, 0.0
    %623 = vrot.lane.b32.xlu0 %v620, 64
    %v624 = vpop.permute.xlu0 %623
    %v626 = vmul.f32 %v618, %v624
    %628 = vrot.lane.b32.xlu0 %v626, 32
    %v629 = vpop.permute.xlu0 %628
    %v631 = vadd.f32 %v621, %v629
    %v632 = vtanh.pop %v631
    %634 = vrot.lane.b32.xlu0 %v632, 64
    %v635 = vpop.permute.xlu0 %634
    %v637 = vmul.f32 %v618, %v635
    %v638 = vpack.c.bf16 %v637, %v637
    %640 = vrot.lane.b32.xlu0 %v638, 32
    %v641 = vpop.permute.xlu0 %640
    %v646 = vunpack.c.l.b16 %v605
    %v647 = vunpack.c.h.b16 %v605
    %v648 = vunpack.c.l.b16 %v606
    %v649 = vunpack.c.h.b16 %v606
    %v650 = vunpack.c.l.b16 %v607
    %v651 = vunpack.c.h.b16 %v607
    %v652 = vunpack.c.l.b16 %v608
    %v653 = vunpack.c.h.b16 %v608
    %v654 = vpack.c.b16 %v648, %v646
    %v655 = vpack.c.b16 %v649, %v647
    %v656 = vpack.c.b16 %v652, %v650
    %v657 = vpack.c.b16 %v653, %v651
    %v663 = vsel %vm437, %v641, 0
    %665 = vmatprep.subr.bf16.mxu0 0
    %666 = vmatpush1.bf16.msra.mxu0 0
    %667 = vmatprep.subr.bf16.mxu0 0
    %668 = vmatpush1.bf16.msra.mxu0 0
    %669 = vmatprep.subr.bf16.mxu0 0
    %670 = vmatpush1.bf16.msra.mxu0 0
    %671 = vmatprep.subr.bf16.mxu0 0
    %672 = vmatpush1.bf16.msra.mxu0 0
    %673 = vmatprep.subr.bf16.mxu0 0
    %674 = vmatpush1.bf16.msra.mxu0 0
    %675 = vmatprep.subr.bf16.mxu0 0
    %676 = vmatpush1.bf16.msra.mxu0 0
    %677 = vmatprep.subr.bf16.mxu0 %v657
    %678 = vmatpush1.bf16.msra.mxu0 %v656
    %679 = vmatprep.subr.bf16.mxu0 %v655
    %680 = vmatpush1.bf16.msra.mxu0 %v654
    %681 = vmatprep.subr.bf16.mxu0 0
    %682 = vmatpush2.bf16.msra.mxu0 0
    %683 = vmatprep.subr.bf16.mxu0 0
    %684 = vmatpush2.bf16.msra.mxu0 0
    %685 = vmatprep.subr.bf16.mxu0 0
    %686 = vmatpush2.bf16.msra.mxu0 0
    %687 = vmatprep.subr.bf16.mxu0 0
    %688 = vmatpush2.bf16.msra.mxu0 0
    %689 = vmatprep.subr.bf16.mxu0 0
    %690 = vmatpush2.bf16.msra.mxu0 0
    %691 = vmatprep.subr.bf16.mxu0 0
    %692 = vmatpush2.bf16.msra.mxu0 0
    %693 = vmatprep.subr.bf16.mxu0 0
    %694 = vmatpush2.bf16.msra.mxu0 0
    %695 = vmatprep.subr.bf16.mxu0 0
    %696 = vmatpush2.bf16.msra.mxu0 0
    %697 = vmatprep.mubr.bf16.mxu0 0
    %698 = vmatmul.mubr.bf16.gmra.mxu0 %v663
    %v699 = vpop.f32.mrf.mxu0
    %v700 = vadd.f32 0.0, %v699
    %v701 = vpop.f32.mrf.mxu0
    %v702 = vadd.f32 0.0, %v701
    %v703 = vpop.f32.mrf.mxu0
    %v704 = vpop.f32.mrf.mxu0
    %705 = vdwg.mxu0
    %s706 = sld [smem:[#allocation3]]
    %v707 = vstv %s706
    %v708 = vmul.f32 %v707, %v702
    %v709 = vld [vmem:[#allocation11] sm:$0x1]
    %v711 = vlaneseq
    %v712 = vshrl.u32 %v711, 7
    %v713 = vsub.s32 0, %v712
    %v714 = vrot.slane %v709, %v713
    %v716 = vadd.f32 %v708, %v714
    %v717 = vadd.f32 %v478, %v700
    %v718 = vxor.u32 %v717, 2147483648
    %v719 = vmul.f32 %v718, 1.442695
    %v720 = vpow.pop %v719
    %v721 = vadd.f32 %v720, 1.0
    %v722 = vrcp.pop %v721
    %v723 = vmul.f32 1.0, %v722
    %v724 = vmul.f32 %v723, 2.0
    %v725 = vsub.f32 %v724, 1.0
    %v726 = vmul.f32 %v723, %v631
    %728 = vrot.lane.b32.xlu0 %v725, 64
    %v729 = vpop.permute.xlu0 %728
    %v731 = vmul.f32 %v723, %v729
    %733 = vrot.lane.b32.xlu0 %v731, 32
    %v734 = vpop.permute.xlu0 %733
    %v736 = vadd.f32 %v726, %v734
    %v737 = vtanh.pop %v736
    %739 = vrot.lane.b32.xlu0 %v737, 64
    %v740 = vpop.permute.xlu0 %739
    %v742 = vmul.f32 %v723, %v740
    %v743 = vpack.c.bf16 %v742, %v742
    %745 = vrot.lane.b32.xlu0 %v743, 32
    %v746 = vpop.permute.xlu0 %745
    %v748 = vsel %vm437, %v746, 0
    %750 = vmatprep.subr.bf16.mxu0 0
    %751 = vmatpush1.bf16.msra.mxu0 0
    %752 = vmatprep.subr.bf16.mxu0 0
    %753 = vmatpush1.bf16.msra.mxu0 0
    %754 = vmatprep.subr.bf16.mxu0 0
    %755 = vmatpush1.bf16.msra.mxu0 0
    %756 = vmatprep.subr.bf16.mxu0 0
    %757 = vmatpush1.bf16.msra.mxu0 0
    %758 = vmatprep.subr.bf16.mxu0 0
    %759 = vmatpush1.bf16.msra.mxu0 0
    %760 = vmatprep.subr.bf16.mxu0 0
    %761 = vmatpush1.bf16.msra.mxu0 0
    %762 = vmatprep.subr.bf16.mxu0 %v657
    %763 = vmatpush1.bf16.msra.mxu0 %v656
    %764 = vmatprep.subr.bf16.mxu0 %v655
    %765 = vmatpush1.bf16.msra.mxu0 %v654
    %766 = vmatprep.subr.bf16.mxu0 0
    %767 = vmatpush2.bf16.msra.mxu0 0
    %768 = vmatprep.subr.bf16.mxu0 0
    %769 = vmatpush2.bf16.msra.mxu0 0
    %770 = vmatprep.subr.bf16.mxu0 0
    %771 = vmatpush2.bf16.msra.mxu0 0
    %772 = vmatprep.subr.bf16.mxu0 0
    %773 = vmatpush2.bf16.msra.mxu0 0
    %774 = vmatprep.subr.bf16.mxu0 0
    %775 = vmatpush2.bf16.msra.mxu0 0
    %776 = vmatprep.subr.bf16.mxu0 0
    %777 = vmatpush2.bf16.msra.mxu0 0
    %778 = vmatprep.subr.bf16.mxu0 0
    %779 = vmatpush2.bf16.msra.mxu0 0
    %780 = vmatprep.subr.bf16.mxu0 0
    %781 = vmatpush2.bf16.msra.mxu0 0
    %782 = vmatprep.mubr.bf16.mxu0 0
    %783 = vmatmul.mubr.bf16.gmra.mxu0 %v748
    %v784 = vpop.f32.mrf.mxu0
    %v785 = vadd.f32 0.0, %v784
    %v786 = vpop.f32.mrf.mxu0
    %v787 = vadd.f32 0.0, %v786
    %v788 = vpop.f32.mrf.mxu0
    %v789 = vpop.f32.mrf.mxu0
    %790 = vdwg.mxu0
    %s791 = sld [smem:[#allocation3 + $0x1]]
    %v792 = vstv %s791
    %v793 = vmul.f32 %v792, %v787
    %v794 = vld [vmem:[#allocation11 + $0x1] sm:$0x1]
    %v796 = vlaneseq
    %v797 = vshrl.u32 %v796, 7
    %v798 = vsub.s32 0, %v797
    %v799 = vrot.slane %v794, %v798
    %v801 = vadd.f32 %v793, %v799
    %v802 = vadd.f32 %v517, %v785
    %v803 = vxor.u32 %v802, 2147483648
    %v804 = vmul.f32 %v803, 1.442695
    %v805 = vpow.pop %v804
    %v806 = vadd.f32 %v805, 1.0
    %v807 = vrcp.pop %v806
    %v808 = vmul.f32 1.0, %v807
    %v809 = vmul.f32 %v808, 2.0
    %v810 = vsub.f32 %v809, 1.0
    %v811 = vmul.f32 %v808, %v736
    %813 = vrot.lane.b32.xlu0 %v810, 64
    %v814 = vpop.permute.xlu0 %813
    %v816 = vmul.f32 %v808, %v814
    %818 = vrot.lane.b32.xlu0 %v816, 32
    %v819 = vpop.permute.xlu0 %818
    %v821 = vadd.f32 %v811, %v819
    %v822 = vtanh.pop %v821
    %824 = vrot.lane.b32.xlu0 %v822, 64
    %v825 = vpop.permute.xlu0 %824
    %v827 = vmul.f32 %v808, %v825
    %v828 = vpack.c.bf16 %v827, %v827
    %830 = vrot.lane.b32.xlu0 %v828, 32
    %v831 = vpop.permute.xlu0 %830
    %v833 = vsel %vm437, %v831, 0
    %835 = vmatprep.subr.bf16.mxu0 0
    %836 = vmatpush1.bf16.msra.mxu0 0
    %837 = vmatprep.subr.bf16.mxu0 0
    %838 = vmatpush1.bf16.msra.mxu0 0
    %839 = vmatprep.subr.bf16.mxu0 0
    %840 = vmatpush1.bf16.msra.mxu0 0
    %841 = vmatprep.subr.bf16.mxu0 0
    %842 = vmatpush1.bf16.msra.mxu0 0
    %843 = vmatprep.subr.bf16.mxu0 0
    %844 = vmatpush1.bf16.msra.mxu0 0
    %845 = vmatprep.subr.bf16.mxu0 0
    %846 = vmatpush1.bf16.msra.mxu0 0
    %847 = vmatprep.subr.bf16.mxu0 %v657
    %848 = vmatpush1.bf16.msra.mxu0 %v656
    %849 = vmatprep.subr.bf16.mxu0 %v655
    %850 = vmatpush1.bf16.msra.mxu0 %v654
    %851 = vmatprep.subr.bf16.mxu0 0
    %852 = vmatpush2.bf16.msra.mxu0 0
    %853 = vmatprep.subr.bf16.mxu0 0
    %854 = vmatpush2.bf16.msra.mxu0 0
    %855 = vmatprep.subr.bf16.mxu0 0
    %856 = vmatpush2.bf16.msra.mxu0 0
    %857 = vmatprep.subr.bf16.mxu0 0
    %858 = vmatpush2.bf16.msra.mxu0 0
    %859 = vmatprep.subr.bf16.mxu0 0
    %860 = vmatpush2.bf16.msra.mxu0 0
    %861 = vmatprep.subr.bf16.mxu0 0
    %862 = vmatpush2.bf16.msra.mxu0 0
    %863 = vmatprep.subr.bf16.mxu0 0
    %864 = vmatpush2.bf16.msra.mxu0 0
    %865 = vmatprep.subr.bf16.mxu0 0
    %866 = vmatpush2.bf16.msra.mxu0 0
    %867 = vmatprep.mubr.bf16.mxu0 0
    %868 = vmatmul.mubr.bf16.gmra.mxu0 %v833
    %v869 = vpop.f32.mrf.mxu0
    %v870 = vadd.f32 0.0, %v869
    %v871 = vpop.f32.mrf.mxu0
    %v872 = vadd.f32 0.0, %v871
    %v873 = vpop.f32.mrf.mxu0
    %v874 = vpop.f32.mrf.mxu0
    %875 = vdwg.mxu0
    %s876 = sld [smem:[#allocation3 + $0x2]]
    %v877 = vstv %s876
    %v878 = vmul.f32 %v877, %v872
    %v879 = vld [vmem:[#allocation11 + $0x2] sm:$0x1]
    %v881 = vlaneseq
    %v882 = vshrl.u32 %v881, 7
    %v883 = vsub.s32 0, %v882
    %v884 = vrot.slane %v879, %v883
    %v886 = vadd.f32 %v878, %v884
    %v887 = vadd.f32 %v519, %v870
    %v888 = vxor.u32 %v887, 2147483648
    %v889 = vmul.f32 %v888, 1.442695
    %v890 = vpow.pop %v889
    %v891 = vadd.f32 %v890, 1.0
    %v892 = vrcp.pop %v891
    %v893 = vmul.f32 1.0, %v892
    %v894 = vmul.f32 %v893, 2.0
    %v895 = vsub.f32 %v894, 1.0
    %v896 = vmul.f32 %v893, %v821
    %898 = vrot.lane.b32.xlu0 %v895, 64
    %v899 = vpop.permute.xlu0 %898
    %v901 = vmul.f32 %v893, %v899
    %903 = vrot.lane.b32.xlu0 %v901, 32
    %v904 = vpop.permute.xlu0 %903
    %v906 = vadd.f32 %v896, %v904
    %v907 = vtanh.pop %v906
    %909 = vrot.lane.b32.xlu0 %v907, 64
    %v910 = vpop.permute.xlu0 %909
    %v912 = vmul.f32 %v893, %v910
    %v913 = vpack.c.bf16 %v912, %v912
    %915 = vrot.lane.b32.xlu0 %v913, 32
    %v916 = vpop.permute.xlu0 %915
    %v918 = vsel %vm437, %v916, 0
    %920 = vmatprep.subr.bf16.mxu0 0
    %921 = vmatpush1.bf16.msra.mxu0 0
    %922 = vmatprep.subr.bf16.mxu0 0
    %923 = vmatpush1.bf16.msra.mxu0 0
    %924 = vmatprep.subr.bf16.mxu0 0
    %925 = vmatpush1.bf16.msra.mxu0 0
    %926 = vmatprep.subr.bf16.mxu0 0
    %927 = vmatpush1.bf16.msra.mxu0 0
    %928 = vmatprep.subr.bf16.mxu0 0
    %929 = vmatpush1.bf16.msra.mxu0 0
    %930 = vmatprep.subr.bf16.mxu0 0
    %931 = vmatpush1.bf16.msra.mxu0 0
    %932 = vmatprep.subr.bf16.mxu0 %v657
    %933 = vmatpush1.bf16.msra.mxu0 %v656
    %934 = vmatprep.subr.bf16.mxu0 %v655
    %935 = vmatpush1.bf16.msra.mxu0 %v654
    %936 = vmatprep.subr.bf16.mxu0 0
    %937 = vmatpush2.bf16.msra.mxu0 0
    %938 = vmatprep.subr.bf16.mxu0 0
    %939 = vmatpush2.bf16.msra.mxu0 0
    %940 = vmatprep.subr.bf16.mxu0 0
    %941 = vmatpush2.bf16.msra.mxu0 0
    %942 = vmatprep.subr.bf16.mxu0 0
    %943 = vmatpush2.bf16.msra.mxu0 0
    %944 = vmatprep.subr.bf16.mxu0 0
    %945 = vmatpush2.bf16.msra.mxu0 0
    %946 = vmatprep.subr.bf16.mxu0 0
    %947 = vmatpush2.bf16.msra.mxu0 0
    %948 = vmatprep.subr.bf16.mxu0 0
    %949 = vmatpush2.bf16.msra.mxu0 0
    %950 = vmatprep.subr.bf16.mxu0 0
    %951 = vmatpush2.bf16.msra.mxu0 0
    %952 = vmatprep.mubr.bf16.mxu0 0
    %953 = vmatmul.mubr.bf16.gmra.mxu0 %v918
    %v954 = vpop.f32.mrf.mxu0
    %v955 = vadd.f32 0.0, %v954
    %v956 = vpop.f32.mrf.mxu0
    %v957 = vadd.f32 0.0, %v956
    %v958 = vpop.f32.mrf.mxu0
    %v959 = vpop.f32.mrf.mxu0
    %960 = vdwg.mxu0
    %s961 = sld [smem:[#allocation3 + $0x3]]
    %v962 = vstv %s961
    %v963 = vmul.f32 %v962, %v957
    %v964 = vld [vmem:[#allocation11 + $0x3] sm:$0x1]
    %v966 = vlaneseq
    %v967 = vshrl.u32 %v966, 7
    %v968 = vsub.s32 0, %v967
    %v969 = vrot.slane %v964, %v968
    %v971 = vadd.f32 %v963, %v969
    %v972 = vadd.f32 %v558, %v955
    %v973 = vxor.u32 %v972, 2147483648
    %v974 = vmul.f32 %v973, 1.442695
    %v975 = vpow.pop %v974
    %v976 = vadd.f32 %v975, 1.0
    %v977 = vrcp.pop %v976
    %v978 = vmul.f32 1.0, %v977
    %v979 = vmul.f32 %v978, 2.0
    %v980 = vsub.f32 %v979, 1.0
    %v981 = vmul.f32 %v978, %v906
    %983 = vrot.lane.b32.xlu0 %v980, 64
    %v984 = vpop.permute.xlu0 %983
    %v986 = vmul.f32 %v978, %v984
    %988 = vrot.lane.b32.xlu0 %v986, 32
    %v989 = vpop.permute.xlu0 %988
    %v991 = vadd.f32 %v981, %v989
    %v992 = vtanh.pop %v991
    %994 = vrot.lane.b32.xlu0 %v992, 64
    %v995 = vpop.permute.xlu0 %994
    %v997 = vmul.f32 %v978, %v995
    %v998 = vpack.c.bf16 %v997, %v997
    %1000 = vrot.lane.b32.xlu0 %v998, 32
    %v1001 = vpop.permute.xlu0 %1000
    %v1003 = vsel %vm437, %v1001, 0
    %1005 = vmatprep.subr.bf16.mxu0 0
    %1006 = vmatpush1.bf16.msra.mxu0 0
    %1007 = vmatprep.subr.bf16.mxu0 0
    %1008 = vmatpush1.bf16.msra.mxu0 0
    %1009 = vmatprep.subr.bf16.mxu0 0
    %1010 = vmatpush1.bf16.msra.mxu0 0
    %1011 = vmatprep.subr.bf16.mxu0 0
    %1012 = vmatpush1.bf16.msra.mxu0 0
    %1013 = vmatprep.subr.bf16.mxu0 0
    %1014 = vmatpush1.bf16.msra.mxu0 0
    %1015 = vmatprep.subr.bf16.mxu0 0
    %1016 = vmatpush1.bf16.msra.mxu0 0
    %1017 = vmatprep.subr.bf16.mxu0 %v657
    %1018 = vmatpush1.bf16.msra.mxu0 %v656
    %1019 = vmatprep.subr.bf16.mxu0 %v655
    %1020 = vmatpush1.bf16.msra.mxu0 %v654
    %1021 = vmatprep.subr.bf16.mxu0 0
    %1022 = vmatpush2.bf16.msra.mxu0 0
    %1023 = vmatprep.subr.bf16.mxu0 0
    %1024 = vmatpush2.bf16.msra.mxu0 0
    %1025 = vmatprep.subr.bf16.mxu0 0
    %1026 = vmatpush2.bf16.msra.mxu0 0
    %1027 = vmatprep.subr.bf16.mxu0 0
    %1028 = vmatpush2.bf16.msra.mxu0 0
    %1029 = vmatprep.subr.bf16.mxu0 0
    %1030 = vmatpush2.bf16.msra.mxu0 0
    %1031 = vmatprep.subr.bf16.mxu0 0
    %1032 = vmatpush2.bf16.msra.mxu0 0
    %1033 = vmatprep.subr.bf16.mxu0 0
    %1034 = vmatpush2.bf16.msra.mxu0 0
    %1035 = vmatprep.subr.bf16.mxu0 0
    %1036 = vmatpush2.bf16.msra.mxu0 0
    %1037 = vmatprep.mubr.bf16.mxu0 0
    %1038 = vmatmul.mubr.bf16.gmra.mxu0 %v1003
    %v1039 = vpop.f32.mrf.mxu0
    %v1040 = vadd.f32 0.0, %v1039
    %v1041 = vpop.f32.mrf.mxu0
    %v1042 = vadd.f32 0.0, %v1041
    %v1043 = vpop.f32.mrf.mxu0
    %v1044 = vpop.f32.mrf.mxu0
    %1045 = vdwg.mxu0
    %s1046 = sld [smem:[#allocation3 + $0x4]]
    %v1047 = vstv %s1046
    %v1048 = vmul.f32 %v1047, %v1042
    %v1049 = vld [vmem:[#allocation11 + $0x4] sm:$0x1]
    %v1051 = vlaneseq
    %v1052 = vshrl.u32 %v1051, 7
    %v1053 = vsub.s32 0, %v1052
    %v1054 = vrot.slane %v1049, %v1053
    %v1056 = vadd.f32 %v1048, %v1054
    %v1057 = vadd.f32 %v560, %v1040
    %v1058 = vxor.u32 %v1057, 2147483648
    %v1059 = vmul.f32 %v1058, 1.442695
    %v1060 = vpow.pop %v1059
    %v1061 = vadd.f32 %v1060, 1.0
    %v1062 = vrcp.pop %v1061
    %v1063 = vmul.f32 1.0, %v1062
    %v1064 = vmul.f32 %v1063, 2.0
    %v1065 = vsub.f32 %v1064, 1.0
    %v1066 = vmul.f32 %v1063, %v991
    %1068 = vrot.lane.b32.xlu0 %v1065, 64
    %v1069 = vpop.permute.xlu0 %1068
    %v1071 = vmul.f32 %v1063, %v1069
    %1073 = vrot.lane.b32.xlu0 %v1071, 32
    %v1074 = vpop.permute.xlu0 %1073
    %v1076 = vadd.f32 %v1066, %v1074
    %v1077 = vtanh.pop %v1076
    %1079 = vrot.lane.b32.xlu0 %v1077, 64
    %v1080 = vpop.permute.xlu0 %1079
    %v1082 = vmul.f32 %v1063, %v1080
    %v1083 = vpack.c.bf16 %v1082, %v1082
    %1085 = vrot.lane.b32.xlu0 %v1083, 32
    %v1086 = vpop.permute.xlu0 %1085
    %v1088 = vsel %vm437, %v1086, 0
    %1090 = vmatprep.subr.bf16.mxu0 0
    %1091 = vmatpush1.bf16.msra.mxu0 0
    %1092 = vmatprep.subr.bf16.mxu0 0
    %1093 = vmatpush1.bf16.msra.mxu0 0
    %1094 = vmatprep.subr.bf16.mxu0 0
    %1095 = vmatpush1.bf16.msra.mxu0 0
    %1096 = vmatprep.subr.bf16.mxu0 0
    %1097 = vmatpush1.bf16.msra.mxu0 0
    %1098 = vmatprep.subr.bf16.mxu0 0
    %1099 = vmatpush1.bf16.msra.mxu0 0
    %1100 = vmatprep.subr.bf16.mxu0 0
    %1101 = vmatpush1.bf16.msra.mxu0 0
    %1102 = vmatprep.subr.bf16.mxu0 %v657
    %1103 = vmatpush1.bf16.msra.mxu0 %v656
    %1104 = vmatprep.subr.bf16.mxu0 %v655
    %1105 = vmatpush1.bf16.msra.mxu0 %v654
    %1106 = vmatprep.subr.bf16.mxu0 0
    %1107 = vmatpush2.bf16.msra.mxu0 0
    %1108 = vmatprep.subr.bf16.mxu0 0
    %1109 = vmatpush2.bf16.msra.mxu0 0
    %1110 = vmatprep.subr.bf16.mxu0 0
    %1111 = vmatpush2.bf16.msra.mxu0 0
    %1112 = vmatprep.subr.bf16.mxu0 0
    %1113 = vmatpush2.bf16.msra.mxu0 0
    %1114 = vmatprep.subr.bf16.mxu0 0
    %1115 = vmatpush2.bf16.msra.mxu0 0
    %1116 = vmatprep.subr.bf16.mxu0 0
    %1117 = vmatpush2.bf16.msra.mxu0 0
    %1118 = vmatprep.subr.bf16.mxu0 0
    %1119 = vmatpush2.bf16.msra.mxu0 0
    %1120 = vmatprep.subr.bf16.mxu0 0
    %1121 = vmatpush2.bf16.msra.mxu0 0
    %1122 = vmatprep.mubr.bf16.mxu0 0
    %1123 = vmatmul.mubr.bf16.gmra.mxu0 %v1088
    %v1124 = vpop.f32.mrf.mxu0
    %v1125 = vadd.f32 0.0, %v1124
    %v1126 = vpop.f32.mrf.mxu0
    %v1127 = vadd.f32 0.0, %v1126
    %v1128 = vpop.f32.mrf.mxu0
    %v1129 = vpop.f32.mrf.mxu0
    %1130 = vdwg.mxu0
    %s1131 = sld [smem:[#allocation3 + $0x5]]
    %v1132 = vstv %s1131
    %v1133 = vmul.f32 %v1132, %v1127
    %v1134 = vld [vmem:[#allocation11 + $0x5] sm:$0x1]
    %v1136 = vlaneseq
    %v1137 = vshrl.u32 %v1136, 7
    %v1138 = vsub.s32 0, %v1137
    %v1139 = vrot.slane %v1134, %v1138
    %v1141 = vadd.f32 %v1133, %v1139
    %v1142 = vadd.f32 %v599, %v1125
    %v1143 = vxor.u32 %v1142, 2147483648
    %v1144 = vmul.f32 %v1143, 1.442695
    %v1145 = vpow.pop %v1144
    %v1146 = vadd.f32 %v1145, 1.0
    %v1147 = vrcp.pop %v1146
    %v1148 = vmul.f32 1.0, %v1147
    %v1149 = vmul.f32 %v1148, 2.0
    %v1150 = vsub.f32 %v1149, 1.0
    %v1151 = vmul.f32 %v1148, %v1076
    %1153 = vrot.lane.b32.xlu0 %v1150, 64
    %v1154 = vpop.permute.xlu0 %1153
    %v1156 = vmul.f32 %v1148, %v1154
    %1158 = vrot.lane.b32.xlu0 %v1156, 32
    %v1159 = vpop.permute.xlu0 %1158
    %v1161 = vadd.f32 %v1151, %v1159
    %v1162 = vtanh.pop %v1161
    %1164 = vrot.lane.b32.xlu0 %v1162, 64
    %v1165 = vpop.permute.xlu0 %1164
    %v1167 = vmul.f32 %v1148, %v1165
    %v1168 = vpack.c.bf16 %v1167, %v1167
    %1170 = vrot.lane.b32.xlu0 %v1168, 32
    %v1171 = vpop.permute.xlu0 %1170
    %v1173 = vsel %vm437, %v1171, 0
    %1175 = vmatprep.subr.bf16.mxu0 0
    %1176 = vmatpush1.bf16.msra.mxu0 0
    %1177 = vmatprep.subr.bf16.mxu0 0
    %1178 = vmatpush1.bf16.msra.mxu0 0
    %1179 = vmatprep.subr.bf16.mxu0 0
    %1180 = vmatpush1.bf16.msra.mxu0 0
    %1181 = vmatprep.subr.bf16.mxu0 0
    %1182 = vmatpush1.bf16.msra.mxu0 0
    %1183 = vmatprep.subr.bf16.mxu0 0
    %1184 = vmatpush1.bf16.msra.mxu0 0
    %1185 = vmatprep.subr.bf16.mxu0 0
    %1186 = vmatpush1.bf16.msra.mxu0 0
    %1187 = vmatprep.subr.bf16.mxu0 %v657
    %1188 = vmatpush1.bf16.msra.mxu0 %v656
    %1189 = vmatprep.subr.bf16.mxu0 %v655
    %1190 = vmatpush1.bf16.msra.mxu0 %v654
    %1191 = vmatprep.subr.bf16.mxu0 0
    %1192 = vmatpush2.bf16.msra.mxu0 0
    %1193 = vmatprep.subr.bf16.mxu0 0
    %1194 = vmatpush2.bf16.msra.mxu0 0
    %1195 = vmatprep.subr.bf16.mxu0 0
    %1196 = vmatpush2.bf16.msra.mxu0 0
    %1197 = vmatprep.subr.bf16.mxu0 0
    %1198 = vmatpush2.bf16.msra.mxu0 0
    %1199 = vmatprep.subr.bf16.mxu0 0
    %1200 = vmatpush2.bf16.msra.mxu0 0
    %1201 = vmatprep.subr.bf16.mxu0 0
    %1202 = vmatpush2.bf16.msra.mxu0 0
    %1203 = vmatprep.subr.bf16.mxu0 0
    %1204 = vmatpush2.bf16.msra.mxu0 0
    %1205 = vmatprep.subr.bf16.mxu0 0
    %1206 = vmatpush2.bf16.msra.mxu0 0
    %1207 = vmatprep.mubr.bf16.mxu0 0
    %1208 = vmatmul.mubr.bf16.gmra.mxu0 %v1173
    %v1209 = vpop.f32.mrf.mxu0
    %v1210 = vadd.f32 0.0, %v1209
    %v1211 = vpop.f32.mrf.mxu0
    %v1212 = vadd.f32 0.0, %v1211
    %v1213 = vpop.f32.mrf.mxu0
    %v1214 = vpop.f32.mrf.mxu0
    %1215 = vdwg.mxu0
    %s1216 = sld [smem:[#allocation3 + $0x6]]
    %v1217 = vstv %s1216
    %v1218 = vmul.f32 %v1217, %v1212
    %v1219 = vld [vmem:[#allocation11 + $0x6] sm:$0x1]
    %v1221 = vlaneseq
    %v1222 = vshrl.u32 %v1221, 7
    %v1223 = vsub.s32 0, %v1222
    %v1224 = vrot.slane %v1219, %v1223
    %v1226 = vadd.f32 %v1218, %v1224
    %v1227 = vadd.f32 %v601, %v1210
    %v1228 = vxor.u32 %v1227, 2147483648
    %v1229 = vmul.f32 %v1228, 1.442695
    %v1230 = vpow.pop %v1229
    %v1231 = vadd.f32 %v1230, 1.0
    %v1232 = vrcp.pop %v1231
    %v1233 = vmul.f32 1.0, %v1232
    %v1234 = vmul.f32 %v1233, 2.0
    %v1235 = vsub.f32 %v1234, 1.0
    %v1236 = vmul.f32 %v1233, %v1161
    %1238 = vrot.lane.b32.xlu0 %v1235, 64
    %v1239 = vpop.permute.xlu0 %1238
    %v1241 = vmul.f32 %v1233, %v1239
    %1243 = vrot.lane.b32.xlu0 %v1241, 32
    %v1244 = vpop.permute.xlu0 %1243
    %v1246 = vadd.f32 %v1236, %v1244
    %v1247 = vtanh.pop %v1246
    %1249 = vrot.lane.b32.xlu0 %v1247, 64
    %v1250 = vpop.permute.xlu0 %1249
    %v1252 = vmul.f32 %v1233, %v1250
    %v1253 = vpack.c.bf16 %v1252, %v1252
    %1255 = vrot.lane.b32.xlu0 %v1253, 32
    %v1256 = vpop.permute.xlu0 %1255
    %v1258 = vsel %vm437, %v1256, 0
    %1260 = vmatprep.subr.bf16.mxu0 0
    %1261 = vmatpush1.bf16.msra.mxu0 0
    %1262 = vmatprep.subr.bf16.mxu0 0
    %1263 = vmatpush1.bf16.msra.mxu0 0
    %1264 = vmatprep.subr.bf16.mxu0 0
    %1265 = vmatpush1.bf16.msra.mxu0 0
    %1266 = vmatprep.subr.bf16.mxu0 0
    %1267 = vmatpush1.bf16.msra.mxu0 0
    %1268 = vmatprep.subr.bf16.mxu0 0
    %1269 = vmatpush1.bf16.msra.mxu0 0
    %1270 = vmatprep.subr.bf16.mxu0 0
    %1271 = vmatpush1.bf16.msra.mxu0 0
    %1272 = vmatprep.subr.bf16.mxu0 %v657
    %1273 = vmatpush1.bf16.msra.mxu0 %v656
    %1274 = vmatprep.subr.bf16.mxu0 %v655
    %1275 = vmatpush1.bf16.msra.mxu0 %v654
    %1276 = vmatprep.subr.bf16.mxu0 0
    %1277 = vmatpush2.bf16.msra.mxu0 0
    %1278 = vmatprep.subr.bf16.mxu0 0
    %1279 = vmatpush2.bf16.msra.mxu0 0
    %1280 = vmatprep.subr.bf16.mxu0 0
    %1281 = vmatpush2.bf16.msra.mxu0 0
    %1282 = vmatprep.subr.bf16.mxu0 0
    %1283 = vmatpush2.bf16.msra.mxu0 0
    %1284 = vmatprep.subr.bf16.mxu0 0
    %1285 = vmatpush2.bf16.msra.mxu0 0
    %1286 = vmatprep.subr.bf16.mxu0 0
    %1287 = vmatpush2.bf16.msra.mxu0 0
    %1288 = vmatprep.subr.bf16.mxu0 0
    %1289 = vmatpush2.bf16.msra.mxu0 0
    %1290 = vmatprep.subr.bf16.mxu0 0
    %1291 = vmatpush2.bf16.msra.mxu0 0
    %1292 = vmatprep.mubr.bf16.mxu0 0
    %1293 = vmatmul.mubr.bf16.gmra.mxu0 %v1258
    %v1294 = vpop.f32.mrf.mxu0
    %v1295 = vpop.f32.mrf.mxu0
    %v1296 = vadd.f32 0.0, %v1295
    %v1297 = vpop.f32.mrf.mxu0
    %v1298 = vpop.f32.mrf.mxu0
    %1299 = vdwg.mxu0
    %s1300 = sld [smem:[#allocation3 + $0x7]]
    %v1301 = vstv %s1300
    %v1302 = vmul.f32 %v1301, %v1296
    %v1303 = vld [vmem:[#allocation11 + $0x7] sm:$0x1]
    %v1305 = vlaneseq
    %v1306 = vshrl.u32 %v1305, 7
    %v1307 = vsub.s32 0, %v1306
    %v1308 = vrot.slane %v1303, %v1307
    %v1310 = vadd.f32 %v1302, %v1308
    %v1315 = vunpack.c.l.b16 %v609
    %v1316 = vunpack.c.l.b16 %v610
    %v1317 = vunpack.c.l.b16 %v611
    %v1318 = vunpack.c.l.b16 %v612
    %v1319 = vpack.c.b16 %v1316, %v1315
    %v1320 = vpack.c.b16 %v1318, %v1317
    %1323 = vmatprep.subr.bf16.mxu0 0
    %1324 = vmatpush1.bf16.msra.mxu0 0
    %1325 = vmatprep.subr.bf16.mxu0 0
    %1326 = vmatpush1.bf16.msra.mxu0 0
    %1327 = vmatprep.subr.bf16.mxu0 0
    %1328 = vmatpush1.bf16.msra.mxu0 0
    %1329 = vmatprep.subr.bf16.mxu0 0
    %1330 = vmatpush1.bf16.msra.mxu0 0
    %1331 = vmatprep.subr.bf16.mxu0 0
    %1332 = vmatpush1.bf16.msra.mxu0 0
    %1333 = vmatprep.subr.bf16.mxu0 0
    %1334 = vmatpush1.bf16.msra.mxu0 0
    %1335 = vmatprep.subr.bf16.mxu0 0
    %1336 = vmatpush1.bf16.msra.mxu0 %v1320
    %1337 = vmatprep.subr.bf16.mxu0 0
    %1338 = vmatpush1.bf16.msra.mxu0 %v1319
    %1339 = vmatprep.subr.bf16.mxu0 0
    %1340 = vmatpush2.bf16.msra.mxu0 0
    %1341 = vmatprep.subr.bf16.mxu0 0
    %1342 = vmatpush2.bf16.msra.mxu0 0
    %1343 = vmatprep.subr.bf16.mxu0 0
    %1344 = vmatpush2.bf16.msra.mxu0 0
    %1345 = vmatprep.subr.bf16.mxu0 0
    %1346 = vmatpush2.bf16.msra.mxu0 0
    %1347 = vmatprep.subr.bf16.mxu0 0
    %1348 = vmatpush2.bf16.msra.mxu0 0
    %1349 = vmatprep.subr.bf16.mxu0 0
    %1350 = vmatpush2.bf16.msra.mxu0 0
    %1351 = vmatprep.subr.bf16.mxu0 0
    %1352 = vmatpush2.bf16.msra.mxu0 0
    %1353 = vmatprep.subr.bf16.mxu0 0
    %1354 = vmatpush2.bf16.msra.mxu0 0
    %1355 = vmatprep.mubr.bf16.mxu0 0
    %1356 = vmatmul.mubr.bf16.gmra.mxu0 %v1258
    %v1357 = vpop.f32.mrf.mxu0
    %v1358 = vadd.f32 %v716, %v1357
    %v1359 = vpop.f32.mrf.mxu0
    %v1360 = vpop.f32.mrf.mxu0
    %v1361 = vpop.f32.mrf.mxu0
    %1362 = vdwg.mxu0
    %v1363 = vxor.u32 %v1358, 2147483648
    %v1364 = vmul.f32 %v1363, 1.442695
    %v1365 = vpow.pop %v1364
    %v1366 = vadd.f32 %v1365, 1.0
    %v1367 = vrcp.pop %v1366
    %v1368 = vmul.f32 1.0, %v1367
    %v1369 = vmul.f32 %v1368, 2.0
    %v1370 = vsub.f32 %v1369, 1.0
    %v1371 = vmul.f32 %v1368, %v1246
    %1373 = vrot.lane.b32.xlu0 %v1370, 64
    %v1374 = vpop.permute.xlu0 %1373
    %v1376 = vmul.f32 %v1368, %v1374
    %1378 = vrot.lane.b32.xlu0 %v1376, 32
    %v1379 = vpop.permute.xlu0 %1378
    %v1381 = vadd.f32 %v1371, %v1379
    %v1382 = vtanh.pop %v1381
    %1384 = vrot.lane.b32.xlu0 %v1382, 64
    %v1385 = vpop.permute.xlu0 %1384
    %v1387 = vmul.f32 %v1368, %v1385
    %v1388 = vpack.c.bf16 %v1387, %v1387
    %1390 = vrot.lane.b32.xlu0 %v1388, 32
    %v1391 = vpop.permute.xlu0 %1390
    %v1393 = vsel %vm437, %v1391, 0
    %1395 = vmatprep.subr.bf16.mxu0 0
    %1396 = vmatpush1.bf16.msra.mxu0 0
    %1397 = vmatprep.subr.bf16.mxu0 0
    %1398 = vmatpush1.bf16.msra.mxu0 0
    %1399 = vmatprep.subr.bf16.mxu0 0
    %1400 = vmatpush1.bf16.msra.mxu0 0
    %1401 = vmatprep.subr.bf16.mxu0 0
    %1402 = vmatpush1.bf16.msra.mxu0 0
    %1403 = vmatprep.subr.bf16.mxu0 0
    %1404 = vmatpush1.bf16.msra.mxu0 0
    %1405 = vmatprep.subr.bf16.mxu0 0
    %1406 = vmatpush1.bf16.msra.mxu0 0
    %1407 = vmatprep.subr.bf16.mxu0 0
    %1408 = vmatpush1.bf16.msra.mxu0 %v1320
    %1409 = vmatprep.subr.bf16.mxu0 0
    %1410 = vmatpush1.bf16.msra.mxu0 %v1319
    %1411 = vmatprep.subr.bf16.mxu0 0
    %1412 = vmatpush2.bf16.msra.mxu0 0
    %1413 = vmatprep.subr.bf16.mxu0 0
    %1414 = vmatpush2.bf16.msra.mxu0 0
    %1415 = vmatprep.subr.bf16.mxu0 0
    %1416 = vmatpush2.bf16.msra.mxu0 0
    %1417 = vmatprep.subr.bf16.mxu0 0
    %1418 = vmatpush2.bf16.msra.mxu0 0
    %1419 = vmatprep.subr.bf16.mxu0 0
    %1420 = vmatpush2.bf16.msra.mxu0 0
    %1421 = vmatprep.subr.bf16.mxu0 0
    %1422 = vmatpush2.bf16.msra.mxu0 0
    %1423 = vmatprep.subr.bf16.mxu0 0
    %1424 = vmatpush2.bf16.msra.mxu0 0
    %1425 = vmatprep.subr.bf16.mxu0 0
    %1426 = vmatpush2.bf16.msra.mxu0 0
    %1427 = vmatprep.mubr.bf16.mxu0 0
    %1428 = vmatmul.mubr.bf16.gmra.mxu0 %v1393
    %v1429 = vpop.f32.mrf.mxu0
    %v1430 = vadd.f32 %v801, %v1429
    %v1431 = vpop.f32.mrf.mxu0
    %v1432 = vpop.f32.mrf.mxu0
    %v1433 = vpop.f32.mrf.mxu0
    %1434 = vdwg.mxu0
    %v1435 = vxor.u32 %v1430, 2147483648
    %v1436 = vmul.f32 %v1435, 1.442695
    %v1437 = vpow.pop %v1436
    %v1438 = vadd.f32 %v1437, 1.0
    %v1439 = vrcp.pop %v1438
    %v1440 = vmul.f32 1.0, %v1439
    %v1441 = vmul.f32 %v1440, 2.0
    %v1442 = vsub.f32 %v1441, 1.0
    %v1443 = vmul.f32 %v1440, %v1381
    %1445 = vrot.lane.b32.xlu0 %v1442, 64
    %v1446 = vpop.permute.xlu0 %1445
    %v1448 = vmul.f32 %v1440, %v1446
    %1450 = vrot.lane.b32.xlu0 %v1448, 32
    %v1451 = vpop.permute.xlu0 %1450
    %v1453 = vadd.f32 %v1443, %v1451
    %v1454 = vtanh.pop %v1453
    %1456 = vrot.lane.b32.xlu0 %v1454, 64
    %v1457 = vpop.permute.xlu0 %1456
    %v1459 = vmul.f32 %v1440, %v1457
    %v1460 = vpack.c.bf16 %v1459, %v1459
    %1462 = vrot.lane.b32.xlu0 %v1460, 32
    %v1463 = vpop.permute.xlu0 %1462
    %v1465 = vsel %vm437, %v1463, 0
    %1467 = vmatprep.subr.bf16.mxu0 0
    %1468 = vmatpush1.bf16.msra.mxu0 0
    %1469 = vmatprep.subr.bf16.mxu0 0
    %1470 = vmatpush1.bf16.msra.mxu0 0
    %1471 = vmatprep.subr.bf16.mxu0 0
    %1472 = vmatpush1.bf16.msra.mxu0 0
    %1473 = vmatprep.subr.bf16.mxu0 0
    %1474 = vmatpush1.bf16.msra.mxu0 0
    %1475 = vmatprep.subr.bf16.mxu0 0
    %1476 = vmatpush1.bf16.msra.mxu0 0
    %1477 = vmatprep.subr.bf16.mxu0 0
    %1478 = vmatpush1.bf16.msra.mxu0 0
    %1479 = vmatprep.subr.bf16.mxu0 0
    %1480 = vmatpush1.bf16.msra.mxu0 %v1320
    %1481 = vmatprep.subr.bf16.mxu0 0
    %1482 = vmatpush1.bf16.msra.mxu0 %v1319
    %1483 = vmatprep.subr.bf16.mxu0 0
    %1484 = vmatpush2.bf16.msra.mxu0 0
    %1485 = vmatprep.subr.bf16.mxu0 0
    %1486 = vmatpush2.bf16.msra.mxu0 0
    %1487 = vmatprep.subr.bf16.mxu0 0
    %1488 = vmatpush2.bf16.msra.mxu0 0
    %1489 = vmatprep.subr.bf16.mxu0 0
    %1490 = vmatpush2.bf16.msra.mxu0 0
    %1491 = vmatprep.subr.bf16.mxu0 0
    %1492 = vmatpush2.bf16.msra.mxu0 0
    %1493 = vmatprep.subr.bf16.mxu0 0
    %1494 = vmatpush2.bf16.msra.mxu0 0
    %1495 = vmatprep.subr.bf16.mxu0 0
    %1496 = vmatpush2.bf16.msra.mxu0 0
    %1497 = vmatprep.subr.bf16.mxu0 0
    %1498 = vmatpush2.bf16.msra.mxu0 0
    %1499 = vmatprep.mubr.bf16.mxu0 0
    %1500 = vmatmul.mubr.bf16.gmra.mxu0 %v1465
    %v1501 = vpop.f32.mrf.mxu0
    %v1502 = vadd.f32 %v886, %v1501
    %v1503 = vpop.f32.mrf.mxu0
    %v1504 = vpop.f32.mrf.mxu0
    %v1505 = vpop.f32.mrf.mxu0
    %1506 = vdwg.mxu0
    %v1507 = vxor.u32 %v1502, 2147483648
    %v1508 = vmul.f32 %v1507, 1.442695
    %v1509 = vpow.pop %v1508
    %v1510 = vadd.f32 %v1509, 1.0
    %v1511 = vrcp.pop %v1510
    %v1512 = vmul.f32 1.0, %v1511
    %v1513 = vmul.f32 %v1512, 2.0
    %v1514 = vsub.f32 %v1513, 1.0
    %v1515 = vmul.f32 %v1512, %v1453
    %1517 = vrot.lane.b32.xlu0 %v1514, 64
    %v1518 = vpop.permute.xlu0 %1517
    %v1520 = vmul.f32 %v1512, %v1518
    %1522 = vrot.lane.b32.xlu0 %v1520, 32
    %v1523 = vpop.permute.xlu0 %1522
    %v1525 = vadd.f32 %v1515, %v1523
    %v1526 = vtanh.pop %v1525
    %1528 = vrot.lane.b32.xlu0 %v1526, 64
    %v1529 = vpop.permute.xlu0 %1528
    %v1531 = vmul.f32 %v1512, %v1529
    %v1532 = vpack.c.bf16 %v1531, %v1531
    %1534 = vrot.lane.b32.xlu0 %v1532, 32
    %v1535 = vpop.permute.xlu0 %1534
    %v1537 = vsel %vm437, %v1535, 0
    %1539 = vmatprep.subr.bf16.mxu0 0
    %1540 = vmatpush1.bf16.msra.mxu0 0
    %1541 = vmatprep.subr.bf16.mxu0 0
    %1542 = vmatpush1.bf16.msra.mxu0 0
    %1543 = vmatprep.subr.bf16.mxu0 0
    %1544 = vmatpush1.bf16.msra.mxu0 0
    %1545 = vmatprep.subr.bf16.mxu0 0
    %1546 = vmatpush1.bf16.msra.mxu0 0
    %1547 = vmatprep.subr.bf16.mxu0 0
    %1548 = vmatpush1.bf16.msra.mxu0 0
    %1549 = vmatprep.subr.bf16.mxu0 0
    %1550 = vmatpush1.bf16.msra.mxu0 0
    %1551 = vmatprep.subr.bf16.mxu0 0
    %1552 = vmatpush1.bf16.msra.mxu0 %v1320
    %1553 = vmatprep.subr.bf16.mxu0 0
    %1554 = vmatpush1.bf16.msra.mxu0 %v1319
    %1555 = vmatprep.subr.bf16.mxu0 0
    %1556 = vmatpush2.bf16.msra.mxu0 0
    %1557 = vmatprep.subr.bf16.mxu0 0
    %1558 = vmatpush2.bf16.msra.mxu0 0
    %1559 = vmatprep.subr.bf16.mxu0 0
    %1560 = vmatpush2.bf16.msra.mxu0 0
    %1561 = vmatprep.subr.bf16.mxu0 0
    %1562 = vmatpush2.bf16.msra.mxu0 0
    %1563 = vmatprep.subr.bf16.mxu0 0
    %1564 = vmatpush2.bf16.msra.mxu0 0
    %1565 = vmatprep.subr.bf16.mxu0 0
    %1566 = vmatpush2.bf16.msra.mxu0 0
    %1567 = vmatprep.subr.bf16.mxu0 0
    %1568 = vmatpush2.bf16.msra.mxu0 0
    %1569 = vmatprep.subr.bf16.mxu0 0
    %1570 = vmatpush2.bf16.msra.mxu0 0
    %1571 = vmatprep.mubr.bf16.mxu0 0
    %1572 = vmatmul.mubr.bf16.gmra.mxu0 %v1537
    %v1573 = vpop.f32.mrf.mxu0
    %v1574 = vadd.f32 %v971, %v1573
    %v1575 = vpop.f32.mrf.mxu0
    %v1576 = vpop.f32.mrf.mxu0
    %v1577 = vpop.f32.mrf.mxu0
    %1578 = vdwg.mxu0
    %v1579 = vxor.u32 %v1574, 2147483648
    %v1580 = vmul.f32 %v1579, 1.442695
    %v1581 = vpow.pop %v1580
    %v1582 = vadd.f32 %v1581, 1.0
    %v1583 = vrcp.pop %v1582
    %v1584 = vmul.f32 1.0, %v1583
    %v1585 = vmul.f32 %v1584, 2.0
    %v1586 = vsub.f32 %v1585, 1.0
    %v1587 = vmul.f32 %v1584, %v1525
    %1589 = vrot.lane.b32.xlu0 %v1586, 64
    %v1590 = vpop.permute.xlu0 %1589
    %v1592 = vmul.f32 %v1584, %v1590
    %1594 = vrot.lane.b32.xlu0 %v1592, 32
    %v1595 = vpop.permute.xlu0 %1594
    %v1597 = vadd.f32 %v1587, %v1595
    %v1598 = vtanh.pop %v1597
    %1600 = vrot.lane.b32.xlu0 %v1598, 64
    %v1601 = vpop.permute.xlu0 %1600
    %v1603 = vmul.f32 %v1584, %v1601
    %v1604 = vpack.c.bf16 %v1603, %v1603
    %1606 = vrot.lane.b32.xlu0 %v1604, 32
    %v1607 = vpop.permute.xlu0 %1606
    %v1609 = vsel %vm437, %v1607, 0
    %1611 = vmatprep.subr.bf16.mxu0 0
    %1612 = vmatpush1.bf16.msra.mxu0 0
    %1613 = vmatprep.subr.bf16.mxu0 0
    %1614 = vmatpush1.bf16.msra.mxu0 0
    %1615 = vmatprep.subr.bf16.mxu0 0
    %1616 = vmatpush1.bf16.msra.mxu0 0
    %1617 = vmatprep.subr.bf16.mxu0 0
    %1618 = vmatpush1.bf16.msra.mxu0 0
    %1619 = vmatprep.subr.bf16.mxu0 0
    %1620 = vmatpush1.bf16.msra.mxu0 0
    %1621 = vmatprep.subr.bf16.mxu0 0
    %1622 = vmatpush1.bf16.msra.mxu0 0
    %1623 = vmatprep.subr.bf16.mxu0 0
    %1624 = vmatpush1.bf16.msra.mxu0 %v1320
    %1625 = vmatprep.subr.bf16.mxu0 0
    %1626 = vmatpush1.bf16.msra.mxu0 %v1319
    %1627 = vmatprep.subr.bf16.mxu0 0
    %1628 = vmatpush2.bf16.msra.mxu0 0
    %1629 = vmatprep.subr.bf16.mxu0 0
    %1630 = vmatpush2.bf16.msra.mxu0 0
    %1631 = vmatprep.subr.bf16.mxu0 0
    %1632 = vmatpush2.bf16.msra.mxu0 0
    %1633 = vmatprep.subr.bf16.mxu0 0
    %1634 = vmatpush2.bf16.msra.mxu0 0
    %1635 = vmatprep.subr.bf16.mxu0 0
    %1636 = vmatpush2.bf16.msra.mxu0 0
    %1637 = vmatprep.subr.bf16.mxu0 0
    %1638 = vmatpush2.bf16.msra.mxu0 0
    %1639 = vmatprep.subr.bf16.mxu0 0
    %1640 = vmatpush2.bf16.msra.mxu0 0
    %1641 = vmatprep.subr.bf16.mxu0 0
    %1642 = vmatpush2.bf16.msra.mxu0 0
    %1643 = vmatprep.mubr.bf16.mxu0 0
    %1644 = vmatmul.mubr.bf16.gmra.mxu0 %v1609
    %v1645 = vpop.f32.mrf.mxu0
    %v1646 = vadd.f32 %v1056, %v1645
    %v1647 = vpop.f32.mrf.mxu0
    %v1648 = vpop.f32.mrf.mxu0
    %v1649 = vpop.f32.mrf.mxu0
    %1650 = vdwg.mxu0
    %v1651 = vxor.u32 %v1646, 2147483648
    %v1652 = vmul.f32 %v1651, 1.442695
    %v1653 = vpow.pop %v1652
    %v1654 = vadd.f32 %v1653, 1.0
    %v1655 = vrcp.pop %v1654
    %v1656 = vmul.f32 1.0, %v1655
    %v1657 = vmul.f32 %v1656, 2.0
    %v1658 = vsub.f32 %v1657, 1.0
    %v1659 = vmul.f32 %v1656, %v1597
    %1661 = vrot.lane.b32.xlu0 %v1658, 64
    %v1662 = vpop.permute.xlu0 %1661
    %v1664 = vmul.f32 %v1656, %v1662
    %1666 = vrot.lane.b32.xlu0 %v1664, 32
    %v1667 = vpop.permute.xlu0 %1666
    %v1669 = vadd.f32 %v1659, %v1667
    %v1670 = vtanh.pop %v1669
    %1672 = vrot.lane.b32.xlu0 %v1670, 64
    %v1673 = vpop.permute.xlu0 %1672
    %v1675 = vmul.f32 %v1656, %v1673
    %v1676 = vpack.c.bf16 %v1675, %v1675
    %1678 = vrot.lane.b32.xlu0 %v1676, 32
    %v1679 = vpop.permute.xlu0 %1678
    %v1681 = vsel %vm437, %v1679, 0
    %1683 = vmatprep.subr.bf16.mxu0 0
    %1684 = vmatpush1.bf16.msra.mxu0 0
    %1685 = vmatprep.subr.bf16.mxu0 0
    %1686 = vmatpush1.bf16.msra.mxu0 0
    %1687 = vmatprep.subr.bf16.mxu0 0
    %1688 = vmatpush1.bf16.msra.mxu0 0
    %1689 = vmatprep.subr.bf16.mxu0 0
    %1690 = vmatpush1.bf16.msra.mxu0 0
    %1691 = vmatprep.subr.bf16.mxu0 0
    %1692 = vmatpush1.bf16.msra.mxu0 0
    %1693 = vmatprep.subr.bf16.mxu0 0
    %1694 = vmatpush1.bf16.msra.mxu0 0
    %1695 = vmatprep.subr.bf16.mxu0 0
    %1696 = vmatpush1.bf16.msra.mxu0 %v1320
    %1697 = vmatprep.subr.bf16.mxu0 0
    %1698 = vmatpush1.bf16.msra.mxu0 %v1319
    %1699 = vmatprep.subr.bf16.mxu0 0
    %1700 = vmatpush2.bf16.msra.mxu0 0
    %1701 = vmatprep.subr.bf16.mxu0 0
    %1702 = vmatpush2.bf16.msra.mxu0 0
    %1703 = vmatprep.subr.bf16.mxu0 0
    %1704 = vmatpush2.bf16.msra.mxu0 0
    %1705 = vmatprep.subr.bf16.mxu0 0
    %1706 = vmatpush2.bf16.msra.mxu0 0
    %1707 = vmatprep.subr.bf16.mxu0 0
    %1708 = vmatpush2.bf16.msra.mxu0 0
    %1709 = vmatprep.subr.bf16.mxu0 0
    %1710 = vmatpush2.bf16.msra.mxu0 0
    %1711 = vmatprep.subr.bf16.mxu0 0
    %1712 = vmatpush2.bf16.msra.mxu0 0
    %1713 = vmatprep.subr.bf16.mxu0 0
    %1714 = vmatpush2.bf16.msra.mxu0 0
    %1715 = vmatprep.mubr.bf16.mxu0 0
    %1716 = vmatmul.mubr.bf16.gmra.mxu0 %v1681
    %v1717 = vpop.f32.mrf.mxu0
    %v1718 = vadd.f32 %v1141, %v1717
    %v1719 = vpop.f32.mrf.mxu0
    %v1720 = vpop.f32.mrf.mxu0
    %v1721 = vpop.f32.mrf.mxu0
    %1722 = vdwg.mxu0
    %v1723 = vxor.u32 %v1718, 2147483648
    %v1724 = vmul.f32 %v1723, 1.442695
    %v1725 = vpow.pop %v1724
    %v1726 = vadd.f32 %v1725, 1.0
    %v1727 = vrcp.pop %v1726
    %v1728 = vmul.f32 1.0, %v1727
    %v1729 = vmul.f32 %v1728, 2.0
    %v1730 = vsub.f32 %v1729, 1.0
    %v1731 = vmul.f32 %v1728, %v1669
    %1733 = vrot.lane.b32.xlu0 %v1730, 64
    %v1734 = vpop.permute.xlu0 %1733
    %v1736 = vmul.f32 %v1728, %v1734
    %1738 = vrot.lane.b32.xlu0 %v1736, 32
    %v1739 = vpop.permute.xlu0 %1738
    %v1741 = vadd.f32 %v1731, %v1739
    %v1742 = vtanh.pop %v1741
    %1744 = vrot.lane.b32.xlu0 %v1742, 64
    %v1745 = vpop.permute.xlu0 %1744
    %v1747 = vmul.f32 %v1728, %v1745
    %v1748 = vpack.c.bf16 %v1747, %v1747
    %1750 = vrot.lane.b32.xlu0 %v1748, 32
    %v1751 = vpop.permute.xlu0 %1750
    %v1753 = vsel %vm437, %v1751, 0
    %1755 = vmatprep.subr.bf16.mxu0 0
    %1756 = vmatpush1.bf16.msra.mxu0 0
    %1757 = vmatprep.subr.bf16.mxu0 0
    %1758 = vmatpush1.bf16.msra.mxu0 0
    %1759 = vmatprep.subr.bf16.mxu0 0
    %1760 = vmatpush1.bf16.msra.mxu0 0
    %1761 = vmatprep.subr.bf16.mxu0 0
    %1762 = vmatpush1.bf16.msra.mxu0 0
    %1763 = vmatprep.subr.bf16.mxu0 0
    %1764 = vmatpush1.bf16.msra.mxu0 0
    %1765 = vmatprep.subr.bf16.mxu0 0
    %1766 = vmatpush1.bf16.msra.mxu0 0
    %1767 = vmatprep.subr.bf16.mxu0 0
    %1768 = vmatpush1.bf16.msra.mxu0 %v1320
    %1769 = vmatprep.subr.bf16.mxu0 0
    %1770 = vmatpush1.bf16.msra.mxu0 %v1319
    %1771 = vmatprep.subr.bf16.mxu0 0
    %1772 = vmatpush2.bf16.msra.mxu0 0
    %1773 = vmatprep.subr.bf16.mxu0 0
    %1774 = vmatpush2.bf16.msra.mxu0 0
    %1775 = vmatprep.subr.bf16.mxu0 0
    %1776 = vmatpush2.bf16.msra.mxu0 0
    %1777 = vmatprep.subr.bf16.mxu0 0
    %1778 = vmatpush2.bf16.msra.mxu0 0
    %1779 = vmatprep.subr.bf16.mxu0 0
    %1780 = vmatpush2.bf16.msra.mxu0 0
    %1781 = vmatprep.subr.bf16.mxu0 0
    %1782 = vmatpush2.bf16.msra.mxu0 0
    %1783 = vmatprep.subr.bf16.mxu0 0
    %1784 = vmatpush2.bf16.msra.mxu0 0
    %1785 = vmatprep.subr.bf16.mxu0 0
    %1786 = vmatpush2.bf16.msra.mxu0 0
    %1787 = vmatprep.mubr.bf16.mxu0 0
    %1788 = vmatmul.mubr.bf16.gmra.mxu0 %v1753
    %v1789 = vpop.f32.mrf.mxu0
    %v1790 = vadd.f32 %v1226, %v1789
    %v1791 = vpop.f32.mrf.mxu0
    %v1792 = vpop.f32.mrf.mxu0
    %v1793 = vpop.f32.mrf.mxu0
    %1794 = vdwg.mxu0
    %v1795 = vxor.u32 %v1790, 2147483648
    %v1796 = vmul.f32 %v1795, 1.442695
    %v1797 = vpow.pop %v1796
    %v1798 = vadd.f32 %v1797, 1.0
    %v1799 = vrcp.pop %v1798
    %v1800 = vmul.f32 1.0, %v1799
    %v1801 = vmul.f32 %v1800, 2.0
    %v1802 = vsub.f32 %v1801, 1.0
    %v1803 = vmul.f32 %v1800, %v1741
    %1805 = vrot.lane.b32.xlu0 %v1802, 64
    %v1806 = vpop.permute.xlu0 %1805
    %v1808 = vmul.f32 %v1800, %v1806
    %1810 = vrot.lane.b32.xlu0 %v1808, 32
    %v1811 = vpop.permute.xlu0 %1810
    %v1813 = vadd.f32 %v1803, %v1811
    %v1814 = vtanh.pop %v1813
    %1816 = vrot.lane.b32.xlu0 %v1814, 64
    %v1817 = vpop.permute.xlu0 %1816
    %v1819 = vmul.f32 %v1800, %v1817
    %v1820 = vpack.c.bf16 %v1819, %v1819
    %1822 = vrot.lane.b32.xlu0 %v1820, 32
    %v1823 = vpop.permute.xlu0 %1822
    %v1825 = vsel %vm437, %v1823, 0
    %1827 = vmatprep.subr.bf16.mxu0 0
    %1828 = vmatpush1.bf16.msra.mxu0 0
    %1829 = vmatprep.subr.bf16.mxu0 0
    %1830 = vmatpush1.bf16.msra.mxu0 0
    %1831 = vmatprep.subr.bf16.mxu0 0
    %1832 = vmatpush1.bf16.msra.mxu0 0
    %1833 = vmatprep.subr.bf16.mxu0 0
    %1834 = vmatpush1.bf16.msra.mxu0 0
    %1835 = vmatprep.subr.bf16.mxu0 0
    %1836 = vmatpush1.bf16.msra.mxu0 0
    %1837 = vmatprep.subr.bf16.mxu0 0
    %1838 = vmatpush1.bf16.msra.mxu0 0
    %1839 = vmatprep.subr.bf16.mxu0 0
    %1840 = vmatpush1.bf16.msra.mxu0 %v1320
    %1841 = vmatprep.subr.bf16.mxu0 0
    %1842 = vmatpush1.bf16.msra.mxu0 %v1319
    %1843 = vmatprep.subr.bf16.mxu0 0
    %1844 = vmatpush2.bf16.msra.mxu0 0
    %1845 = vmatprep.subr.bf16.mxu0 0
    %1846 = vmatpush2.bf16.msra.mxu0 0
    %1847 = vmatprep.subr.bf16.mxu0 0
    %1848 = vmatpush2.bf16.msra.mxu0 0
    %1849 = vmatprep.subr.bf16.mxu0 0
    %1850 = vmatpush2.bf16.msra.mxu0 0
    %1851 = vmatprep.subr.bf16.mxu0 0
    %1852 = vmatpush2.bf16.msra.mxu0 0
    %1853 = vmatprep.subr.bf16.mxu0 0
    %1854 = vmatpush2.bf16.msra.mxu0 0
    %1855 = vmatprep.subr.bf16.mxu0 0
    %1856 = vmatpush2.bf16.msra.mxu0 0
    %1857 = vmatprep.subr.bf16.mxu0 0
    %1858 = vmatpush2.bf16.msra.mxu0 0
    %1859 = vmatprep.mubr.bf16.mxu0 0
    %1860 = vmatmul.mubr.bf16.gmra.mxu0 %v1825
    %v1861 = vpop.f32.mrf.mxu0
    %v1862 = vadd.f32 %v1310, %v1861
    %v1863 = vpop.f32.mrf.mxu0
    %v1864 = vpop.f32.mrf.mxu0
    %v1865 = vpop.f32.mrf.mxu0
    %1866 = vdwg.mxu0
    %v1867 = vxor.u32 %v1862, 2147483648
    %v1868 = vmul.f32 %v1867, 1.442695
    %v1869 = vpow.pop %v1868
    %v1870 = vadd.f32 %v1869, 1.0
    %v1871 = vrcp.pop %v1870
    %v1872 = vmul.f32 1.0, %v1871
    %v1873 = vmul.f32 %v1872, 2.0
    %v1874 = vsub.f32 %v1873, 1.0
    %v1875 = vmul.f32 %v1872, %v1813
    %1877 = vrot.lane.b32.xlu0 %v1874, 64
    %v1878 = vpop.permute.xlu0 %1877
    %v1880 = vmul.f32 %v1872, %v1878
    %1882 = vrot.lane.b32.xlu0 %v1880, 32
    %v1883 = vpop.permute.xlu0 %1882
    %v1885 = vadd.f32 %v1875, %v1883
    %v1886 = vtanh.pop %v1885
    %1888 = vrot.lane.b32.xlu0 %v1886, 64
    %v1889 = vpop.permute.xlu0 %1888
    %v1891 = vmul.f32 %v1872, %v1889
    %v1892 = vmul.f32 %v1301, %v1891
    %s1893 = sld [smem:[#allocation6 + $0x7]]
    %v1894 = vstv %s1893
    %v1895 = vadd.f32 %v1892, %v1894
    %v1896 = vpack.c.bf16 %v1895, %v1895
    %v1897 = vld [vmem:[#allocation14] sm:$0xf]
    %v1898 = vld [vmem:[#allocation14 + $0x4] sm:$0xf]
    %v1899 = vld [vmem:[#allocation14 + $0x8] sm:$0xf]
    %v1900 = vld [vmem:[#allocation14 + $0xc] sm:$0xf]
    %1902 = vrot.lane.b32.xlu0 %v1896, 32
    %v1903 = vpop.permute.xlu0 %1902
    %v1908 = vunpack.c.l.b16 %v1897
    %v1909 = vunpack.c.l.b16 %v1898
    %v1910 = vunpack.c.l.b16 %v1899
    %v1911 = vunpack.c.l.b16 %v1900
    %v1912 = vpack.c.b16 %v1909, %v1908
    %v1913 = vpack.c.b16 %v1911, %v1910
    %v1917 = vsel %vm437, %v1903, 0
    %1919 = vmatprep.subr.bf16.mxu0 0
    %1920 = vmatpush1.bf16.msra.mxu0 0
    %1921 = vmatprep.subr.bf16.mxu0 0
    %1922 = vmatpush1.bf16.msra.mxu0 0
    %1923 = vmatprep.subr.bf16.mxu0 0
    %1924 = vmatpush1.bf16.msra.mxu0 0
    %1925 = vmatprep.subr.bf16.mxu0 0
    %1926 = vmatpush1.bf16.msra.mxu0 0
    %1927 = vmatprep.subr.bf16.mxu0 0
    %1928 = vmatpush1.bf16.msra.mxu0 0
    %1929 = vmatprep.subr.bf16.mxu0 0
    %1930 = vmatpush1.bf16.msra.mxu0 0
    %1931 = vmatprep.subr.bf16.mxu0 0
    %1932 = vmatpush1.bf16.msra.mxu0 %v1913
    %1933 = vmatprep.subr.bf16.mxu0 0
    %1934 = vmatpush1.bf16.msra.mxu0 %v1912
    %1935 = vmatprep.subr.bf16.mxu0 0
    %1936 = vmatpush2.bf16.msra.mxu0 0
    %1937 = vmatprep.subr.bf16.mxu0 0
    %1938 = vmatpush2.bf16.msra.mxu0 0
    %1939 = vmatprep.subr.bf16.mxu0 0
    %1940 = vmatpush2.bf16.msra.mxu0 0
    %1941 = vmatprep.subr.bf16.mxu0 0
    %1942 = vmatpush2.bf16.msra.mxu0 0
    %1943 = vmatprep.subr.bf16.mxu0 0
    %1944 = vmatpush2.bf16.msra.mxu0 0
    %1945 = vmatprep.subr.bf16.mxu0 0
    %1946 = vmatpush2.bf16.msra.mxu0 0
    %1947 = vmatprep.subr.bf16.mxu0 0
    %1948 = vmatpush2.bf16.msra.mxu0 0
    %1949 = vmatprep.subr.bf16.mxu0 0
    %1950 = vmatpush2.bf16.msra.mxu0 0
    %1951 = vmatprep.mubr.bf16.mxu0 0
    %1952 = vmatmul.mubr.bf16.gmra.mxu0 %v1917
    %v1953 = vpop.f32.mrf.mxu0
    %v1954 = vadd.f32 %v296, %v1953
    %v1955 = vpop.f32.mrf.mxu0
    %v1956 = vpop.f32.mrf.mxu0
    %v1957 = vpop.f32.mrf.mxu0
    %1958 = vdwg.mxu0
    %v1959 = vmul.f32 %v254, %v1954
    %v1960 = vmax.f32 %v1959, 0.0
    %vm1961 = vcmp.ne.f32.partialorder %v1959, %v1959
    %v1962 = vadd.f32 %v1959, 0.0
    %v1963 = vand.u32 2147483647, %v1959
    %v1964 = vsub.f32 0.0, %v1963
    %v1965 = vmul.f32 %v1964, 1.442695
    %v1966 = vpow.pop %v1965
    %v1967 = vadd.f32 %v1966, 1.0
    %v1968 = vlog2.pop %v1967
    %v1969 = vmul.f32 %v1968, 0.6931472
    %v1970 = vmul.f32 -0.5, %v1966
    %v1971 = vadd.f32 %v1970, 1.0
    %v1972 = vmul.f32 %v1971, %v1966
    %v1973 = vand.u32 2147483647, %v1966
    %vm1974 = vcmp.lt.f32.partialorder %v1973, 0.0004427343
    %v1975 = vsel %vm1974, %v1972, %v1969
    %v1976 = vadd.f32 %v1960, %v1975
    %v1977 = vsel %vm1961, %v1962, %v1976
    %v1978 = vpack.c.bf16 %v1977, %v1977
    %v1979 = vld [vmem:[%s16] sm:$0xf]
    %v1980 = vld [vmem:[%s16 + $0x4] sm:$0xf]
    %v1981 = vld [vmem:[%s16 + $0x8] sm:$0xf]
    %v1982 = vld [vmem:[%s16 + $0xc] sm:$0xf]
    %v1983 = vld [vmem:[%s16 + $0x10] sm:$0xf]
    %v1984 = vld [vmem:[%s16 + $0x14] sm:$0xf]
    %v1985 = vld [vmem:[%s16 + $0x18] sm:$0xf]
    %v1986 = vld [vmem:[%s16 + $0x1c] sm:$0xf]
    %v1987 = vld [vmem:[%s17] sm:$0x1]
    %v1989 = vlaneseq
    %v1990 = vshrl.u32 %v1989, 7
    %v1991 = vsub.s32 0, %v1990
    %v1992 = vrot.slane %v1987, %v1991
    %v2002 = vunpack.c.l.b16 %v1979
    %v2003 = vunpack.c.l.b16 %v1980
    %v2004 = vunpack.c.l.b16 %v1981
    %v2005 = vunpack.c.l.b16 %v1982
    %v2006 = vunpack.c.l.b16 %v1983
    %v2007 = vunpack.c.l.b16 %v1984
    %v2008 = vunpack.c.l.b16 %v1985
    %v2009 = vunpack.c.l.b16 %v1986
    %v2010 = vpack.c.b16 %v2003, %v2002
    %v2011 = vpack.c.b16 %v2005, %v2004
    %v2012 = vpack.c.b16 %v2007, %v2006
    %v2013 = vpack.c.b16 %v2009, %v2008
    %vm2018 = vcmask 523264
    %v2020 = vsel %vm2018, %v1978, 0
    %2022 = vmatprep.subr.bf16.mxu0 0
    %2023 = vmatpush1.bf16.msra.mxu0 0
    %2024 = vmatprep.subr.bf16.mxu0 0
    %2025 = vmatpush1.bf16.msra.mxu0 0
    %2026 = vmatprep.subr.bf16.mxu0 0
    %2027 = vmatpush1.bf16.msra.mxu0 0
    %2028 = vmatprep.subr.bf16.mxu0 0
    %2029 = vmatpush1.bf16.msra.mxu0 0
    %2030 = vmatprep.subr.bf16.mxu0 0
    %2031 = vmatpush1.bf16.msra.mxu0 %v2013
    %2032 = vmatprep.subr.bf16.mxu0 0
    %2033 = vmatpush1.bf16.msra.mxu0 %v2012
    %2034 = vmatprep.subr.bf16.mxu0 0
    %2035 = vmatpush1.bf16.msra.mxu0 %v2011
    %2036 = vmatprep.subr.bf16.mxu0 0
    %2037 = vmatpush1.bf16.msra.mxu0 %v2010
    %2038 = vmatprep.subr.bf16.mxu0 0
    %2039 = vmatpush2.bf16.msra.mxu0 0
    %2040 = vmatprep.subr.bf16.mxu0 0
    %2041 = vmatpush2.bf16.msra.mxu0 0
    %2042 = vmatprep.subr.bf16.mxu0 0
    %2043 = vmatpush2.bf16.msra.mxu0 0
    %2044 = vmatprep.subr.bf16.mxu0 0
    %2045 = vmatpush2.bf16.msra.mxu0 0
    %2046 = vmatprep.subr.bf16.mxu0 0
    %2047 = vmatpush2.bf16.msra.mxu0 0
    %2048 = vmatprep.subr.bf16.mxu0 0
    %2049 = vmatpush2.bf16.msra.mxu0 0
    %2050 = vmatprep.subr.bf16.mxu0 0
    %2051 = vmatpush2.bf16.msra.mxu0 0
    %2052 = vmatprep.subr.bf16.mxu0 0
    %2053 = vmatpush2.bf16.msra.mxu0 0
    %2054 = vmatprep.mubr.bf16.mxu0 0
    %2055 = vmatmul.mubr.bf16.gmra.mxu0 %v2020
    %v2056 = vpop.f32.mrf.mxu0
    %v2057 = vadd.f32 %v1992, %v2056
    %v2058 = vpop.f32.mrf.mxu0
    %v2059 = vpop.f32.mrf.mxu0
    %v2060 = vpop.f32.mrf.mxu0
    %2061 = vdwg.mxu0
    %2063 = vrot.lane.b32.xlu0 %v2057, 64
    %v2064 = vpop.permute.xlu0 %2063
    %v2066 = vmul.f32 %v254, %v2064
    %v2067 = vmax.f32 %v2066, 0.0
    %vm2068 = vcmp.ne.f32.partialorder %v2066, %v2066
    %v2069 = vadd.f32 %v2066, 0.0
    %v2070 = vand.u32 2147483647, %v2066
    %v2071 = vsub.f32 0.0, %v2070
    %v2072 = vmul.f32 %v2071, 1.442695
    %v2073 = vpow.pop %v2072
    %v2074 = vadd.f32 %v2073, 1.0
    %v2075 = vlog2.pop %v2074
    %v2076 = vmul.f32 %v2075, 0.6931472
    %v2077 = vmul.f32 -0.5, %v2073
    %v2078 = vadd.f32 %v2077, 1.0
    %v2079 = vmul.f32 %v2078, %v2073
    %v2080 = vand.u32 2147483647, %v2073
    %vm2081 = vcmp.lt.f32.partialorder %v2080, 0.0004427343
    %v2082 = vsel %vm2081, %v2079, %v2076
    %v2083 = vadd.f32 %v2067, %v2082
    %v2084 = vsel %vm2068, %v2069, %v2083
    %v2085 = vpack.c.bf16 %v2084, %v2084
    %v2086 = vld [vmem:[%s18] sm:$0xf]
    %v2087 = vld [vmem:[%s18 + $0x4] sm:$0xf]
    %v2088 = vld [vmem:[%s18 + $0x8] sm:$0xf]
    %v2089 = vld [vmem:[%s18 + $0xc] sm:$0xf]
    %v2090 = vld [vmem:[%s18 + $0x10] sm:$0xf]
    %v2091 = vld [vmem:[%s18 + $0x14] sm:$0xf]
    %v2092 = vld [vmem:[%s18 + $0x18] sm:$0xf]
    %v2093 = vld [vmem:[%s18 + $0x1c] sm:$0xf]
    %v2094 = vld [vmem:[%s19] sm:$0x1]
    %v2096 = vlaneseq
    %v2097 = vshrl.u32 %v2096, 7
    %v2098 = vsub.s32 0, %v2097
    %v2099 = vrot.slane %v2094, %v2098
    %2102 = vrot.lane.b32.xlu0 %v2085, 64
    %v2103 = vpop.permute.xlu0 %2102
    %v2112 = vunpack.c.l.b16 %v2086
    %v2113 = vunpack.c.l.b16 %v2087
    %v2114 = vunpack.c.l.b16 %v2088
    %v2115 = vunpack.c.l.b16 %v2089
    %v2116 = vunpack.c.l.b16 %v2090
    %v2117 = vunpack.c.l.b16 %v2091
    %v2118 = vunpack.c.l.b16 %v2092
    %v2119 = vunpack.c.l.b16 %v2093
    %v2120 = vpack.c.b16 %v2113, %v2112
    %v2121 = vpack.c.b16 %v2115, %v2114
    %v2122 = vpack.c.b16 %v2117, %v2116
    %v2123 = vpack.c.b16 %v2119, %v2118
    %v2129 = vsel %vm2018, %v2103, 0
    %2131 = vmatprep.subr.bf16.mxu0 0
    %2132 = vmatpush1.bf16.msra.mxu0 0
    %2133 = vmatprep.subr.bf16.mxu0 0
    %2134 = vmatpush1.bf16.msra.mxu0 0
    %2135 = vmatprep.subr.bf16.mxu0 0
    %2136 = vmatpush1.bf16.msra.mxu0 0
    %2137 = vmatprep.subr.bf16.mxu0 0
    %2138 = vmatpush1.bf16.msra.mxu0 0
    %2139 = vmatprep.subr.bf16.mxu0 0
    %2140 = vmatpush1.bf16.msra.mxu0 %v2123
    %2141 = vmatprep.subr.bf16.mxu0 0
    %2142 = vmatpush1.bf16.msra.mxu0 %v2122
    %2143 = vmatprep.subr.bf16.mxu0 0
    %2144 = vmatpush1.bf16.msra.mxu0 %v2121
    %2145 = vmatprep.subr.bf16.mxu0 0
    %2146 = vmatpush1.bf16.msra.mxu0 %v2120
    %2147 = vmatprep.subr.bf16.mxu0 0
    %2148 = vmatpush2.bf16.msra.mxu0 0
    %2149 = vmatprep.subr.bf16.mxu0 0
    %2150 = vmatpush2.bf16.msra.mxu0 0
    %2151 = vmatprep.subr.bf16.mxu0 0
    %2152 = vmatpush2.bf16.msra.mxu0 0
    %2153 = vmatprep.subr.bf16.mxu0 0
    %2154 = vmatpush2.bf16.msra.mxu0 0
    %2155 = vmatprep.subr.bf16.mxu0 0
    %2156 = vmatpush2.bf16.msra.mxu0 0
    %2157 = vmatprep.subr.bf16.mxu0 0
    %2158 = vmatpush2.bf16.msra.mxu0 0
    %2159 = vmatprep.subr.bf16.mxu0 0
    %2160 = vmatpush2.bf16.msra.mxu0 0
    %2161 = vmatprep.subr.bf16.mxu0 0
    %2162 = vmatpush2.bf16.msra.mxu0 0
    %2163 = vmatprep.mubr.bf16.mxu0 0
    %2164 = vmatmul.mubr.bf16.gmra.mxu0 %v2129
    %v2165 = vpop.f32.mrf.mxu0
    %v2166 = vadd.f32 %v2099, %v2165
    %v2167 = vpop.f32.mrf.mxu0
    %v2168 = vpop.f32.mrf.mxu0
    %v2169 = vpop.f32.mrf.mxu0
    %2170 = vdwg.mxu0
    %v2171 = vmul.f32 %v256, %v2166
    %v2172 = vmax.f32 %v2171, 0.0
    %vm2173 = vcmp.ne.f32.partialorder %v2171, %v2171
    %v2174 = vadd.f32 %v2171, 0.0
    %v2175 = vand.u32 2147483647, %v2171
    %v2176 = vsub.f32 0.0, %v2175
    %v2177 = vmul.f32 %v2176, 1.442695
    %v2178 = vpow.pop %v2177
    %v2179 = vadd.f32 %v2178, 1.0
    %v2180 = vlog2.pop %v2179
    %v2181 = vmul.f32 %v2180, 0.6931472
    %v2182 = vmul.f32 -0.5, %v2178
    %v2183 = vadd.f32 %v2182, 1.0
    %v2184 = vmul.f32 %v2183, %v2178
    %v2185 = vand.u32 2147483647, %v2178
    %vm2186 = vcmp.lt.f32.partialorder %v2185, 0.0004427343
    %v2187 = vsel %vm2186, %v2184, %v2181
    %v2188 = vadd.f32 %v2172, %v2187
    %v2189 = vsel %vm2173, %v2174, %v2188
    %v2190 = vld [vmem:[#allocation18] sm:$0x1]
    %v2192 = vlaneseq
    %v2193 = vshrl.u32 %v2192, 7
    %v2194 = vsub.s32 0, %v2193
    %v2195 = vrot.slane %v2190, %v2194
    %v2197 = vmul.f32 %v2189, %v2195
    %v2198 = vsel %vm2018, %v2197, 0.0
    %2199 = vadd.xlane.f32.xlu0 %v2198
    %v2200 = vpop.xlane.xlu0 %2199
    %v2201 = vld [vmem:[#allocation2] sm:$0x1]
    %v2203 = vlaneseq
    %v2204 = vshrl.u32 %v2203, 7
    %v2205 = vsub.s32 0, %v2204
    %v2206 = vrot.slane %v2201, %v2205
    %v2208 = vadd.f32 %v2200, %v2206
    %vm2209 = vcmask 7168
    %2210 = vst.msk [vmem:[%s22] sm:$0xff] %vm2209, %v2208
    // Predicated region
    $region130: #{forward.1} parent=1 // pred_check
      _
    $region131: #{forward.1} parent=1 // pred_check_branch
      %2212 = sbr.rel (0) target = $region133
    $region132: #{forward.1} parent=1 // pred_region
      _
    $region133: #{forward.1} parent=1 // pred_fallthru
      _
    // Predicated region
    $region134: #{forward.1} parent=1 // pred_check
      _
    $region135: #{forward.1} parent=1 // pred_check_branch
      %2214 = sbr.rel (0) target = $region137
    $region136: #{forward.1} parent=1 // pred_region
      _
    $region137: #{forward.1} parent=1 // pred_fallthru
      _
    %2215 = vsyncpa [#allocation4], 1
    %2216 = vsyncpa [#allocation10], 1
    %2217 = vsyncpa [#allocation13], 1
    %2218 = vsyncpa [#allocation16], 1
    %2219 = vsyncpa [#allocation19], 1
    %2220 = vsyncpa [#allocation5], 1
    %2221 = vsyncpa [#allocation7], 1

</llo_original>
